<compile_context>
chip_gen: v6e
topology: v6e:2x2x1
jax: 0.10.0
libtpu: 0.0.40
codegen_flags: <defaults>
</compile_context>

<pallas_src>
import numpy as np
import jax
import jax.numpy as jnp
from jax.experimental import pallas as pl
from jax.experimental.pallas import tpu as pltpu

NH = 5                      # hidden channels (module default)
BLK40, BLK20 = 42, 22       # per-channel lane block = width + 2 (zero border)
L40 = NH * BLK40 + 2        # 212 lanes at the 40x40 stage
L20 = NH * BLK20 + 2        # 112 lanes at the 20x20 stage


# ------------------------------ Pallas kernel ------------------------------ #

def _convvae_kernel(x_ref, m1_ref, bv1_ref, m2_ref, bv2_ref, sv_ref, dh_ref,
                    m3_ref, bv3_ref, m4_ref, bv4_ref, m5_ref, bv5_ref,
                    wd_ref, bd_ref, wb_ref, bb_ref, alpha_ref,
                    out_ref,
                    fa_ref, fb_ref, fc_ref, fd_ref, flat_ref):
    f32 = jnp.float32

    def prelu(v, a):
        return jnp.where(v >= 0.0, v, a * v)

    def conv_taps(load, m_ref):
        # 3x3 conv == 3 row-shifted slices x banded weight matrices (MXU).
        acc = jnp.dot(load(0), m_ref[0], preferred_element_type=f32)
        acc = acc + jnp.dot(load(1), m_ref[1], preferred_element_type=f32)
        acc = acc + jnp.dot(load(2), m_ref[2], preferred_element_type=f32)
        return acc

    # Scratch frames carry the zero border; scratch is uninitialized and batch
    # iterations may be split across cores, so zero them every grid step.
    fa_ref[...] = jnp.zeros_like(fa_ref)
    fb_ref[...] = jnp.zeros_like(fb_ref)
    fc_ref[...] = jnp.zeros_like(fc_ref)
    fd_ref[...] = jnp.zeros_like(fd_ref)

    # conv1 + PReLU : padded image (42,42) -> frame A interior (40, 212)
    y = conv_taps(lambda di: x_ref[pl.ds(di, 40), :], m1_ref)
    fa_ref[pl.ds(1, 40), :] = prelu(y + bv1_ref[...], alpha_ref[0])

    # conv2 + PReLU : (40, 212)
    y2 = conv_taps(lambda di: fa_ref[pl.ds(di, 40), :], m2_ref)
    y2 = prelu(y2 + bv2_ref[...], alpha_ref[1])

    # maxpool(2,2) + PReLU : lane-pair max, row-pair max, then MXU selection
    # (sv picks even rows, dh picks even columns and re-pads the 20x20 frame).
    hmax = jnp.maximum(y2[:, 0:L40 - 1], y2[:, 1:L40])     # (40, 211)
    vmax = jnp.maximum(hmax[0:39, :], hmax[1:40, :])       # (39, 211)
    pooled = jnp.dot(sv_ref[...], vmax, preferred_element_type=f32)    # (20, 211)
    pooled = jnp.dot(pooled, dh_ref[...], preferred_element_type=f32)  # (20, 112)
    fb_ref[pl.ds(1, 20), :] = prelu(pooled, alpha_ref[2])

    # conv3 + PReLU
    y = conv_taps(lambda di: fb_ref[pl.ds(di, 20), :], m3_ref)
    fc_ref[pl.ds(1, 20), :] = prelu(y + bv3_ref[...], alpha_ref[3])

    # conv4 + PReLU
    y = conv_taps(lambda di: fc_ref[pl.ds(di, 20), :], m4_ref)
    fd_ref[pl.ds(1, 20), :] = prelu(y + bv4_ref[...], alpha_ref[4])

    # conv5 + PReLU : single output channel -> (20, 22)
    y5 = conv_taps(lambda di: fd_ref[pl.ds(di, 20), :], m5_ref)
    y5 = prelu(y5 + bv5_ref[...], alpha_ref[5])

    # Flatten (NCHW order) into a (1, 440) lane vector; the border lanes are
    # nulled by zero rows of the prepared dense weight.
    for hh in range(20):
        flat_ref[:, pl.ds(BLK20 * hh, BLK20)] = y5[hh:hh + 1, :]

    # dense + PReLU, bottleneck + PReLU (out_activation)
    d = jnp.dot(flat_ref[...], wd_ref[...], preferred_element_type=f32) + bd_ref[...]
    d = prelu(d, alpha_ref[6])
    z = jnp.dot(d, wb_ref[...], preferred_element_type=f32) + bb_ref[...]
    z = prelu(z, alpha_ref[7])
    out_ref[...] = z


# ------------------------- parameters / preparation ------------------------ #

def init_params(key, in_chan=1, nh=5, nh_bln=32):
    ks = jax.random.split(key, 14)

    def conv_w(k, co, ci):
        return 0.1 * jax.random.normal(k, (co, ci, 3, 3), jnp.float32)

    def vec(k, n):
        return 0.05 * jax.random.normal(k, (n,), jnp.float32)

    p = {}
    p['w1'], p['b1'] = conv_w(ks[0], nh, in_chan), vec(ks[1], nh)
    p['w2'], p['b2'] = conv_w(ks[2], nh, nh), vec(ks[3], nh)
    p['w3'], p['b3'] = conv_w(ks[4], nh, nh), vec(ks[5], nh)
    p['w4'], p['b4'] = conv_w(ks[6], nh, nh), vec(ks[7], nh)
    p['w5'], p['b5'] = conv_w(ks[8], 1, nh), vec(ks[9], 1)
    p['wd'] = 0.05 * jax.random.normal(ks[10], (100, 20 * 20), jnp.float32)
    p['bd'] = vec(ks[11], 100)
    p['wb'] = 0.05 * jax.random.normal(ks[12], (nh_bln, 100), jnp.float32)
    p['bb'] = vec(ks[13], nh_bln)
    for i in range(8):                 # 8 nn.PReLU() modules, default 0.25
        p[f'a{i + 1}'] = jnp.float32(0.25)
    return p


def prepare_params(p):
    """One-time re-layout of the PyTorch-style params into kernel operands."""
    nh = int(p['w1'].shape[0])
    assert nh == NH, "kernel constants assume nh == 5 (module default)"

    def conv_mats(w, in_blk, out_blk, in_lanes, out_lanes, width):
        # Banded matrix M[di]: lane ci*in_blk + (x+dj)  ->  lane co*out_blk + (x+1)
        w = np.asarray(w, np.float64)
        cout, cin = w.shape[0], w.shape[1]
        m = np.zeros((3, in_lanes, out_lanes), np.float64)
        ci = np.arange(cin)[:, None]
        co = np.arange(cout)[None, :]
        for di in range(3):
            for dj in range(3):
                wv = w[:, :, di, dj].T                      # (cin, cout)
                for xcol in range(width):
                    m[di, ci * in_blk + xcol + dj, co * out_blk + xcol + 1] += wv
        return jnp.asarray(m, jnp.float32)

    def bias_vec(b, out_blk, out_lanes, width):
        b = np.asarray(b, np.float64)
        v = np.zeros((1, out_lanes), np.float64)
        for co in range(b.shape[0]):
            v[0, co * out_blk + 1: co * out_blk + 1 + width] = b[co]
        return jnp.asarray(v, jnp.float32)

    # Maxpool selections: sv picks even rows, dh picks even columns of each
    # channel block and re-pads into the 20x20-stage frame layout.
    sv = np.zeros((20, 39), np.float32)
    sv[np.arange(20), 2 * np.arange(20)] = 1.0
    dh = np.zeros((L40 - 1, L20), np.float32)
    for c in range(NH):
        for j in range(20):
            dh[c * BLK40 + 2 * j + 1, c * BLK20 + j + 1] = 1.0

    # Dense weight re-laid to the (22-wide, bordered) flatten order.
    wd = np.asarray(p['wd'], np.float64)                    # (100, 400)
    wdp = np.zeros((20 * BLK20, wd.shape[0]), np.float64)   # (440, 100)
    for hh in range(20):
        wdp[BLK20 * hh + 1: BLK20 * hh + 21, :] = wd[:, 20 * hh: 20 * hh + 20].T

    return {
        'm1': conv_mats(p['w1'], 42, BLK40, 42, L40, 40),
        'bv1': bias_vec(p['b1'], BLK40, L40, 40),
        'm2': conv_mats(p['w2'], BLK40, BLK40, L40, L40, 40),
        'bv2': bias_vec(p['b2'], BLK40, L40, 40),
        'sv': jnp.asarray(sv),
        'dh': jnp.asarray(dh),
        'm3': conv_mats(p['w3'], BLK20, BLK20, L20, L20, 20),
        'bv3': bias_vec(p['b3'], BLK20, L20, 20),
        'm4': conv_mats(p['w4'], BLK20, BLK20, L20, L20, 20),
        'bv4': bias_vec(p['b4'], BLK20, L20, 20),
        'm5': conv_mats(p['w5'], BLK20, BLK20, L20, BLK20, 20),
        'bv5': bias_vec(p['b5'], BLK20, BLK20, 20),
        'wd': jnp.asarray(wdp, jnp.float32),
        'bd': jnp.asarray(np.asarray(p['bd']).reshape(1, -1), jnp.float32),
        'wb': jnp.asarray(np.asarray(p['wb']).T, jnp.float32),
        'bb': jnp.asarray(np.asarray(p['bb']).reshape(1, -1), jnp.float32),
        'alphas': jnp.asarray(
            np.array([float(p[f'a{i + 1}']) for i in range(8)], np.float32)),
    }


_PREP_ORDER = ('m1', 'bv1', 'm2', 'bv2', 'sv', 'dh', 'm3', 'bv3', 'm4', 'bv4',
               'm5', 'bv5', 'wd', 'bd', 'wb', 'bb')


def _const_index_map(nd):
    return lambda b: (0,) * nd


# --------------------------------- forward --------------------------------- #

def conv_vae_forward(prep, x):
    B = x.shape[0]
    nbln = prep['bb'].shape[1]
    xpad = jnp.pad(x[:, 0].astype(jnp.float32), ((0, 0), (1, 1), (1, 1)))  # (B,42,42)

    ordered = [prep[k] for k in _PREP_ORDER]
    in_specs = [pl.BlockSpec((None, 42, 42), lambda b: (b, 0, 0))]
    in_specs += [pl.BlockSpec(a.shape, _const_index_map(a.ndim)) for a in ordered]
    in_specs += [pl.BlockSpec(memory_space=pltpu.MemorySpace.SMEM)]   # alphas

    out = pl.pallas_call(
        _convvae_kernel,
        out_shape=jax.ShapeDtypeStruct((B, 1, nbln), jnp.float32),
        grid=(B,),
        in_specs=in_specs,
        out_specs=pl.BlockSpec((None, 1, nbln), lambda b: (b, 0, 0)),
        scratch_shapes=[
            pltpu.VMEM((42, L40), jnp.float32),        # frame A (40x40 stage)
            pltpu.VMEM((22, L20), jnp.float32),        # frame B (20x20 stage)
            pltpu.VMEM((22, L20), jnp.float32),        # frame C
            pltpu.VMEM((22, L20), jnp.float32),        # frame D
            pltpu.VMEM((1, 20 * BLK20), jnp.float32),  # flattened conv5 output
        ],
        compiler_params=pltpu.CompilerParams(dimension_semantics=("parallel",)),
    )(xpad, *ordered, prep['alphas'])
    return out.reshape(B, nbln)


# ------------------------------ JAX reference ------------------------------ #

def conv_vae_reference(p, x):
    hi = jax.lax.Precision.HIGHEST
    dn = ('NCHW', 'OIHW', 'NCHW')

    def prelu(v, a):
        return jnp.where(v >= 0, v, a * v)

    def conv(h, w, b):
        y = jax.lax.conv_general_dilated(h, w, (1, 1), ((1, 1), (1, 1)),
                                         dimension_numbers=dn, precision=hi)
        return y + b.reshape(1, -1, 1, 1)

    h = prelu(conv(x, p['w1'], p['b1']), p['a1'])
    h = prelu(conv(h, p['w2'], p['b2']), p['a2'])
    B, C, H, W = h.shape
    h = prelu(h.reshape(B, C, H // 2, 2, W // 2, 2).max(axis=(3, 5)), p['a3'])
    h = prelu(conv(h, p['w3'], p['b3']), p['a4'])
    h = prelu(conv(h, p['w4'], p['b4']), p['a5'])
    h = prelu(conv(h, p['w5'], p['b5']), p['a6'])
    f = h.reshape(B, -1)
    d = prelu(jnp.dot(f, p['wd'].T, precision=hi) + p['bd'], p['a7'])
    z = prelu(jnp.dot(d, p['wb'].T, precision=hi) + p['bb'], p['a8'])
    return z


if __name__ == "__main__":
    key = jax.random.PRNGKey(0)
    pkey, xkey = jax.random.split(key)
    params = init_params(pkey)
    prep = prepare_params(params)          # one-time weight prep, outside jit
    x = jax.random.normal(xkey, (2, 1, 40, 40), jnp.float32)

    fwd = jax.jit(conv_vae_forward)
    out = fwd(prep, x)
    jax.block_until_ready(out)
    assert out.shape == (2, 32) and out.dtype == jnp.float32

    ref = conv_vae_reference(params, x)
    err = float(jnp.max(jnp.abs(out - ref)))
    assert err < 2e-2, f"kernel/reference mismatch: max abs err = {err}"
    print("KERNEL_OK")
</pallas_src>

<mosaic_0001>
module attributes {stable_mosaic.version = 11 : i64} {
  func.func @_convvae_kernel(%arg0: i32, %arg1: memref<1x42x42xf32, #tpu.memory_space<vmem>>, %arg2: memref<3x42x212xf32, #tpu.memory_space<vmem>>, %arg3: memref<1x212xf32, #tpu.memory_space<vmem>>, %arg4: memref<3x212x212xf32, #tpu.memory_space<vmem>>, %arg5: memref<1x212xf32, #tpu.memory_space<vmem>>, %arg6: memref<20x39xf32, #tpu.memory_space<vmem>>, %arg7: memref<211x112xf32, #tpu.memory_space<vmem>>, %arg8: memref<3x112x112xf32, #tpu.memory_space<vmem>>, %arg9: memref<1x112xf32, #tpu.memory_space<vmem>>, %arg10: memref<3x112x112xf32, #tpu.memory_space<vmem>>, %arg11: memref<1x112xf32, #tpu.memory_space<vmem>>, %arg12: memref<3x112x22xf32, #tpu.memory_space<vmem>>, %arg13: memref<1x22xf32, #tpu.memory_space<vmem>>, %arg14: memref<440x100xf32, #tpu.memory_space<vmem>>, %arg15: memref<1x100xf32, #tpu.memory_space<vmem>>, %arg16: memref<100x32xf32, #tpu.memory_space<vmem>>, %arg17: memref<1x32xf32, #tpu.memory_space<vmem>>, %arg18: memref<8xf32, #tpu.memory_space<smem>>, %arg19: memref<1x1x32xf32, #tpu.memory_space<vmem>>, %arg20: memref<42x212xf32, #tpu.memory_space<vmem>>, %arg21: memref<22x112xf32, #tpu.memory_space<vmem>>, %arg22: memref<22x112xf32, #tpu.memory_space<vmem>>, %arg23: memref<22x112xf32, #tpu.memory_space<vmem>>, %arg24: memref<1x440xf32, #tpu.memory_space<vmem>>) attributes {dimension_semantics = [#tpu.dimension_semantics<parallel>], iteration_bounds = array<i64: 2>, scalar_prefetch = 0 : i64, scratch_operands = 5 : i64, tpu.core_type = #tpu.core_type<tc>, window_params = [{transform_indices = @transform_0, window_bounds = array<i64: 1, 42, 42>}, {pipeline_mode = #tpu.pipeline_mode<synchronous>, transform_indices = @transform_1, window_bounds = array<i64: 3, 42, 212>}, {pipeline_mode = #tpu.pipeline_mode<synchronous>, transform_indices = @transform_2, window_bounds = array<i64: 1, 212>}, {pipeline_mode = #tpu.pipeline_mode<synchronous>, transform_indices = @transform_3, window_bounds = array<i64: 3, 212, 212>}, {pipeline_mode = #tpu.pipeline_mode<synchronous>, transform_indices = @transform_4, window_bounds = array<i64: 1, 212>}, {pipeline_mode = #tpu.pipeline_mode<synchronous>, transform_indices = @transform_5, window_bounds = array<i64: 20, 39>}, {pipeline_mode = #tpu.pipeline_mode<synchronous>, transform_indices = @transform_6, window_bounds = array<i64: 211, 112>}, {pipeline_mode = #tpu.pipeline_mode<synchronous>, transform_indices = @transform_7, window_bounds = array<i64: 3, 112, 112>}, {pipeline_mode = #tpu.pipeline_mode<synchronous>, transform_indices = @transform_8, window_bounds = array<i64: 1, 112>}, {pipeline_mode = #tpu.pipeline_mode<synchronous>, transform_indices = @transform_9, window_bounds = array<i64: 3, 112, 112>}, {pipeline_mode = #tpu.pipeline_mode<synchronous>, transform_indices = @transform_10, window_bounds = array<i64: 1, 112>}, {pipeline_mode = #tpu.pipeline_mode<synchronous>, transform_indices = @transform_11, window_bounds = array<i64: 3, 112, 22>}, {pipeline_mode = #tpu.pipeline_mode<synchronous>, transform_indices = @transform_12, window_bounds = array<i64: 1, 22>}, {pipeline_mode = #tpu.pipeline_mode<synchronous>, transform_indices = @transform_13, window_bounds = array<i64: 440, 100>}, {pipeline_mode = #tpu.pipeline_mode<synchronous>, transform_indices = @transform_14, window_bounds = array<i64: 1, 100>}, {pipeline_mode = #tpu.pipeline_mode<synchronous>, transform_indices = @transform_15, window_bounds = array<i64: 100, 32>}, {pipeline_mode = #tpu.pipeline_mode<synchronous>, transform_indices = @transform_16, window_bounds = array<i64: 1, 32>}, {transform_indices = @transform_17, window_bounds = array<i64: 8>}, {transform_indices = @transform_18, window_bounds = array<i64: 1, 1, 32>}]} {
    %cst = arith.constant 0.000000e+00 : f32
    %0 = vector.broadcast %cst : f32 to vector<42x212xf32>
    %c0 = arith.constant 0 : index
    %c0_0 = arith.constant 0 : index
    %1 = vector.load %arg20[%c0, %c0_0] : memref<42x212xf32, #tpu.memory_space<vmem>>, vector<42x212xf32>
    tpu.vector_store %arg20[%c0, %c0_0], %0 {strides = array<i32>} : memref<42x212xf32, #tpu.memory_space<vmem>>, vector<42x212xf32>,
    %cst_1 = arith.constant 0.000000e+00 : f32
    %2 = vector.broadcast %cst_1 : f32 to vector<22x112xf32>
    %c0_2 = arith.constant 0 : index
    %c0_3 = arith.constant 0 : index
    %3 = vector.load %arg21[%c0_2, %c0_3] : memref<22x112xf32, #tpu.memory_space<vmem>>, vector<22x112xf32>
    tpu.vector_store %arg21[%c0_2, %c0_3], %2 {strides = array<i32>} : memref<22x112xf32, #tpu.memory_space<vmem>>, vector<22x112xf32>,
    %cst_4 = arith.constant 0.000000e+00 : f32
    %4 = vector.broadcast %cst_4 : f32 to vector<22x112xf32>
    %c0_5 = arith.constant 0 : index
    %c0_6 = arith.constant 0 : index
    %5 = vector.load %arg22[%c0_5, %c0_6] : memref<22x112xf32, #tpu.memory_space<vmem>>, vector<22x112xf32>
    tpu.vector_store %arg22[%c0_5, %c0_6], %4 {strides = array<i32>} : memref<22x112xf32, #tpu.memory_space<vmem>>, vector<22x112xf32>,
    %cst_7 = arith.constant 0.000000e+00 : f32
    %6 = vector.broadcast %cst_7 : f32 to vector<22x112xf32>
    %c0_8 = arith.constant 0 : index
    %c0_9 = arith.constant 0 : index
    %7 = vector.load %arg23[%c0_8, %c0_9] : memref<22x112xf32, #tpu.memory_space<vmem>>, vector<22x112xf32>
    tpu.vector_store %arg23[%c0_8, %c0_9], %6 {strides = array<i32>} : memref<22x112xf32, #tpu.memory_space<vmem>>, vector<22x112xf32>,
    %c0_10 = arith.constant 0 : index
    %c0_11 = arith.constant 0 : index
    %c0_12 = arith.constant 0 : index
    %8 = vector.load %arg1[%c0_10, %c0_11, %c0_12] : memref<1x42x42xf32, #tpu.memory_space<vmem>>, vector<1x40x42xf32>
    %9 = vector.shape_cast %8 : vector<1x40x42xf32> to vector<40x42xf32>
    %c0_13 = arith.constant 0 : index
    %c0_14 = arith.constant 0 : index
    %c0_15 = arith.constant 0 : index
    %10 = vector.load %arg2[%c0_13, %c0_14, %c0_15] : memref<3x42x212xf32, #tpu.memory_space<vmem>>, vector<1x42x212xf32>
    %11 = vector.shape_cast %10 : vector<1x42x212xf32> to vector<42x212xf32>
    %cst_16 = arith.constant dense<0.000000e+00> : vector<40x212xf32>
    %12 = tpu.matmul %9, %11, %cst_16 {dimension_numbers = #tpu.dot_dimension_numbers<[1], [0], [0], [1], [0, 0, 1, 1], [], []>} : vector<40x42xf32>, vector<42x212xf32>, vector<40x212xf32> -> vector<40x212xf32>
    %c0_17 = arith.constant 0 : index
    %c1 = arith.constant 1 : index
    %c0_18 = arith.constant 0 : index
    %13 = vector.load %arg1[%c0_17, %c1, %c0_18] : memref<1x42x42xf32, #tpu.memory_space<vmem>>, vector<1x40x42xf32>
    %14 = vector.shape_cast %13 : vector<1x40x42xf32> to vector<40x42xf32>
    %c1_19 = arith.constant 1 : index
    %c0_20 = arith.constant 0 : index
    %c0_21 = arith.constant 0 : index
    %15 = vector.load %arg2[%c1_19, %c0_20, %c0_21] : memref<3x42x212xf32, #tpu.memory_space<vmem>>, vector<1x42x212xf32>
    %16 = vector.shape_cast %15 : vector<1x42x212xf32> to vector<42x212xf32>
    %cst_22 = arith.constant dense<0.000000e+00> : vector<40x212xf32>
    %17 = tpu.matmul %14, %16, %cst_22 {dimension_numbers = #tpu.dot_dimension_numbers<[1], [0], [0], [1], [0, 0, 1, 1], [], []>} : vector<40x42xf32>, vector<42x212xf32>, vector<40x212xf32> -> vector<40x212xf32>
    %18 = arith.addf %12, %17 : vector<40x212xf32>
    %c0_23 = arith.constant 0 : index
    %c2 = arith.constant 2 : index
    %c0_24 = arith.constant 0 : index
    %19 = vector.load %arg1[%c0_23, %c2, %c0_24] : memref<1x42x42xf32, #tpu.memory_space<vmem>>, vector<1x40x42xf32>
    %20 = vector.shape_cast %19 : vector<1x40x42xf32> to vector<40x42xf32>
    %c2_25 = arith.constant 2 : index
    %c0_26 = arith.constant 0 : index
    %c0_27 = arith.constant 0 : index
    %21 = vector.load %arg2[%c2_25, %c0_26, %c0_27] : memref<3x42x212xf32, #tpu.memory_space<vmem>>, vector<1x42x212xf32>
    %22 = vector.shape_cast %21 : vector<1x42x212xf32> to vector<42x212xf32>
    %cst_28 = arith.constant dense<0.000000e+00> : vector<40x212xf32>
    %23 = tpu.matmul %20, %22, %cst_28 {dimension_numbers = #tpu.dot_dimension_numbers<[1], [0], [0], [1], [0, 0, 1, 1], [], []>} : vector<40x42xf32>, vector<42x212xf32>, vector<40x212xf32> -> vector<40x212xf32>
    %24 = arith.addf %18, %23 : vector<40x212xf32>
    %c0_29 = arith.constant 0 : index
    %c0_30 = arith.constant 0 : index
    %25 = vector.load %arg3[%c0_29, %c0_30] : memref<1x212xf32, #tpu.memory_space<vmem>>, vector<1x212xf32>
    %26 = vector.broadcast %25 : vector<1x212xf32> to vector<40x212xf32>
    %27 = arith.addf %24, %26 : vector<40x212xf32>
    %c0_31 = arith.constant 0 : index
    %28 = memref.load %arg18[%c0_31] : memref<8xf32, #tpu.memory_space<smem>>
    %cst_32 = arith.constant 0.000000e+00 : f32
    %29 = vector.broadcast %cst_32 : f32 to vector<40x212xf32>
    %30 = arith.cmpf oge, %27, %29 : vector<40x212xf32>
    %31 = vector.broadcast %28 : f32 to vector<40x212xf32>
    %32 = arith.mulf %31, %27 : vector<40x212xf32>
    %33 = arith.select %30, %27, %32 : vector<40x212xi1>, vector<40x212xf32>
    %c1_33 = arith.constant 1 : index
    %c0_34 = arith.constant 0 : index
    %34 = vector.load %arg20[%c1_33, %c0_34] : memref<42x212xf32, #tpu.memory_space<vmem>>, vector<40x212xf32>
    tpu.vector_store %arg20[%c1_33, %c0_34], %33 {strides = array<i32>} : memref<42x212xf32, #tpu.memory_space<vmem>>, vector<40x212xf32>,
    %c0_35 = arith.constant 0 : index
    %c0_36 = arith.constant 0 : index
    %35 = vector.load %arg20[%c0_35, %c0_36] : memref<42x212xf32, #tpu.memory_space<vmem>>, vector<40x212xf32>
    %c0_37 = arith.constant 0 : index
    %c0_38 = arith.constant 0 : index
    %c0_39 = arith.constant 0 : index
    %36 = vector.load %arg4[%c0_37, %c0_38, %c0_39] : memref<3x212x212xf32, #tpu.memory_space<vmem>>, vector<1x212x212xf32>
    %37 = vector.shape_cast %36 : vector<1x212x212xf32> to vector<212x212xf32>
    %cst_40 = arith.constant dense<0.000000e+00> : vector<40x212xf32>
    %38 = tpu.matmul %35, %37, %cst_40 {dimension_numbers = #tpu.dot_dimension_numbers<[1], [0], [0], [1], [0, 0, 1, 1], [], []>} : vector<40x212xf32>, vector<212x212xf32>, vector<40x212xf32> -> vector<40x212xf32>
    %c1_41 = arith.constant 1 : index
    %c0_42 = arith.constant 0 : index
    %39 = vector.load %arg20[%c1_41, %c0_42] : memref<42x212xf32, #tpu.memory_space<vmem>>, vector<40x212xf32>
    %c1_43 = arith.constant 1 : index
    %c0_44 = arith.constant 0 : index
    %c0_45 = arith.constant 0 : index
    %40 = vector.load %arg4[%c1_43, %c0_44, %c0_45] : memref<3x212x212xf32, #tpu.memory_space<vmem>>, vector<1x212x212xf32>
    %41 = vector.shape_cast %40 : vector<1x212x212xf32> to vector<212x212xf32>
    %cst_46 = arith.constant dense<0.000000e+00> : vector<40x212xf32>
    %42 = tpu.matmul %39, %41, %cst_46 {dimension_numbers = #tpu.dot_dimension_numbers<[1], [0], [0], [1], [0, 0, 1, 1], [], []>} : vector<40x212xf32>, vector<212x212xf32>, vector<40x212xf32> -> vector<40x212xf32>
    %43 = arith.addf %38, %42 : vector<40x212xf32>
    %c2_47 = arith.constant 2 : index
    %c0_48 = arith.constant 0 : index
    %44 = vector.load %arg20[%c2_47, %c0_48] : memref<42x212xf32, #tpu.memory_space<vmem>>, vector<40x212xf32>
    %c2_49 = arith.constant 2 : index
    %c0_50 = arith.constant 0 : index
    %c0_51 = arith.constant 0 : index
    %45 = vector.load %arg4[%c2_49, %c0_50, %c0_51] : memref<3x212x212xf32, #tpu.memory_space<vmem>>, vector<1x212x212xf32>
    %46 = vector.shape_cast %45 : vector<1x212x212xf32> to vector<212x212xf32>
    %cst_52 = arith.constant dense<0.000000e+00> : vector<40x212xf32>
    %47 = tpu.matmul %44, %46, %cst_52 {dimension_numbers = #tpu.dot_dimension_numbers<[1], [0], [0], [1], [0, 0, 1, 1], [], []>} : vector<40x212xf32>, vector<212x212xf32>, vector<40x212xf32> -> vector<40x212xf32>
    %48 = arith.addf %43, %47 : vector<40x212xf32>
    %c0_53 = arith.constant 0 : index
    %c0_54 = arith.constant 0 : index
    %49 = vector.load %arg5[%c0_53, %c0_54] : memref<1x212xf32, #tpu.memory_space<vmem>>, vector<1x212xf32>
    %50 = vector.broadcast %49 : vector<1x212xf32> to vector<40x212xf32>
    %51 = arith.addf %48, %50 : vector<40x212xf32>
    %c1_55 = arith.constant 1 : index
    %52 = memref.load %arg18[%c1_55] : memref<8xf32, #tpu.memory_space<smem>>
    %cst_56 = arith.constant 0.000000e+00 : f32
    %53 = vector.broadcast %cst_56 : f32 to vector<40x212xf32>
    %54 = arith.cmpf oge, %51, %53 : vector<40x212xf32>
    %55 = vector.broadcast %52 : f32 to vector<40x212xf32>
    %56 = arith.mulf %55, %51 : vector<40x212xf32>
    %57 = arith.select %54, %51, %56 : vector<40x212xi1>, vector<40x212xf32>
    %58 = vector.extract_strided_slice %57 {offsets = [0, 0], sizes = [40, 211], strides = [1, 1]} : vector<40x212xf32> to vector<40x211xf32>
    %59 = vector.extract_strided_slice %57 {offsets = [0, 1], sizes = [40, 211], strides = [1, 1]} : vector<40x212xf32> to vector<40x211xf32>
    %60 = arith.maximumf %58, %59 : vector<40x211xf32>
    %61 = vector.extract_strided_slice %60 {offsets = [0, 0], sizes = [39, 211], strides = [1, 1]} : vector<40x211xf32> to vector<39x211xf32>
    %62 = vector.extract_strided_slice %60 {offsets = [1, 0], sizes = [39, 211], strides = [1, 1]} : vector<40x211xf32> to vector<39x211xf32>
    %63 = arith.maximumf %61, %62 : vector<39x211xf32>
    %c0_57 = arith.constant 0 : index
    %c0_58 = arith.constant 0 : index
    %64 = vector.load %arg6[%c0_57, %c0_58] : memref<20x39xf32, #tpu.memory_space<vmem>>, vector<20x39xf32>
    %cst_59 = arith.constant dense<0.000000e+00> : vector<20x211xf32>
    %65 = tpu.matmul %64, %63, %cst_59 {dimension_numbers = #tpu.dot_dimension_numbers<[1], [0], [0], [1], [0, 0, 1, 1], [], []>} : vector<20x39xf32>, vector<39x211xf32>, vector<20x211xf32> -> vector<20x211xf32>
    %c0_60 = arith.constant 0 : index
    %c0_61 = arith.constant 0 : index
    %66 = vector.load %arg7[%c0_60, %c0_61] : memref<211x112xf32, #tpu.memory_space<vmem>>, vector<211x112xf32>
    %cst_62 = arith.constant dense<0.000000e+00> : vector<20x112xf32>
    %67 = tpu.matmul %65, %66, %cst_62 {dimension_numbers = #tpu.dot_dimension_numbers<[1], [0], [0], [1], [0, 0, 1, 1], [], []>} : vector<20x211xf32>, vector<211x112xf32>, vector<20x112xf32> -> vector<20x112xf32>
    %c2_63 = arith.constant 2 : index
    %68 = memref.load %arg18[%c2_63] : memref<8xf32, #tpu.memory_space<smem>>
    %cst_64 = arith.constant 0.000000e+00 : f32
    %69 = vector.broadcast %cst_64 : f32 to vector<20x112xf32>
    %70 = arith.cmpf oge, %67, %69 : vector<20x112xf32>
    %71 = vector.broadcast %68 : f32 to vector<20x112xf32>
    %72 = arith.mulf %71, %67 : vector<20x112xf32>
    %73 = arith.select %70, %67, %72 : vector<20x112xi1>, vector<20x112xf32>
    %c1_65 = arith.constant 1 : index
    %c0_66 = arith.constant 0 : index
    %74 = vector.load %arg21[%c1_65, %c0_66] : memref<22x112xf32, #tpu.memory_space<vmem>>, vector<20x112xf32>
    tpu.vector_store %arg21[%c1_65, %c0_66], %73 {strides = array<i32>} : memref<22x112xf32, #tpu.memory_space<vmem>>, vector<20x112xf32>,
    %c0_67 = arith.constant 0 : index
    %c0_68 = arith.constant 0 : index
    %75 = vector.load %arg21[%c0_67, %c0_68] : memref<22x112xf32, #tpu.memory_space<vmem>>, vector<20x112xf32>
    %c0_69 = arith.constant 0 : index
    %c0_70 = arith.constant 0 : index
    %c0_71 = arith.constant 0 : index
    %76 = vector.load %arg8[%c0_69, %c0_70, %c0_71] : memref<3x112x112xf32, #tpu.memory_space<vmem>>, vector<1x112x112xf32>
    %77 = vector.shape_cast %76 : vector<1x112x112xf32> to vector<112x112xf32>
    %cst_72 = arith.constant dense<0.000000e+00> : vector<20x112xf32>
    %78 = tpu.matmul %75, %77, %cst_72 {dimension_numbers = #tpu.dot_dimension_numbers<[1], [0], [0], [1], [0, 0, 1, 1], [], []>} : vector<20x112xf32>, vector<112x112xf32>, vector<20x112xf32> -> vector<20x112xf32>
    %c1_73 = arith.constant 1 : index
    %c0_74 = arith.constant 0 : index
    %79 = vector.load %arg21[%c1_73, %c0_74] : memref<22x112xf32, #tpu.memory_space<vmem>>, vector<20x112xf32>
    %c1_75 = arith.constant 1 : index
    %c0_76 = arith.constant 0 : index
    %c0_77 = arith.constant 0 : index
    %80 = vector.load %arg8[%c1_75, %c0_76, %c0_77] : memref<3x112x112xf32, #tpu.memory_space<vmem>>, vector<1x112x112xf32>
    %81 = vector.shape_cast %80 : vector<1x112x112xf32> to vector<112x112xf32>
    %cst_78 = arith.constant dense<0.000000e+00> : vector<20x112xf32>
    %82 = tpu.matmul %79, %81, %cst_78 {dimension_numbers = #tpu.dot_dimension_numbers<[1], [0], [0], [1], [0, 0, 1, 1], [], []>} : vector<20x112xf32>, vector<112x112xf32>, vector<20x112xf32> -> vector<20x112xf32>
    %83 = arith.addf %78, %82 : vector<20x112xf32>
    %c2_79 = arith.constant 2 : index
    %c0_80 = arith.constant 0 : index
    %84 = vector.load %arg21[%c2_79, %c0_80] : memref<22x112xf32, #tpu.memory_space<vmem>>, vector<20x112xf32>
    %c2_81 = arith.constant 2 : index
    %c0_82 = arith.constant 0 : index
    %c0_83 = arith.constant 0 : index
    %85 = vector.load %arg8[%c2_81, %c0_82, %c0_83] : memref<3x112x112xf32, #tpu.memory_space<vmem>>, vector<1x112x112xf32>
    %86 = vector.shape_cast %85 : vector<1x112x112xf32> to vector<112x112xf32>
    %cst_84 = arith.constant dense<0.000000e+00> : vector<20x112xf32>
    %87 = tpu.matmul %84, %86, %cst_84 {dimension_numbers = #tpu.dot_dimension_numbers<[1], [0], [0], [1], [0, 0, 1, 1], [], []>} : vector<20x112xf32>, vector<112x112xf32>, vector<20x112xf32> -> vector<20x112xf32>
    %88 = arith.addf %83, %87 : vector<20x112xf32>
    %c0_85 = arith.constant 0 : index
    %c0_86 = arith.constant 0 : index
    %89 = vector.load %arg9[%c0_85, %c0_86] : memref<1x112xf32, #tpu.memory_space<vmem>>, vector<1x112xf32>
    %90 = vector.broadcast %89 : vector<1x112xf32> to vector<20x112xf32>
    %91 = arith.addf %88, %90 : vector<20x112xf32>
    %c3 = arith.constant 3 : index
    %92 = memref.load %arg18[%c3] : memref<8xf32, #tpu.memory_space<smem>>
    %cst_87 = arith.constant 0.000000e+00 : f32
    %93 = vector.broadcast %cst_87 : f32 to vector<20x112xf32>
    %94 = arith.cmpf oge, %91, %93 : vector<20x112xf32>
    %95 = vector.broadcast %92 : f32 to vector<20x112xf32>
    %96 = arith.mulf %95, %91 : vector<20x112xf32>
    %97 = arith.select %94, %91, %96 : vector<20x112xi1>, vector<20x112xf32>
    %c1_88 = arith.constant 1 : index
    %c0_89 = arith.constant 0 : index
    %98 = vector.load %arg22[%c1_88, %c0_89] : memref<22x112xf32, #tpu.memory_space<vmem>>, vector<20x112xf32>
    tpu.vector_store %arg22[%c1_88, %c0_89], %97 {strides = array<i32>} : memref<22x112xf32, #tpu.memory_space<vmem>>, vector<20x112xf32>,
    %c0_90 = arith.constant 0 : index
    %c0_91 = arith.constant 0 : index
    %99 = vector.load %arg22[%c0_90, %c0_91] : memref<22x112xf32, #tpu.memory_space<vmem>>, vector<20x112xf32>
    %c0_92 = arith.constant 0 : index
    %c0_93 = arith.constant 0 : index
    %c0_94 = arith.constant 0 : index
    %100 = vector.load %arg10[%c0_92, %c0_93, %c0_94] : memref<3x112x112xf32, #tpu.memory_space<vmem>>, vector<1x112x112xf32>
    %101 = vector.shape_cast %100 : vector<1x112x112xf32> to vector<112x112xf32>
    %cst_95 = arith.constant dense<0.000000e+00> : vector<20x112xf32>
    %102 = tpu.matmul %99, %101, %cst_95 {dimension_numbers = #tpu.dot_dimension_numbers<[1], [0], [0], [1], [0, 0, 1, 1], [], []>} : vector<20x112xf32>, vector<112x112xf32>, vector<20x112xf32> -> vector<20x112xf32>
    %c1_96 = arith.constant 1 : index
    %c0_97 = arith.constant 0 : index
    %103 = vector.load %arg22[%c1_96, %c0_97] : memref<22x112xf32, #tpu.memory_space<vmem>>, vector<20x112xf32>
    %c1_98 = arith.constant 1 : index
    %c0_99 = arith.constant 0 : index
    %c0_100 = arith.constant 0 : index
    %104 = vector.load %arg10[%c1_98, %c0_99, %c0_100] : memref<3x112x112xf32, #tpu.memory_space<vmem>>, vector<1x112x112xf32>
    %105 = vector.shape_cast %104 : vector<1x112x112xf32> to vector<112x112xf32>
    %cst_101 = arith.constant dense<0.000000e+00> : vector<20x112xf32>
    %106 = tpu.matmul %103, %105, %cst_101 {dimension_numbers = #tpu.dot_dimension_numbers<[1], [0], [0], [1], [0, 0, 1, 1], [], []>} : vector<20x112xf32>, vector<112x112xf32>, vector<20x112xf32> -> vector<20x112xf32>
    %107 = arith.addf %102, %106 : vector<20x112xf32>
    %c2_102 = arith.constant 2 : index
    %c0_103 = arith.constant 0 : index
    %108 = vector.load %arg22[%c2_102, %c0_103] : memref<22x112xf32, #tpu.memory_space<vmem>>, vector<20x112xf32>
    %c2_104 = arith.constant 2 : index
    %c0_105 = arith.constant 0 : index
    %c0_106 = arith.constant 0 : index
    %109 = vector.load %arg10[%c2_104, %c0_105, %c0_106] : memref<3x112x112xf32, #tpu.memory_space<vmem>>, vector<1x112x112xf32>
    %110 = vector.shape_cast %109 : vector<1x112x112xf32> to vector<112x112xf32>
    %cst_107 = arith.constant dense<0.000000e+00> : vector<20x112xf32>
    %111 = tpu.matmul %108, %110, %cst_107 {dimension_numbers = #tpu.dot_dimension_numbers<[1], [0], [0], [1], [0, 0, 1, 1], [], []>} : vector<20x112xf32>, vector<112x112xf32>, vector<20x112xf32> -> vector<20x112xf32>
    %112 = arith.addf %107, %111 : vector<20x112xf32>
    %c0_108 = arith.constant 0 : index
    %c0_109 = arith.constant 0 : index
    %113 = vector.load %arg11[%c0_108, %c0_109] : memref<1x112xf32, #tpu.memory_space<vmem>>, vector<1x112xf32>
    %114 = vector.broadcast %113 : vector<1x112xf32> to vector<20x112xf32>
    %115 = arith.addf %112, %114 : vector<20x112xf32>
    %c4 = arith.constant 4 : index
    %116 = memref.load %arg18[%c4] : memref<8xf32, #tpu.memory_space<smem>>
    %cst_110 = arith.constant 0.000000e+00 : f32
    %117 = vector.broadcast %cst_110 : f32 to vector<20x112xf32>
    %118 = arith.cmpf oge, %115, %117 : vector<20x112xf32>
    %119 = vector.broadcast %116 : f32 to vector<20x112xf32>
    %120 = arith.mulf %119, %115 : vector<20x112xf32>
    %121 = arith.select %118, %115, %120 : vector<20x112xi1>, vector<20x112xf32>
    %c1_111 = arith.constant 1 : index
    %c0_112 = arith.constant 0 : index
    %122 = vector.load %arg23[%c1_111, %c0_112] : memref<22x112xf32, #tpu.memory_space<vmem>>, vector<20x112xf32>
    tpu.vector_store %arg23[%c1_111, %c0_112], %121 {strides = array<i32>} : memref<22x112xf32, #tpu.memory_space<vmem>>, vector<20x112xf32>,
    %c0_113 = arith.constant 0 : index
    %c0_114 = arith.constant 0 : index
    %123 = vector.load %arg23[%c0_113, %c0_114] : memref<22x112xf32, #tpu.memory_space<vmem>>, vector<20x112xf32>
    %c0_115 = arith.constant 0 : index
    %c0_116 = arith.constant 0 : index
    %c0_117 = arith.constant 0 : index
    %124 = vector.load %arg12[%c0_115, %c0_116, %c0_117] : memref<3x112x22xf32, #tpu.memory_space<vmem>>, vector<1x112x22xf32>
    %125 = vector.shape_cast %124 : vector<1x112x22xf32> to vector<112x22xf32>
    %cst_118 = arith.constant dense<0.000000e+00> : vector<20x22xf32>
    %126 = tpu.matmul %123, %125, %cst_118 {dimension_numbers = #tpu.dot_dimension_numbers<[1], [0], [0], [1], [0, 0, 1, 1], [], []>} : vector<20x112xf32>, vector<112x22xf32>, vector<20x22xf32> -> vector<20x22xf32>
    %c1_119 = arith.constant 1 : index
    %c0_120 = arith.constant 0 : index
    %127 = vector.load %arg23[%c1_119, %c0_120] : memref<22x112xf32, #tpu.memory_space<vmem>>, vector<20x112xf32>
    %c1_121 = arith.constant 1 : index
    %c0_122 = arith.constant 0 : index
    %c0_123 = arith.constant 0 : index
    %128 = vector.load %arg12[%c1_121, %c0_122, %c0_123] : memref<3x112x22xf32, #tpu.memory_space<vmem>>, vector<1x112x22xf32>
    %129 = vector.shape_cast %128 : vector<1x112x22xf32> to vector<112x22xf32>
    %cst_124 = arith.constant dense<0.000000e+00> : vector<20x22xf32>
    %130 = tpu.matmul %127, %129, %cst_124 {dimension_numbers = #tpu.dot_dimension_numbers<[1], [0], [0], [1], [0, 0, 1, 1], [], []>} : vector<20x112xf32>, vector<112x22xf32>, vector<20x22xf32> -> vector<20x22xf32>
    %131 = arith.addf %126, %130 : vector<20x22xf32>
    %c2_125 = arith.constant 2 : index
    %c0_126 = arith.constant 0 : index
    %132 = vector.load %arg23[%c2_125, %c0_126] : memref<22x112xf32, #tpu.memory_space<vmem>>, vector<20x112xf32>
    %c2_127 = arith.constant 2 : index
    %c0_128 = arith.constant 0 : index
    %c0_129 = arith.constant 0 : index
    %133 = vector.load %arg12[%c2_127, %c0_128, %c0_129] : memref<3x112x22xf32, #tpu.memory_space<vmem>>, vector<1x112x22xf32>
    %134 = vector.shape_cast %133 : vector<1x112x22xf32> to vector<112x22xf32>
    %cst_130 = arith.constant dense<0.000000e+00> : vector<20x22xf32>
    %135 = tpu.matmul %132, %134, %cst_130 {dimension_numbers = #tpu.dot_dimension_numbers<[1], [0], [0], [1], [0, 0, 1, 1], [], []>} : vector<20x112xf32>, vector<112x22xf32>, vector<20x22xf32> -> vector<20x22xf32>
    %136 = arith.addf %131, %135 : vector<20x22xf32>
    %c0_131 = arith.constant 0 : index
    %c0_132 = arith.constant 0 : index
    %137 = vector.load %arg13[%c0_131, %c0_132] : memref<1x22xf32, #tpu.memory_space<vmem>>, vector<1x22xf32>
    %138 = vector.broadcast %137 : vector<1x22xf32> to vector<20x22xf32>
    %139 = arith.addf %136, %138 : vector<20x22xf32>
    %c5 = arith.constant 5 : index
    %140 = memref.load %arg18[%c5] : memref<8xf32, #tpu.memory_space<smem>>
    %cst_133 = arith.constant 0.000000e+00 : f32
    %141 = vector.broadcast %cst_133 : f32 to vector<20x22xf32>
    %142 = arith.cmpf oge, %139, %141 : vector<20x22xf32>
    %143 = vector.broadcast %140 : f32 to vector<20x22xf32>
    %144 = arith.mulf %143, %139 : vector<20x22xf32>
    %145 = arith.select %142, %139, %144 : vector<20x22xi1>, vector<20x22xf32>
    %146 = vector.extract_strided_slice %145 {offsets = [0, 0], sizes = [1, 22], strides = [1, 1]} : vector<20x22xf32> to vector<1x22xf32>
    %c0_134 = arith.constant 0 : index
    %c0_135 = arith.constant 0 : index
    %147 = vector.load %arg24[%c0_134, %c0_135] : memref<1x440xf32, #tpu.memory_space<vmem>>, vector<1x22xf32>
    tpu.vector_store %arg24[%c0_134, %c0_135], %146 {strides = array<i32>} : memref<1x440xf32, #tpu.memory_space<vmem>>, vector<1x22xf32>,
    %148 = vector.extract_strided_slice %145 {offsets = [1, 0], sizes = [1, 22], strides = [1, 1]} : vector<20x22xf32> to vector<1x22xf32>
    %c0_136 = arith.constant 0 : index
    %c22 = arith.constant 22 : index
    %149 = vector.load %arg24[%c0_136, %c22] : memref<1x440xf32, #tpu.memory_space<vmem>>, vector<1x22xf32>
    tpu.vector_store %arg24[%c0_136, %c22], %148 {strides = array<i32>} : memref<1x440xf32, #tpu.memory_space<vmem>>, vector<1x22xf32>,
    %150 = vector.extract_strided_slice %145 {offsets = [2, 0], sizes = [1, 22], strides = [1, 1]} : vector<20x22xf32> to vector<1x22xf32>
    %c0_137 = arith.constant 0 : index
    %c44 = arith.constant 44 : index
    %151 = vector.load %arg24[%c0_137, %c44] : memref<1x440xf32, #tpu.memory_space<vmem>>, vector<1x22xf32>
    tpu.vector_store %arg24[%c0_137, %c44], %150 {strides = array<i32>} : memref<1x440xf32, #tpu.memory_space<vmem>>, vector<1x22xf32>,
    %152 = vector.extract_strided_slice %145 {offsets = [3, 0], sizes = [1, 22], strides = [1, 1]} : vector<20x22xf32> to vector<1x22xf32>
    %c0_138 = arith.constant 0 : index
    %c66 = arith.constant 66 : index
    %153 = vector.load %arg24[%c0_138, %c66] : memref<1x440xf32, #tpu.memory_space<vmem>>, vector<1x22xf32>
    tpu.vector_store %arg24[%c0_138, %c66], %152 {strides = array<i32>} : memref<1x440xf32, #tpu.memory_space<vmem>>, vector<1x22xf32>,
    %154 = vector.extract_strided_slice %145 {offsets = [4, 0], sizes = [1, 22], strides = [1, 1]} : vector<20x22xf32> to vector<1x22xf32>
    %c0_139 = arith.constant 0 : index
    %c88 = arith.constant 88 : index
    %155 = vector.load %arg24[%c0_139, %c88] : memref<1x440xf32, #tpu.memory_space<vmem>>, vector<1x22xf32>
    tpu.vector_store %arg24[%c0_139, %c88], %154 {strides = array<i32>} : memref<1x440xf32, #tpu.memory_space<vmem>>, vector<1x22xf32>,
    %156 = vector.extract_strided_slice %145 {offsets = [5, 0], sizes = [1, 22], strides = [1, 1]} : vector<20x22xf32> to vector<1x22xf32>
    %c0_140 = arith.constant 0 : index
    %c110 = arith.constant 110 : index
    %157 = vector.load %arg24[%c0_140, %c110] : memref<1x440xf32, #tpu.memory_space<vmem>>, vector<1x22xf32>
    tpu.vector_store %arg24[%c0_140, %c110], %156 {strides = array<i32>} : memref<1x440xf32, #tpu.memory_space<vmem>>, vector<1x22xf32>,
    %158 = vector.extract_strided_slice %145 {offsets = [6, 0], sizes = [1, 22], strides = [1, 1]} : vector<20x22xf32> to vector<1x22xf32>
    %c0_141 = arith.constant 0 : index
    %c132 = arith.constant 132 : index
    %159 = vector.load %arg24[%c0_141, %c132] : memref<1x440xf32, #tpu.memory_space<vmem>>, vector<1x22xf32>
    tpu.vector_store %arg24[%c0_141, %c132], %158 {strides = array<i32>} : memref<1x440xf32, #tpu.memory_space<vmem>>, vector<1x22xf32>,
    %160 = vector.extract_strided_slice %145 {offsets = [7, 0], sizes = [1, 22], strides = [1, 1]} : vector<20x22xf32> to vector<1x22xf32>
    %c0_142 = arith.constant 0 : index
    %c154 = arith.constant 154 : index
    %161 = vector.load %arg24[%c0_142, %c154] : memref<1x440xf32, #tpu.memory_space<vmem>>, vector<1x22xf32>
    tpu.vector_store %arg24[%c0_142, %c154], %160 {strides = array<i32>} : memref<1x440xf32, #tpu.memory_space<vmem>>, vector<1x22xf32>,
    %162 = vector.extract_strided_slice %145 {offsets = [8, 0], sizes = [1, 22], strides = [1, 1]} : vector<20x22xf32> to vector<1x22xf32>
    %c0_143 = arith.constant 0 : index
    %c176 = arith.constant 176 : index
    %163 = vector.load %arg24[%c0_143, %c176] : memref<1x440xf32, #tpu.memory_space<vmem>>, vector<1x22xf32>
    tpu.vector_store %arg24[%c0_143, %c176], %162 {strides = array<i32>} : memref<1x440xf32, #tpu.memory_space<vmem>>, vector<1x22xf32>,
    %164 = vector.extract_strided_slice %145 {offsets = [9, 0], sizes = [1, 22], strides = [1, 1]} : vector<20x22xf32> to vector<1x22xf32>
    %c0_144 = arith.constant 0 : index
    %c198 = arith.constant 198 : index
    %165 = vector.load %arg24[%c0_144, %c198] : memref<1x440xf32, #tpu.memory_space<vmem>>, vector<1x22xf32>
    tpu.vector_store %arg24[%c0_144, %c198], %164 {strides = array<i32>} : memref<1x440xf32, #tpu.memory_space<vmem>>, vector<1x22xf32>,
    %166 = vector.extract_strided_slice %145 {offsets = [10, 0], sizes = [1, 22], strides = [1, 1]} : vector<20x22xf32> to vector<1x22xf32>
    %c0_145 = arith.constant 0 : index
    %c220 = arith.constant 220 : index
    %167 = vector.load %arg24[%c0_145, %c220] : memref<1x440xf32, #tpu.memory_space<vmem>>, vector<1x22xf32>
    tpu.vector_store %arg24[%c0_145, %c220], %166 {strides = array<i32>} : memref<1x440xf32, #tpu.memory_space<vmem>>, vector<1x22xf32>,
    %168 = vector.extract_strided_slice %145 {offsets = [11, 0], sizes = [1, 22], strides = [1, 1]} : vector<20x22xf32> to vector<1x22xf32>
    %c0_146 = arith.constant 0 : index
    %c242 = arith.constant 242 : index
    %169 = vector.load %arg24[%c0_146, %c242] : memref<1x440xf32, #tpu.memory_space<vmem>>, vector<1x22xf32>
    tpu.vector_store %arg24[%c0_146, %c242], %168 {strides = array<i32>} : memref<1x440xf32, #tpu.memory_space<vmem>>, vector<1x22xf32>,
    %170 = vector.extract_strided_slice %145 {offsets = [12, 0], sizes = [1, 22], strides = [1, 1]} : vector<20x22xf32> to vector<1x22xf32>
    %c0_147 = arith.constant 0 : index
    %c264 = arith.constant 264 : index
    %171 = vector.load %arg24[%c0_147, %c264] : memref<1x440xf32, #tpu.memory_space<vmem>>, vector<1x22xf32>
    tpu.vector_store %arg24[%c0_147, %c264], %170 {strides = array<i32>} : memref<1x440xf32, #tpu.memory_space<vmem>>, vector<1x22xf32>,
    %172 = vector.extract_strided_slice %145 {offsets = [13, 0], sizes = [1, 22], strides = [1, 1]} : vector<20x22xf32> to vector<1x22xf32>
    %c0_148 = arith.constant 0 : index
    %c286 = arith.constant 286 : index
    %173 = vector.load %arg24[%c0_148, %c286] : memref<1x440xf32, #tpu.memory_space<vmem>>, vector<1x22xf32>
    tpu.vector_store %arg24[%c0_148, %c286], %172 {strides = array<i32>} : memref<1x440xf32, #tpu.memory_space<vmem>>, vector<1x22xf32>,
    %174 = vector.extract_strided_slice %145 {offsets = [14, 0], sizes = [1, 22], strides = [1, 1]} : vector<20x22xf32> to vector<1x22xf32>
    %c0_149 = arith.constant 0 : index
    %c308 = arith.constant 308 : index
    %175 = vector.load %arg24[%c0_149, %c308] : memref<1x440xf32, #tpu.memory_space<vmem>>, vector<1x22xf32>
    tpu.vector_store %arg24[%c0_149, %c308], %174 {strides = array<i32>} : memref<1x440xf32, #tpu.memory_space<vmem>>, vector<1x22xf32>,
    %176 = vector.extract_strided_slice %145 {offsets = [15, 0], sizes = [1, 22], strides = [1, 1]} : vector<20x22xf32> to vector<1x22xf32>
    %c0_150 = arith.constant 0 : index
    %c330 = arith.constant 330 : index
    %177 = vector.load %arg24[%c0_150, %c330] : memref<1x440xf32, #tpu.memory_space<vmem>>, vector<1x22xf32>
    tpu.vector_store %arg24[%c0_150, %c330], %176 {strides = array<i32>} : memref<1x440xf32, #tpu.memory_space<vmem>>, vector<1x22xf32>,
    %178 = vector.extract_strided_slice %145 {offsets = [16, 0], sizes = [1, 22], strides = [1, 1]} : vector<20x22xf32> to vector<1x22xf32>
    %c0_151 = arith.constant 0 : index
    %c352 = arith.constant 352 : index
    %179 = vector.load %arg24[%c0_151, %c352] : memref<1x440xf32, #tpu.memory_space<vmem>>, vector<1x22xf32>
    tpu.vector_store %arg24[%c0_151, %c352], %178 {strides = array<i32>} : memref<1x440xf32, #tpu.memory_space<vmem>>, vector<1x22xf32>,
    %180 = vector.extract_strided_slice %145 {offsets = [17, 0], sizes = [1, 22], strides = [1, 1]} : vector<20x22xf32> to vector<1x22xf32>
    %c0_152 = arith.constant 0 : index
    %c374 = arith.constant 374 : index
    %181 = vector.load %arg24[%c0_152, %c374] : memref<1x440xf32, #tpu.memory_space<vmem>>, vector<1x22xf32>
    tpu.vector_store %arg24[%c0_152, %c374], %180 {strides = array<i32>} : memref<1x440xf32, #tpu.memory_space<vmem>>, vector<1x22xf32>,
    %182 = vector.extract_strided_slice %145 {offsets = [18, 0], sizes = [1, 22], strides = [1, 1]} : vector<20x22xf32> to vector<1x22xf32>
    %c0_153 = arith.constant 0 : index
    %c396 = arith.constant 396 : index
    %183 = vector.load %arg24[%c0_153, %c396] : memref<1x440xf32, #tpu.memory_space<vmem>>, vector<1x22xf32>
    tpu.vector_store %arg24[%c0_153, %c396], %182 {strides = array<i32>} : memref<1x440xf32, #tpu.memory_space<vmem>>, vector<1x22xf32>,
    %184 = vector.extract_strided_slice %145 {offsets = [19, 0], sizes = [1, 22], strides = [1, 1]} : vector<20x22xf32> to vector<1x22xf32>
    %c0_154 = arith.constant 0 : index
    %c418 = arith.constant 418 : index
    %185 = vector.load %arg24[%c0_154, %c418] : memref<1x440xf32, #tpu.memory_space<vmem>>, vector<1x22xf32>
    tpu.vector_store %arg24[%c0_154, %c418], %184 {strides = array<i32>} : memref<1x440xf32, #tpu.memory_space<vmem>>, vector<1x22xf32>,
    %c0_155 = arith.constant 0 : index
    %c0_156 = arith.constant 0 : index
    %186 = vector.load %arg24[%c0_155, %c0_156] : memref<1x440xf32, #tpu.memory_space<vmem>>, vector<1x440xf32>
    %c0_157 = arith.constant 0 : index
    %c0_158 = arith.constant 0 : index
    %187 = vector.load %arg14[%c0_157, %c0_158] : memref<440x100xf32, #tpu.memory_space<vmem>>, vector<440x100xf32>
    %cst_159 = arith.constant dense<0.000000e+00> : vector<1x100xf32>
    %188 = tpu.matmul %186, %187, %cst_159 {dimension_numbers = #tpu.dot_dimension_numbers<[1], [0], [0], [1], [0, 0, 1, 1], [], []>} : vector<1x440xf32>, vector<440x100xf32>, vector<1x100xf32> -> vector<1x100xf32>
    %c0_160 = arith.constant 0 : index
    %c0_161 = arith.constant 0 : index
    %189 = vector.load %arg15[%c0_160, %c0_161] : memref<1x100xf32, #tpu.memory_space<vmem>>, vector<1x100xf32>
    %190 = arith.addf %188, %189 : vector<1x100xf32>
    %c6 = arith.constant 6 : index
    %191 = memref.load %arg18[%c6] : memref<8xf32, #tpu.memory_space<smem>>
    %cst_162 = arith.constant 0.000000e+00 : f32
    %192 = vector.broadcast %cst_162 : f32 to vector<1x100xf32>
    %193 = arith.cmpf oge, %190, %192 : vector<1x100xf32>
    %194 = vector.broadcast %191 : f32 to vector<1x100xf32>
    %195 = arith.mulf %194, %190 : vector<1x100xf32>
    %196 = arith.select %193, %190, %195 : vector<1x100xi1>, vector<1x100xf32>
    %c0_163 = arith.constant 0 : index
    %c0_164 = arith.constant 0 : index
    %197 = vector.load %arg16[%c0_163, %c0_164] : memref<100x32xf32, #tpu.memory_space<vmem>>, vector<100x32xf32>
    %cst_165 = arith.constant dense<0.000000e+00> : vector<1x32xf32>
    %198 = tpu.matmul %196, %197, %cst_165 {dimension_numbers = #tpu.dot_dimension_numbers<[1], [0], [0], [1], [0, 0, 1, 1], [], []>} : vector<1x100xf32>, vector<100x32xf32>, vector<1x32xf32> -> vector<1x32xf32>
    %c0_166 = arith.constant 0 : index
    %c0_167 = arith.constant 0 : index
    %199 = vector.load %arg17[%c0_166, %c0_167] : memref<1x32xf32, #tpu.memory_space<vmem>>, vector<1x32xf32>
    %200 = arith.addf %198, %199 : vector<1x32xf32>
    %c7 = arith.constant 7 : index
    %201 = memref.load %arg18[%c7] : memref<8xf32, #tpu.memory_space<smem>>
    %cst_168 = arith.constant 0.000000e+00 : f32
    %202 = vector.broadcast %cst_168 : f32 to vector<1x32xf32>
    %203 = arith.cmpf oge, %200, %202 : vector<1x32xf32>
    %204 = vector.broadcast %201 : f32 to vector<1x32xf32>
    %205 = arith.mulf %204, %200 : vector<1x32xf32>
    %206 = arith.select %203, %200, %205 : vector<1x32xi1>, vector<1x32xf32>
    %c0_169 = arith.constant 0 : index
    %c0_170 = arith.constant 0 : index
    %c0_171 = arith.constant 0 : index
    %207 = vector.load %arg19[%c0_169, %c0_170, %c0_171] : memref<1x1x32xf32, #tpu.memory_space<vmem>>, vector<1x1x32xf32>
    %208 = vector.shape_cast %207 : vector<1x1x32xf32> to vector<1x32xf32>
    %209 = vector.shape_cast %206 : vector<1x32xf32> to vector<1x1x32xf32>
    tpu.vector_store %arg19[%c0_169, %c0_170, %c0_171], %209 {strides = array<i32>} : memref<1x1x32xf32, #tpu.memory_space<vmem>>, vector<1x1x32xf32>,
    return
  }
  func.func @transform_0(%arg0: i32) -> (i32, i32, i32) {
    %c0_i32 = arith.constant 0 : i32
    %c0_i32_0 = arith.constant 0 : i32
    %c0_i32_1 = arith.constant 0 : i32
    return %arg0, %c0_i32, %c0_i32_0 : i32, i32, i32
  }
  func.func @transform_1(%arg0: i32) -> (i32, i32, i32) {
    %c0_i32 = arith.constant 0 : i32
    %c0_i32_0 = arith.constant 0 : i32
    %c0_i32_1 = arith.constant 0 : i32
    %c0_i32_2 = arith.constant 0 : i32
    return %c0_i32, %c0_i32_0, %c0_i32_1 : i32, i32, i32
  }
  func.func @transform_2(%arg0: i32) -> (i32, i32) {
    %c0_i32 = arith.constant 0 : i32
    %c0_i32_0 = arith.constant 0 : i32
    %c0_i32_1 = arith.constant 0 : i32
    return %c0_i32, %c0_i32_0 : i32, i32
  }
  func.func @transform_3(%arg0: i32) -> (i32, i32, i32) {
    %c0_i32 = arith.constant 0 : i32
    %c0_i32_0 = arith.constant 0 : i32
    %c0_i32_1 = arith.constant 0 : i32
    %c0_i32_2 = arith.constant 0 : i32
    return %c0_i32, %c0_i32_0, %c0_i32_1 : i32, i32, i32
  }
  func.func @transform_4(%arg0: i32) -> (i32, i32) {
    %c0_i32 = arith.constant 0 : i32
    %c0_i32_0 = arith.constant 0 : i32
    %c0_i32_1 = arith.constant 0 : i32
    return %c0_i32, %c0_i32_0 : i32, i32
  }
  func.func @transform_5(%arg0: i32) -> (i32, i32) {
    %c0_i32 = arith.constant 0 : i32
    %c0_i32_0 = arith.constant 0 : i32
    %c0_i32_1 = arith.constant 0 : i32
    return %c0_i32, %c0_i32_0 : i32, i32
  }
  func.func @transform_6(%arg0: i32) -> (i32, i32) {
    %c0_i32 = arith.constant 0 : i32
    %c0_i32_0 = arith.constant 0 : i32
    %c0_i32_1 = arith.constant 0 : i32
    return %c0_i32, %c0_i32_0 : i32, i32
  }
  func.func @transform_7(%arg0: i32) -> (i32, i32, i32) {
    %c0_i32 = arith.constant 0 : i32
    %c0_i32_0 = arith.constant 0 : i32
    %c0_i32_1 = arith.constant 0 : i32
    %c0_i32_2 = arith.constant 0 : i32
    return %c0_i32, %c0_i32_0, %c0_i32_1 : i32, i32, i32
  }
  func.func @transform_8(%arg0: i32) -> (i32, i32) {
    %c0_i32 = arith.constant 0 : i32
    %c0_i32_0 = arith.constant 0 : i32
    %c0_i32_1 = arith.constant 0 : i32
    return %c0_i32, %c0_i32_0 : i32, i32
  }
  func.func @transform_9(%arg0: i32) -> (i32, i32, i32) {
    %c0_i32 = arith.constant 0 : i32
    %c0_i32_0 = arith.constant 0 : i32
    %c0_i32_1 = arith.constant 0 : i32
    %c0_i32_2 = arith.constant 0 : i32
    return %c0_i32, %c0_i32_0, %c0_i32_1 : i32, i32, i32
  }
  func.func @transform_10(%arg0: i32) -> (i32, i32) {
    %c0_i32 = arith.constant 0 : i32
    %c0_i32_0 = arith.constant 0 : i32
    %c0_i32_1 = arith.constant 0 : i32
    return %c0_i32, %c0_i32_0 : i32, i32
  }
  func.func @transform_11(%arg0: i32) -> (i32, i32, i32) {
    %c0_i32 = arith.constant 0 : i32
    %c0_i32_0 = arith.constant 0 : i32
    %c0_i32_1 = arith.constant 0 : i32
    %c0_i32_2 = arith.constant 0 : i32
    return %c0_i32, %c0_i32_0, %c0_i32_1 : i32, i32, i32
  }
  func.func @transform_12(%arg0: i32) -> (i32, i32) {
    %c0_i32 = arith.constant 0 : i32
    %c0_i32_0 = arith.constant 0 : i32
    %c0_i32_1 = arith.constant 0 : i32
    return %c0_i32, %c0_i32_0 : i32, i32
  }
  func.func @transform_13(%arg0: i32) -> (i32, i32) {
    %c0_i32 = arith.constant 0 : i32
    %c0_i32_0 = arith.constant 0 : i32
    %c0_i32_1 = arith.constant 0 : i32
    return %c0_i32, %c0_i32_0 : i32, i32
  }
  func.func @transform_14(%arg0: i32) -> (i32, i32) {
    %c0_i32 = arith.constant 0 : i32
    %c0_i32_0 = arith.constant 0 : i32
    %c0_i32_1 = arith.constant 0 : i32
    return %c0_i32, %c0_i32_0 : i32, i32
  }
  func.func @transform_15(%arg0: i32) -> (i32, i32) {
    %c0_i32 = arith.constant 0 : i32
    %c0_i32_0 = arith.constant 0 : i32
    %c0_i32_1 = arith.constant 0 : i32
    return %c0_i32, %c0_i32_0 : i32, i32
  }
  func.func @transform_16(%arg0: i32) -> (i32, i32) {
    %c0_i32 = arith.constant 0 : i32
    %c0_i32_0 = arith.constant 0 : i32
    %c0_i32_1 = arith.constant 0 : i32
    return %c0_i32, %c0_i32_0 : i32, i32
  }
  func.func @transform_17(%arg0: i32) -> i32 {
    %c0_i32 = arith.constant 0 : i32
    %c0_i32_0 = arith.constant 0 : i32
    return %c0_i32 : i32
  }
  func.func @transform_18(%arg0: i32) -> (i32, i32, i32) {
    %c0_i32 = arith.constant 0 : i32
    %c0_i32_0 = arith.constant 0 : i32
    %c0_i32_1 = arith.constant 0 : i32
    return %arg0, %c0_i32, %c0_i32_0 : i32, i32, i32
  }
}

</mosaic_0001>

<llo_original>
// kernel: conv_vae_forward.1
$region0: #{conv_vae_forward.1}
  #allocation0 [shape = 'u32[]', space=smem, size = 0x4, offset = 0x4, fixed_abs, tag = 'smem constant byte address 0x4 - core index']
  #allocation1 [shape = 'u32[144,128]{1,0:T(1,128)}', space=vmem, size = 0x12000, scoped, tag = 'internal scratch']
  #allocation2 [shape = 'f32[42,212]{1,0:T(8,128)}', space=vmem, size = 0xc000, scoped, tag = 'scratch operand']
  #allocation3 [shape = 'f32[22,112]{1,0:T(8,128)}', space=vmem, size = 0x3000, scoped, tag = 'scratch operand']
  #allocation4 [shape = 'f32[22,112]{1,0:T(8,128)}', space=vmem, size = 0x3000, scoped, tag = 'scratch operand']
  #allocation5 [shape = 'f32[22,112]{1,0:T(8,128)}', space=vmem, size = 0x3000, scoped, tag = 'scratch operand']
  #allocation6 [shape = 'f32[1,440]{1,0:T(1,128)}', space=vmem, size = 0x800, scoped, tag = 'scratch operand']
  %s0 = inlined_call_operand.vmem [shape: f32[2,42,42], index: 0, kind: input, shape index: {}]
  %s1 = inlined_call_operand.vmem [shape: f32[3,42,212], index: 1, kind: input, shape index: {}]
  %s2 = inlined_call_operand.vmem [shape: f32[1,212], index: 2, kind: input, shape index: {}]
  %s3 = inlined_call_operand.vmem [shape: f32[3,212,212], index: 3, kind: input, shape index: {}]
  %s4 = inlined_call_operand.vmem [shape: f32[1,212], index: 4, kind: input, shape index: {}]
  %s5 = inlined_call_operand.hbm [shape: f32[20,39], index: 5, kind: input, shape index: {}]
  %s6 = inlined_call_operand.hbm [shape: f32[211,112], index: 6, kind: input, shape index: {}]
  %s7 = inlined_call_operand.hbm [shape: f32[3,112,112], index: 7, kind: input, shape index: {}]
  %s8 = inlined_call_operand.vmem [shape: f32[1,112], index: 8, kind: input, shape index: {}]
  %s9 = inlined_call_operand.hbm [shape: f32[3,112,112], index: 9, kind: input, shape index: {}]
  %s10 = inlined_call_operand.vmem [shape: f32[1,112], index: 10, kind: input, shape index: {}]
  %s11 = inlined_call_operand.vmem [shape: f32[3,112,22], index: 11, kind: input, shape index: {}]
  %s12 = inlined_call_operand.vmem [shape: f32[1,22], index: 12, kind: input, shape index: {}]
  %s13 = inlined_call_operand.vmem [shape: f32[440,100], index: 13, kind: input, shape index: {}]
  %s14 = inlined_call_operand.vmem [shape: f32[1,100], index: 14, kind: input, shape index: {}]
  %s15 = inlined_call_operand.vmem [shape: f32[100,32], index: 15, kind: input, shape index: {}]
  %s16 = inlined_call_operand.vmem [shape: f32[1,32], index: 16, kind: input, shape index: {}]
  %s17 = inlined_call_operand.vmem [shape: f32[8], index: 17, kind: input, shape index: {}]
  %s18 = inlined_call_operand.hbm [shape: f32[2,1,32], index: 18, kind: output, shape index: {}]
  %s19 = sld [smem:[#allocation0]]
  $region125: #{conv_vae_forward.1} parent=0
    _
  %s21 = ssub.s32 1, %s19
  %s22 = scalar_select 0, %s21, %s19
  $region1: #{conv_vae_forward.1} parent=0
    #allocation7 [shape = 'u8[12288]{0}', space=vmem, size = 0x3000, scoped, tag = 'input window, operand 5, single buffered']
    #allocation8 [shape = 's32[2]{0}', space=sflag, size = 0x8, scoped, tag = 'scoped memory for conv_vae_forward.1']
    #allocation9 [shape = 's32[2]{0}', space=sflag, size = 0x8, scoped, tag = 'scoped memory for conv_vae_forward.1']
    #allocation10 [shape = 's32[2]{0}', space=sflag, size = 0x8, scoped, tag = 'scoped memory for conv_vae_forward.1']
    #allocation11 [shape = 'u8[110592]{0}', space=vmem, size = 0x1b000, scoped, tag = 'input window, operand 6, single buffered']
    #allocation12 [shape = 's32[1]{0}', space=sflag, size = 0x4, scoped, tag = 'scoped memory for conv_vae_forward.1']
    #allocation13 [shape = 'u8[172032]{0}', space=vmem, size = 0x2a000, scoped, tag = 'input window, operand 7, single buffered']
    #allocation14 [shape = 'u8[172032]{0}', space=vmem, size = 0x2a000, scoped, tag = 'input window, operand 9, single buffered']
    #allocation15 [shape = 's32[1]{0}', space=sflag, size = 0x4, scoped, tag = 'scoped memory for conv_vae_forward.1']
    #allocation16 [shape = 'u8[512]{0}', space=smem, size = 0x200, scoped, tag = 'input window, operand 17, single buffered']
    #allocation17 [shape = 'u8[1024]{0}', space=vmem, size = 0x400, scoped, tag = 'output window, operand 0']
    %23 = vsyncpa [#allocation8], 0
    %24 = vsyncpa [#allocation12], 0
    %25 = vsyncpa [#allocation15], 0
    %26 = vsyncpa [#allocation10], 0
    %27 = vsyncpa [#allocation9], 0
    %s28 = scalar_lea.sflag [#allocation9], 1
    %29 = vsyncpa %s28, 0
    loop: start=0, step=1, limit=4
    $region2: #{conv_vae_forward.1} parent=1 // loop_pre_header
      _
    $region3: #{conv_vae_forward.1} parent=1 // loop_header
      %s31 = sphi 0, %s35
      %p32 = scmp.ge.s32.totalorder %s31, 4
      %s41 = sphi 0, %s43
      %s44 = sphi 0, %s41
      %s45 = sphi 0, %s44
      %s61 = sphi 0, %s45
      %s65 = sphi 0, %s65
      %s67 = sphi 0, %s65
      %s68 = sphi 0, %s67
      %s82 = sphi 0, %s68
      %s86 = sphi 0, %s86
      %s88 = sphi 0, %s86
      %s89 = sphi 0, %s88
      %s103 = sphi 0, %s89
      %s107 = sphi 0, %s107
      %s109 = sphi 0, %s107
      %s110 = sphi 0, %s109
      %s124 = sphi 0, %s110
      %s128 = sphi 0, %s128
      %s130 = sphi 0, %s128
      %s131 = sphi 0, %s130
      %s145 = sphi 0, %s131
      %s149 = sphi 0, %s149
      %s151 = sphi 0, %s149
      %s152 = sphi 0, %s151
      %s166 = sphi 0, %s152
      %s170 = sphi 0, %s170
      %s172 = sphi 0, %s170
      %s173 = sphi 0, %s172
      %s187 = sphi 0, %s173
      %s191 = sphi 0, %s191
      %s193 = sphi 0, %s191
      %s194 = sphi 0, %s193
      %s208 = sphi 0, %s194
      %s212 = sphi 0, %s212
      %s214 = sphi 0, %s212
      %s215 = sphi 0, %s214
      %s229 = sphi 0, %s215
      %s233 = sphi 0, %s233
      %s235 = sphi 0, %s233
      %s236 = sphi 0, %s235
      %s250 = sphi 0, %s236
      %s254 = sphi 0, %s254
      %s256 = sphi 0, %s254
      %s257 = sphi 0, %s256
      %s271 = sphi 0, %s257
      %s275 = sphi 0, %s275
      %s277 = sphi 0, %s275
      %s278 = sphi 0, %s277
      %s292 = sphi 0, %s278
      %s296 = sphi 0, %s296
      %s298 = sphi 0, %s296
      %s299 = sphi 0, %s298
      %s313 = sphi 0, %s299
      %s317 = sphi 0, %s317
      %s319 = sphi 0, %s317
      %s320 = sphi 0, %s319
      %s334 = sphi 0, %s320
      %s338 = sphi 0, %s338
      %s340 = sphi 0, %s338
      %s341 = sphi 0, %s340
      %s355 = sphi 0, %s341
      %s359 = sphi 0, %s359
      %s361 = sphi 0, %s359
      %s362 = sphi 0, %s361
      %s376 = sphi 0, %s362
      %s380 = sphi 0, %s380
      %s382 = sphi 0, %s380
      %s383 = sphi 0, %s382
      %s397 = sphi 0, %s383
      %s401 = sphi 0, %s401
      %s403 = sphi 0, %s401
      %s404 = sphi 0, %s403
      %s418 = sphi 0, %s404
      %s424 = sphi 0, %s426
      %s427 = sphi 0, %s424
      %s428 = sphi 0, %s427
      %s444 = sphi 0, %s428
    $region4: #{conv_vae_forward.1} parent=1 // loop_header_branch
      %34 = sbr.rel (%p32) target = $region8
    $region5: #{conv_vae_forward.1} parent=1 // loop_body
      %s36 = ssub.s32 %s31, 1
      %s37 = ssub.s32 %s31, 2
      %s38 = sadd.s32 %s31, 1
      %s39 = ssub.s32 %s31, %s38
      %p40 = scmp.eq.s32.totalorder %s39, 0
      %s42 = sadd.s32 %s41, 1
      %s43 = scalar_select %p40, %s41, %s42
      %p46 = pneg %p40
      %p47 = scmp.eq.s32.totalorder %s31, 1
      %p48 = por %p46, %p47
      %p49 = scmp.ne.s32.totalorder %s41, %s44
      %p50 = scmp.eq.s32.totalorder %s31, 0
      %p51 = por %p49, %p50
      %p52 = scmp.ne.s32.totalorder %s41, %s44
      %p53 = scmp.eq.s32.totalorder %s36, 1
      %p54 = por %p52, %p53
      %p55 = scmp.ne.s32.totalorder %s44, %s45
      %p56 = scmp.eq.s32.totalorder %s36, 0
      %p57 = por %p55, %p56
      %p58 = scmp.ne.s32.totalorder %s44, %s45
      %p59 = scmp.eq.s32.totalorder %s37, 1
      %p60 = por %p58, %p59
      %p62 = scmp.ne.s32.totalorder %s45, %s61
      %p63 = scmp.eq.s32.totalorder %s37, 0
      %p64 = por %p62, %p63
      %s66 = sadd.s32 %s65, 1
      %p69 = scmp.eq.s32.totalorder %s31, 1
      %p70 = scmp.ne.s32.totalorder %s65, %s67
      %p71 = scmp.eq.s32.totalorder %s31, 0
      %p72 = por %p70, %p71
      %p73 = scmp.ne.s32.totalorder %s65, %s67
      %p74 = scmp.eq.s32.totalorder %s36, 1
      %p75 = por %p73, %p74
      %p76 = scmp.ne.s32.totalorder %s67, %s68
      %p77 = scmp.eq.s32.totalorder %s36, 0
      %p78 = por %p76, %p77
      %p79 = scmp.ne.s32.totalorder %s67, %s68
      %p80 = scmp.eq.s32.totalorder %s37, 1
      %p81 = por %p79, %p80
      %p83 = scmp.ne.s32.totalorder %s68, %s82
      %p84 = scmp.eq.s32.totalorder %s37, 0
      %p85 = por %p83, %p84
      %s87 = sadd.s32 %s86, 1
      %p90 = scmp.eq.s32.totalorder %s31, 1
      %p91 = scmp.ne.s32.totalorder %s86, %s88
      %p92 = scmp.eq.s32.totalorder %s31, 0
      %p93 = por %p91, %p92
      %p94 = scmp.ne.s32.totalorder %s86, %s88
      %p95 = scmp.eq.s32.totalorder %s36, 1
      %p96 = por %p94, %p95
      %p97 = scmp.ne.s32.totalorder %s88, %s89
      %p98 = scmp.eq.s32.totalorder %s36, 0
      %p99 = por %p97, %p98
      %p100 = scmp.ne.s32.totalorder %s88, %s89
      %p101 = scmp.eq.s32.totalorder %s37, 1
      %p102 = por %p100, %p101
      %p104 = scmp.ne.s32.totalorder %s89, %s103
      %p105 = scmp.eq.s32.totalorder %s37, 0
      %p106 = por %p104, %p105
      %s108 = sadd.s32 %s107, 1
      %p111 = scmp.eq.s32.totalorder %s31, 1
      %p112 = scmp.ne.s32.totalorder %s107, %s109
      %p113 = scmp.eq.s32.totalorder %s31, 0
      %p114 = por %p112, %p113
      %p115 = scmp.ne.s32.totalorder %s107, %s109
      %p116 = scmp.eq.s32.totalorder %s36, 1
      %p117 = por %p115, %p116
      %p118 = scmp.ne.s32.totalorder %s109, %s110
      %p119 = scmp.eq.s32.totalorder %s36, 0
      %p120 = por %p118, %p119
      %p121 = scmp.ne.s32.totalorder %s109, %s110
      %p122 = scmp.eq.s32.totalorder %s37, 1
      %p123 = por %p121, %p122
      %p125 = scmp.ne.s32.totalorder %s110, %s124
      %p126 = scmp.eq.s32.totalorder %s37, 0
      %p127 = por %p125, %p126
      %s129 = sadd.s32 %s128, 1
      %p132 = scmp.eq.s32.totalorder %s31, 1
      %p133 = scmp.ne.s32.totalorder %s128, %s130
      %p134 = scmp.eq.s32.totalorder %s31, 0
      %p135 = por %p133, %p134
      %p136 = scmp.ne.s32.totalorder %s128, %s130
      %p137 = scmp.eq.s32.totalorder %s36, 1
      %p138 = por %p136, %p137
      %p139 = scmp.ne.s32.totalorder %s130, %s131
      %p140 = scmp.eq.s32.totalorder %s36, 0
      %p141 = por %p139, %p140
      %p142 = scmp.ne.s32.totalorder %s130, %s131
      %p143 = scmp.eq.s32.totalorder %s37, 1
      %p144 = por %p142, %p143
      %p146 = scmp.ne.s32.totalorder %s131, %s145
      %p147 = scmp.eq.s32.totalorder %s37, 0
      %p148 = por %p146, %p147
      %s150 = sadd.s32 %s149, 1
      %p153 = scmp.eq.s32.totalorder %s31, 1
      %p154 = scmp.ne.s32.totalorder %s149, %s151
      %p155 = scmp.eq.s32.totalorder %s31, 0
      %p156 = por %p154, %p155
      %p157 = scmp.ne.s32.totalorder %s149, %s151
      %p158 = scmp.eq.s32.totalorder %s36, 1
      %p159 = por %p157, %p158
      %p160 = scmp.ne.s32.totalorder %s151, %s152
      %p161 = scmp.eq.s32.totalorder %s36, 0
      %p162 = por %p160, %p161
      %p163 = scmp.ne.s32.totalorder %s151, %s152
      %p164 = scmp.eq.s32.totalorder %s37, 1
      %p165 = por %p163, %p164
      %p167 = scmp.ne.s32.totalorder %s152, %s166
      %p168 = scmp.eq.s32.totalorder %s37, 0
      %p169 = por %p167, %p168
      %s171 = sadd.s32 %s170, 1
      %p174 = scmp.eq.s32.totalorder %s31, 1
      %p175 = scmp.ne.s32.totalorder %s170, %s172
      %p176 = scmp.eq.s32.totalorder %s31, 0
      %p177 = por %p175, %p176
      %p178 = scmp.ne.s32.totalorder %s170, %s172
      %p179 = scmp.eq.s32.totalorder %s36, 1
      %p180 = por %p178, %p179
      %p181 = scmp.ne.s32.totalorder %s172, %s173
      %p182 = scmp.eq.s32.totalorder %s36, 0
      %p183 = por %p181, %p182
      %p184 = scmp.ne.s32.totalorder %s172, %s173
      %p185 = scmp.eq.s32.totalorder %s37, 1
      %p186 = por %p184, %p185
      %p188 = scmp.ne.s32.totalorder %s173, %s187
      %p189 = scmp.eq.s32.totalorder %s37, 0
      %p190 = por %p188, %p189
      %s192 = sadd.s32 %s191, 1
      %p195 = scmp.eq.s32.totalorder %s31, 1
      %p196 = scmp.ne.s32.totalorder %s191, %s193
      %p197 = scmp.eq.s32.totalorder %s31, 0
      %p198 = por %p196, %p197
      %p199 = scmp.ne.s32.totalorder %s191, %s193
      %p200 = scmp.eq.s32.totalorder %s36, 1
      %p201 = por %p199, %p200
      %p202 = scmp.ne.s32.totalorder %s193, %s194
      %p203 = scmp.eq.s32.totalorder %s36, 0
      %p204 = por %p202, %p203
      %p205 = scmp.ne.s32.totalorder %s193, %s194
      %p206 = scmp.eq.s32.totalorder %s37, 1
      %p207 = por %p205, %p206
      %p209 = scmp.ne.s32.totalorder %s194, %s208
      %p210 = scmp.eq.s32.totalorder %s37, 0
      %p211 = por %p209, %p210
      %s213 = sadd.s32 %s212, 1
      %p216 = scmp.eq.s32.totalorder %s31, 1
      %p217 = scmp.ne.s32.totalorder %s212, %s214
      %p218 = scmp.eq.s32.totalorder %s31, 0
      %p219 = por %p217, %p218
      %p220 = scmp.ne.s32.totalorder %s212, %s214
      %p221 = scmp.eq.s32.totalorder %s36, 1
      %p222 = por %p220, %p221
      %p223 = scmp.ne.s32.totalorder %s214, %s215
      %p224 = scmp.eq.s32.totalorder %s36, 0
      %p225 = por %p223, %p224
      %p226 = scmp.ne.s32.totalorder %s214, %s215
      %p227 = scmp.eq.s32.totalorder %s37, 1
      %p228 = por %p226, %p227
      %p230 = scmp.ne.s32.totalorder %s215, %s229
      %p231 = scmp.eq.s32.totalorder %s37, 0
      %p232 = por %p230, %p231
      %s234 = sadd.s32 %s233, 1
      %p237 = scmp.eq.s32.totalorder %s31, 1
      %p238 = scmp.ne.s32.totalorder %s233, %s235
      %p239 = scmp.eq.s32.totalorder %s31, 0
      %p240 = por %p238, %p239
      %p241 = scmp.ne.s32.totalorder %s233, %s235
      %p242 = scmp.eq.s32.totalorder %s36, 1
      %p243 = por %p241, %p242
      %p244 = scmp.ne.s32.totalorder %s235, %s236
      %p245 = scmp.eq.s32.totalorder %s36, 0
      %p246 = por %p244, %p245
      %p247 = scmp.ne.s32.totalorder %s235, %s236
      %p248 = scmp.eq.s32.totalorder %s37, 1
      %p249 = por %p247, %p248
      %p251 = scmp.ne.s32.totalorder %s236, %s250
      %p252 = scmp.eq.s32.totalorder %s37, 0
      %p253 = por %p251, %p252
      %s255 = sadd.s32 %s254, 1
      %p258 = scmp.eq.s32.totalorder %s31, 1
      %p259 = scmp.ne.s32.totalorder %s254, %s256
      %p260 = scmp.eq.s32.totalorder %s31, 0
      %p261 = por %p259, %p260
      %p262 = scmp.ne.s32.totalorder %s254, %s256
      %p263 = scmp.eq.s32.totalorder %s36, 1
      %p264 = por %p262, %p263
      %p265 = scmp.ne.s32.totalorder %s256, %s257
      %p266 = scmp.eq.s32.totalorder %s36, 0
      %p267 = por %p265, %p266
      %p268 = scmp.ne.s32.totalorder %s256, %s257
      %p269 = scmp.eq.s32.totalorder %s37, 1
      %p270 = por %p268, %p269
      %p272 = scmp.ne.s32.totalorder %s257, %s271
      %p273 = scmp.eq.s32.totalorder %s37, 0
      %p274 = por %p272, %p273
      %s276 = sadd.s32 %s275, 1
      %p279 = scmp.eq.s32.totalorder %s31, 1
      %p280 = scmp.ne.s32.totalorder %s275, %s277
      %p281 = scmp.eq.s32.totalorder %s31, 0
      %p282 = por %p280, %p281
      %p283 = scmp.ne.s32.totalorder %s275, %s277
      %p284 = scmp.eq.s32.totalorder %s36, 1
      %p285 = por %p283, %p284
      %p286 = scmp.ne.s32.totalorder %s277, %s278
      %p287 = scmp.eq.s32.totalorder %s36, 0
      %p288 = por %p286, %p287
      %p289 = scmp.ne.s32.totalorder %s277, %s278
      %p290 = scmp.eq.s32.totalorder %s37, 1
      %p291 = por %p289, %p290
      %p293 = scmp.ne.s32.totalorder %s278, %s292
      %p294 = scmp.eq.s32.totalorder %s37, 0
      %p295 = por %p293, %p294
      %s297 = sadd.s32 %s296, 1
      %p300 = scmp.eq.s32.totalorder %s31, 1
      %p301 = scmp.ne.s32.totalorder %s296, %s298
      %p302 = scmp.eq.s32.totalorder %s31, 0
      %p303 = por %p301, %p302
      %p304 = scmp.ne.s32.totalorder %s296, %s298
      %p305 = scmp.eq.s32.totalorder %s36, 1
      %p306 = por %p304, %p305
      %p307 = scmp.ne.s32.totalorder %s298, %s299
      %p308 = scmp.eq.s32.totalorder %s36, 0
      %p309 = por %p307, %p308
      %p310 = scmp.ne.s32.totalorder %s298, %s299
      %p311 = scmp.eq.s32.totalorder %s37, 1
      %p312 = por %p310, %p311
      %p314 = scmp.ne.s32.totalorder %s299, %s313
      %p315 = scmp.eq.s32.totalorder %s37, 0
      %p316 = por %p314, %p315
      %s318 = sadd.s32 %s317, 1
      %p321 = scmp.eq.s32.totalorder %s31, 1
      %p322 = scmp.ne.s32.totalorder %s317, %s319
      %p323 = scmp.eq.s32.totalorder %s31, 0
      %p324 = por %p322, %p323
      %p325 = scmp.ne.s32.totalorder %s317, %s319
      %p326 = scmp.eq.s32.totalorder %s36, 1
      %p327 = por %p325, %p326
      %p328 = scmp.ne.s32.totalorder %s319, %s320
      %p329 = scmp.eq.s32.totalorder %s36, 0
      %p330 = por %p328, %p329
      %p331 = scmp.ne.s32.totalorder %s319, %s320
      %p332 = scmp.eq.s32.totalorder %s37, 1
      %p333 = por %p331, %p332
      %p335 = scmp.ne.s32.totalorder %s320, %s334
      %p336 = scmp.eq.s32.totalorder %s37, 0
      %p337 = por %p335, %p336
      %s339 = sadd.s32 %s338, 1
      %p342 = scmp.eq.s32.totalorder %s31, 1
      %p343 = scmp.ne.s32.totalorder %s338, %s340
      %p344 = scmp.eq.s32.totalorder %s31, 0
      %p345 = por %p343, %p344
      %p346 = scmp.ne.s32.totalorder %s338, %s340
      %p347 = scmp.eq.s32.totalorder %s36, 1
      %p348 = por %p346, %p347
      %p349 = scmp.ne.s32.totalorder %s340, %s341
      %p350 = scmp.eq.s32.totalorder %s36, 0
      %p351 = por %p349, %p350
      %p352 = scmp.ne.s32.totalorder %s340, %s341
      %p353 = scmp.eq.s32.totalorder %s37, 1
      %p354 = por %p352, %p353
      %p356 = scmp.ne.s32.totalorder %s341, %s355
      %p357 = scmp.eq.s32.totalorder %s37, 0
      %p358 = por %p356, %p357
      %s360 = sadd.s32 %s359, 1
      %p363 = scmp.eq.s32.totalorder %s31, 1
      %p364 = scmp.ne.s32.totalorder %s359, %s361
      %p365 = scmp.eq.s32.totalorder %s31, 0
      %p366 = por %p364, %p365
      %p367 = scmp.ne.s32.totalorder %s359, %s361
      %p368 = scmp.eq.s32.totalorder %s36, 1
      %p369 = por %p367, %p368
      %p370 = scmp.ne.s32.totalorder %s361, %s362
      %p371 = scmp.eq.s32.totalorder %s36, 0
      %p372 = por %p370, %p371
      %p373 = scmp.ne.s32.totalorder %s361, %s362
      %p374 = scmp.eq.s32.totalorder %s37, 1
      %p375 = por %p373, %p374
      %p377 = scmp.ne.s32.totalorder %s362, %s376
      %p378 = scmp.eq.s32.totalorder %s37, 0
      %p379 = por %p377, %p378
      %s381 = sadd.s32 %s380, 1
      %p384 = scmp.eq.s32.totalorder %s31, 1
      %p385 = scmp.ne.s32.totalorder %s380, %s382
      %p386 = scmp.eq.s32.totalorder %s31, 0
      %p387 = por %p385, %p386
      %p388 = scmp.ne.s32.totalorder %s380, %s382
      %p389 = scmp.eq.s32.totalorder %s36, 1
      %p390 = por %p388, %p389
      %p391 = scmp.ne.s32.totalorder %s382, %s383
      %p392 = scmp.eq.s32.totalorder %s36, 0
      %p393 = por %p391, %p392
      %p394 = scmp.ne.s32.totalorder %s382, %s383
      %p395 = scmp.eq.s32.totalorder %s37, 1
      %p396 = por %p394, %p395
      %p398 = scmp.ne.s32.totalorder %s383, %s397
      %p399 = scmp.eq.s32.totalorder %s37, 0
      %p400 = por %p398, %p399
      %s402 = sadd.s32 %s401, 1
      %p405 = scmp.eq.s32.totalorder %s31, 1
      %p406 = scmp.ne.s32.totalorder %s401, %s403
      %p407 = scmp.eq.s32.totalorder %s31, 0
      %p408 = por %p406, %p407
      %p409 = scmp.ne.s32.totalorder %s401, %s403
      %p410 = scmp.eq.s32.totalorder %s36, 1
      %p411 = por %p409, %p410
      %p412 = scmp.ne.s32.totalorder %s403, %s404
      %p413 = scmp.eq.s32.totalorder %s36, 0
      %p414 = por %p412, %p413
      %p415 = scmp.ne.s32.totalorder %s403, %s404
      %p416 = scmp.eq.s32.totalorder %s37, 1
      %p417 = por %p415, %p416
      %p419 = scmp.ne.s32.totalorder %s404, %s418
      %p420 = scmp.eq.s32.totalorder %s37, 0
      %p421 = por %p419, %p420
      %s422 = ssub.s32 %s31, %s38
      %p423 = scmp.eq.s32.totalorder %s422, 0
      %s425 = sadd.s32 %s424, 1
      %s426 = scalar_select %p423, %s424, %s425
      %p429 = pneg %p423
      %p430 = scmp.eq.s32.totalorder %s31, 1
      %p431 = por %p429, %p430
      %p432 = scmp.ne.s32.totalorder %s424, %s427
      %p433 = scmp.eq.s32.totalorder %s31, 0
      %p434 = por %p432, %p433
      %p435 = scmp.ne.s32.totalorder %s424, %s427
      %p436 = scmp.eq.s32.totalorder %s36, 1
      %p437 = por %p435, %p436
      %p438 = scmp.ne.s32.totalorder %s427, %s428
      %p439 = scmp.eq.s32.totalorder %s36, 0
      %p440 = por %p438, %p439
      %p441 = scmp.ne.s32.totalorder %s427, %s428
      %p442 = scmp.eq.s32.totalorder %s37, 1
      %p443 = por %p441, %p442
      %p445 = scmp.ne.s32.totalorder %s428, %s444
      %p446 = scmp.eq.s32.totalorder %s37, 0
      %p447 = por %p445, %p446
      %p448 = scmp.le.s32.totalorder 1, %s31
      %p449 = scmp.lt.s32.totalorder %s31, 3
      %p450 = pnand %p448, %p449
      %p451 = pneg %p450
      // Predicated region
      $region9: #{conv_vae_forward.1} parent=5 // pred_check
        _
      $region10: #{conv_vae_forward.1} parent=5 // pred_check_branch
        %453 = sbr.rel (%p450) target = $region12
      $region11: #{conv_vae_forward.1} parent=5 // pred_region
        %s454 = ssub.s32 %s31, 1
        // Predicated region
        $region13: #{conv_vae_forward.1} parent=11 // pred_check
          %p455 = pneg %p78
        $region14: #{conv_vae_forward.1} parent=11 // pred_check_branch
          %457 = sbr.rel (%p455) target = $region16
        $region15: #{conv_vae_forward.1} parent=11 // pred_region
          _
        $region16: #{conv_vae_forward.1} parent=11 // pred_fallthru
          _
        // Predicated region
        $region17: #{conv_vae_forward.1} parent=11 // pred_check
          %p458 = pneg %p99
        $region18: #{conv_vae_forward.1} parent=11 // pred_check_branch
          %460 = sbr.rel (%p458) target = $region20
        $region19: #{conv_vae_forward.1} parent=11 // pred_region
          _
        $region20: #{conv_vae_forward.1} parent=11 // pred_fallthru
          _
        // Predicated region
        $region21: #{conv_vae_forward.1} parent=11 // pred_check
          %p461 = pneg %p120
        $region22: #{conv_vae_forward.1} parent=11 // pred_check_branch
          %463 = sbr.rel (%p461) target = $region24
        $region23: #{conv_vae_forward.1} parent=11 // pred_region
          _
        $region24: #{conv_vae_forward.1} parent=11 // pred_fallthru
          _
        // Predicated region
        $region25: #{conv_vae_forward.1} parent=11 // pred_check
          %p464 = pneg %p141
        $region26: #{conv_vae_forward.1} parent=11 // pred_check_branch
          %466 = sbr.rel (%p464) target = $region28
        $region27: #{conv_vae_forward.1} parent=11 // pred_region
          _
        $region28: #{conv_vae_forward.1} parent=11 // pred_fallthru
          _
        // Predicated region
        $region29: #{conv_vae_forward.1} parent=11 // pred_check
          %p467 = pneg %p162
        $region30: #{conv_vae_forward.1} parent=11 // pred_check_branch
          %469 = sbr.rel (%p467) target = $region32
        $region31: #{conv_vae_forward.1} parent=11 // pred_region
          %s471 = ssub.s32 384, 384
          %472 = vsyncadd [#allocation8], %s471
          %s473 = sshll.u32 [#allocation7], 4
          %s474 = int_to_ptr.vmem [resolvable:$true] %s473
          %479 = dma.hbm_to_vmem [thread:$0]  %s5, 384, %s474, [#allocation8], 128, 128, 8
        $region32: #{conv_vae_forward.1} parent=11 // pred_fallthru
          _
        // Predicated region
        $region33: #{conv_vae_forward.1} parent=11 // pred_check
          %p480 = pneg %p183
        $region34: #{conv_vae_forward.1} parent=11 // pred_check_branch
          %482 = sbr.rel (%p480) target = $region36
        $region35: #{conv_vae_forward.1} parent=11 // pred_region
          %s484 = ssub.s32 3456, 3456
          %485 = vsyncadd [#allocation12], %s484
          %s486 = sshll.u32 [#allocation11], 4
          %s487 = int_to_ptr.vmem [resolvable:$true] %s486
          %492 = dma.hbm_to_vmem [thread:$0]  %s6, 3456, %s487, [#allocation12], 128, 128, 8
        $region36: #{conv_vae_forward.1} parent=11 // pred_fallthru
          _
        // Predicated region
        $region37: #{conv_vae_forward.1} parent=11 // pred_check
          %p493 = pneg %p204
        $region38: #{conv_vae_forward.1} parent=11 // pred_check_branch
          %495 = sbr.rel (%p493) target = $region40
        $region39: #{conv_vae_forward.1} parent=11 // pred_region
          %s497 = ssub.s32 5376, 5376
          %498 = vsyncadd [#allocation12], %s497
          %s499 = sshll.u32 [#allocation13], 4
          %s500 = int_to_ptr.vmem [resolvable:$true] %s499
          %505 = dma.hbm_to_vmem [thread:$0]  %s7, 5376, %s500, [#allocation12], 128, 128, 8
        $region40: #{conv_vae_forward.1} parent=11 // pred_fallthru
          _
        // Predicated region
        $region41: #{conv_vae_forward.1} parent=11 // pred_check
          %p506 = pneg %p225
        $region42: #{conv_vae_forward.1} parent=11 // pred_check_branch
          %508 = sbr.rel (%p506) target = $region44
        $region43: #{conv_vae_forward.1} parent=11 // pred_region
          _
        $region44: #{conv_vae_forward.1} parent=11 // pred_fallthru
          _
        // Predicated region
        $region45: #{conv_vae_forward.1} parent=11 // pred_check
          %p509 = pneg %p246
        $region46: #{conv_vae_forward.1} parent=11 // pred_check_branch
          %511 = sbr.rel (%p509) target = $region48
        $region47: #{conv_vae_forward.1} parent=11 // pred_region
          %s513 = ssub.s32 5376, 5376
          %514 = vsyncadd [#allocation15], %s513
          %s515 = sshll.u32 [#allocation14], 4
          %s516 = int_to_ptr.vmem [resolvable:$true] %s515
          %521 = dma.hbm_to_vmem [thread:$0]  %s9, 5376, %s516, [#allocation15], 128, 128, 8
        $region48: #{conv_vae_forward.1} parent=11 // pred_fallthru
          _
        // Predicated region
        $region49: #{conv_vae_forward.1} parent=11 // pred_check
          %p522 = pneg %p267
        $region50: #{conv_vae_forward.1} parent=11 // pred_check_branch
          %524 = sbr.rel (%p522) target = $region52
        $region51: #{conv_vae_forward.1} parent=11 // pred_region
          _
        $region52: #{conv_vae_forward.1} parent=11 // pred_fallthru
          _
        // Predicated region
        $region53: #{conv_vae_forward.1} parent=11 // pred_check
          %p525 = pneg %p288
        $region54: #{conv_vae_forward.1} parent=11 // pred_check_branch
          %527 = sbr.rel (%p525) target = $region56
        $region55: #{conv_vae_forward.1} parent=11 // pred_region
          _
        $region56: #{conv_vae_forward.1} parent=11 // pred_fallthru
          _
        // Predicated region
        $region57: #{conv_vae_forward.1} parent=11 // pred_check
          %p528 = pneg %p309
        $region58: #{conv_vae_forward.1} parent=11 // pred_check_branch
          %530 = sbr.rel (%p528) target = $region60
        $region59: #{conv_vae_forward.1} parent=11 // pred_region
          _
        $region60: #{conv_vae_forward.1} parent=11 // pred_fallthru
          _
        // Predicated region
        $region61: #{conv_vae_forward.1} parent=11 // pred_check
          %p531 = pneg %p330
        $region62: #{conv_vae_forward.1} parent=11 // pred_check_branch
          %533 = sbr.rel (%p531) target = $region64
        $region63: #{conv_vae_forward.1} parent=11 // pred_region
          _
        $region64: #{conv_vae_forward.1} parent=11 // pred_fallthru
          _
        // Predicated region
        $region65: #{conv_vae_forward.1} parent=11 // pred_check
          %p534 = pneg %p351
        $region66: #{conv_vae_forward.1} parent=11 // pred_check_branch
          %536 = sbr.rel (%p534) target = $region68
        $region67: #{conv_vae_forward.1} parent=11 // pred_region
          _
        $region68: #{conv_vae_forward.1} parent=11 // pred_fallthru
          _
        // Predicated region
        $region69: #{conv_vae_forward.1} parent=11 // pred_check
          %p537 = pneg %p372
        $region70: #{conv_vae_forward.1} parent=11 // pred_check_branch
          %539 = sbr.rel (%p537) target = $region72
        $region71: #{conv_vae_forward.1} parent=11 // pred_region
          _
        $region72: #{conv_vae_forward.1} parent=11 // pred_fallthru
          _
        // Predicated region
        $region73: #{conv_vae_forward.1} parent=11 // pred_check
          %p540 = pneg %p393
        $region74: #{conv_vae_forward.1} parent=11 // pred_check_branch
          %542 = sbr.rel (%p540) target = $region76
        $region75: #{conv_vae_forward.1} parent=11 // pred_region
          _
        $region76: #{conv_vae_forward.1} parent=11 // pred_fallthru
          _
        // Predicated region
        $region77: #{conv_vae_forward.1} parent=11 // pred_check
          %p543 = pneg %p414
        $region78: #{conv_vae_forward.1} parent=11 // pred_check_branch
          %545 = sbr.rel (%p543) target = $region80
        $region79: #{conv_vae_forward.1} parent=11 // pred_region
          %s547 = ssub.s32 16, 16
          %548 = vsyncadd [#allocation10], %s547
          %s550 = sshll.u32 %s17, 4
          %s551 = int_to_ptr.vmem [resolvable:$true] %s550
          %553 = dma.vmem_to_smem %s551, 16, [#allocation16], [#allocation10]
        $region80: #{conv_vae_forward.1} parent=11 // pred_fallthru
          _
      $region12: #{conv_vae_forward.1} parent=5 // pred_fallthru
        _
      %p554 = scmp.lt.s32.totalorder %s31, 2
      // Predicated region
      $region81: #{conv_vae_forward.1} parent=5 // pred_check
        %p555 = pneg %p554
      $region82: #{conv_vae_forward.1} parent=5 // pred_check_branch
        %557 = sbr.rel (%p555) target = $region84
      $region83: #{conv_vae_forward.1} parent=5 // pred_region
        // Predicated region
        $region85: #{conv_vae_forward.1} parent=83 // pred_check
          %p558 = pneg %p51
        $region86: #{conv_vae_forward.1} parent=83 // pred_check_branch
          %560 = sbr.rel (%p558) target = $region88
        $region87: #{conv_vae_forward.1} parent=83 // pred_region
          %p561 = scmp.lt.s32.totalorder %s31, 1
          %s562 = scalar_select %p561, %s31, 1
          %s563 = smul.addr %s562, 6
          %s564 = smul.addr %s563, 8
          %s565 = scalar_lea.vmem %s0, %s564
        $region88: #{conv_vae_forward.1} parent=83 // pred_fallthru
          _
      $region84: #{conv_vae_forward.1} parent=5 // pred_fallthru
        _
      %p566 = scmp.le.s32.totalorder 1, %s31
      %p567 = scmp.lt.s32.totalorder %s31, 3
      %p568 = pnand %p566, %p567
      %p569 = pneg %p568
      // Predicated region
      $region89: #{conv_vae_forward.1} parent=5 // pred_check
        _
      $region90: #{conv_vae_forward.1} parent=5 // pred_check_branch
        %571 = sbr.rel (%p568) target = $region92
      $region91: #{conv_vae_forward.1} parent=5 // pred_region
        %s572 = ssub.s32 %s31, 1
        // Predicated region
        $region93: #{conv_vae_forward.1} parent=91 // pred_check
          %p573 = pneg %p162
        $region94: #{conv_vae_forward.1} parent=91 // pred_check_branch
          %575 = sbr.rel (%p573) target = $region96
        $region95: #{conv_vae_forward.1} parent=91 // pred_region
          %576 = dma.done [#allocation8], 384
        $region96: #{conv_vae_forward.1} parent=91 // pred_fallthru
          _
        // Predicated region
        $region97: #{conv_vae_forward.1} parent=91 // pred_check
          %p577 = pneg %p183
        $region98: #{conv_vae_forward.1} parent=91 // pred_check_branch
          %579 = sbr.rel (%p577) target = $region100
        $region99: #{conv_vae_forward.1} parent=91 // pred_region
          %580 = dma.done [#allocation12], 3456
        $region100: #{conv_vae_forward.1} parent=91 // pred_fallthru
          _
        // Predicated region
        $region101: #{conv_vae_forward.1} parent=91 // pred_check
          %p581 = pneg %p204
        $region102: #{conv_vae_forward.1} parent=91 // pred_check_branch
          %583 = sbr.rel (%p581) target = $region104
        $region103: #{conv_vae_forward.1} parent=91 // pred_region
          %584 = dma.done [#allocation12], 5376
        $region104: #{conv_vae_forward.1} parent=91 // pred_fallthru
          _
        // Predicated region
        $region105: #{conv_vae_forward.1} parent=91 // pred_check
          %p585 = pneg %p246
        $region106: #{conv_vae_forward.1} parent=91 // pred_check_branch
          %587 = sbr.rel (%p585) target = $region108
        $region107: #{conv_vae_forward.1} parent=91 // pred_region
          %588 = dma.done [#allocation15], 5376
        $region108: #{conv_vae_forward.1} parent=91 // pred_fallthru
          _
        // Predicated region
        $region109: #{conv_vae_forward.1} parent=91 // pred_check
          %p589 = pneg %p414
        $region110: #{conv_vae_forward.1} parent=91 // pred_check_branch
          %591 = sbr.rel (%p589) target = $region112
        $region111: #{conv_vae_forward.1} parent=91 // pred_region
          %592 = dma.done [#allocation10], 16
        $region112: #{conv_vae_forward.1} parent=91 // pred_fallthru
          _
        %593 = sfence
        %p594 = scmp.lt.s32.totalorder %s36, 1
        %s595 = scalar_select %p594, %s36, 1
        %s596 = smul.addr %s595, 6
        %s597 = smul.addr %s596, 8
        %s598 = scalar_lea.vmem %s0, %s597
        %p599 = pneg %p57
        %p600 = pneg %p54
        %p601 = pneg %p78
        %p602 = pneg %p75
        %p603 = pneg %p99
        %p604 = pneg %p96
        %p605 = pneg %p120
        %p606 = pneg %p117
        %p607 = pneg %p141
        %p608 = pneg %p138
        %p609 = pneg %p162
        %p610 = pneg %p159
        %p611 = pneg %p183
        %p612 = pneg %p180
        %p613 = pneg %p204
        %p614 = pneg %p201
        %p615 = pneg %p225
        %p616 = pneg %p222
        %p617 = pneg %p246
        %p618 = pneg %p243
        %p619 = pneg %p267
        %p620 = pneg %p264
        %p621 = pneg %p288
        %p622 = pneg %p285
        %p623 = pneg %p309
        %p624 = pneg %p306
        %p625 = pneg %p330
        %p626 = pneg %p327
        %p627 = pneg %p351
        %p628 = pneg %p348
        %p629 = pneg %p372
        %p630 = pneg %p369
        %p631 = pneg %p393
        %p632 = pneg %p390
        %p633 = pneg %p414
        %p634 = pneg %p411
        %p635 = pneg %p440
        %p636 = pneg %p437
        %s637 = sand.u32 %s427, 1
        %s638 = scalar_lea.sflag [#allocation9], %s637
        %s639 = sand.u32 %s427, 1
        %s640 = scalar_lea.vmem [#allocation17], %s639
        %p641 = scmp.lt.s32.totalorder %s36, 1
        %s642 = scalar_select %p641, %s36, 1
        %s643 = smul.addr %s642, 6
        %s644 = smul.addr %s643, 8
        %s645 = scalar_lea.vmem %s0, %s644
        %646 = vst [vmem:[#allocation2] sm:$0xff] 0.0
        %vm647 = vcmask 687104
        %648 = vst.msk [vmem:[#allocation2 + $0x8] sm:$0xff] %vm647, 0.0
        %649 = vst [vmem:[#allocation2 + $0x10] sm:$0xff] 0.0
        %650 = vst.msk [vmem:[#allocation2 + $0x18] sm:$0xff] %vm647, 0.0
        %651 = vst [vmem:[#allocation2 + $0x20] sm:$0xff] 0.0
        %652 = vst.msk [vmem:[#allocation2 + $0x28] sm:$0xff] %vm647, 0.0
        %653 = vst [vmem:[#allocation2 + $0x30] sm:$0xff] 0.0
        %654 = vst.msk [vmem:[#allocation2 + $0x38] sm:$0xff] %vm647, 0.0
        %655 = vst [vmem:[#allocation2 + $0x40] sm:$0xff] 0.0
        %656 = vst.msk [vmem:[#allocation2 + $0x48] sm:$0xff] %vm647, 0.0
        %657 = vst [vmem:[#allocation2 + $0x50] sm:$0x3] 0.0
        %vm658 = vcmask 680960
        %659 = vst.msk [vmem:[#allocation2 + $0x58] sm:$0x3] %vm658, 0.0
        %vm660 = vcmask 916480
        %661 = vst.msk [vmem:[#allocation3] sm:$0xff] %vm660, 0.0
        %662 = vst.msk [vmem:[#allocation3 + $0x8] sm:$0xff] %vm660, 0.0
        %vm663 = vcmask 914432
        %664 = vst.msk [vmem:[#allocation3 + $0x10] sm:$0x3f] %vm663, 0.0
        %665 = vst.msk [vmem:[#allocation4] sm:$0xff] %vm660, 0.0
        %666 = vst.msk [vmem:[#allocation4 + $0x8] sm:$0xff] %vm660, 0.0
        %667 = vst.msk [vmem:[#allocation4 + $0x10] sm:$0x3f] %vm663, 0.0
        %668 = vst.msk [vmem:[#allocation5] sm:$0xff] %vm660, 0.0
        %669 = vst.msk [vmem:[#allocation5 + $0x8] sm:$0xff] %vm660, 0.0
        %670 = vst.msk [vmem:[#allocation5 + $0x10] sm:$0x3f] %vm663, 0.0
        %v671 = vld [vmem:[%s645] sm:$0xff]
        %v672 = vld [vmem:[%s645 + $0x8] sm:$0xff]
        %v673 = vld [vmem:[%s645 + $0x10] sm:$0xff]
        %v674 = vld [vmem:[%s645 + $0x18] sm:$0xff]
        %v675 = vld [vmem:[%s645 + $0x20] sm:$0xff]
        %v676 = vld [vmem:[%s1] sm:$0xff]
        %v677 = vld [vmem:[%s1 + $0x8] sm:$0xff]
        %v678 = vld [vmem:[%s1 + $0x10] sm:$0xff]
        %v679 = vld [vmem:[%s1 + $0x18] sm:$0xff]
        %v680 = vld [vmem:[%s1 + $0x20] sm:$0xff]
        %v681 = vld [vmem:[%s1 + $0x28] sm:$0xff]
        %v682 = vld [vmem:[%s1 + $0x30] sm:$0xff]
        %v683 = vld [vmem:[%s1 + $0x38] sm:$0xff]
        %v684 = vld [vmem:[%s1 + $0x40] sm:$0xff]
        %v685 = vld [vmem:[%s1 + $0x48] sm:$0xff]
        %v686 = vld [vmem:[%s1 + $0x50] sm:$0x3]
        %v687 = vld [vmem:[%s1 + $0x58] sm:$0x3]
        %v688 = vld [vmem:[%s645 + $0x1] sm:$0xff]
        %v689 = vld [vmem:[%s645 + $0x9] sm:$0xff]
        %v690 = vld [vmem:[%s645 + $0x11] sm:$0xff]
        %v691 = vld [vmem:[%s645 + $0x19] sm:$0xff]
        %v692 = vld [vmem:[%s645 + $0x21] sm:$0xff]
        %s693 = scalar_lea.vmem %s1, 96
        %v694 = vld [vmem:[%s693] sm:$0xff]
        %v695 = vld [vmem:[%s693 + $0x8] sm:$0xff]
        %v696 = vld [vmem:[%s693 + $0x10] sm:$0xff]
        %v697 = vld [vmem:[%s693 + $0x18] sm:$0xff]
        %v698 = vld [vmem:[%s693 + $0x20] sm:$0xff]
        %v699 = vld [vmem:[%s693 + $0x28] sm:$0xff]
        %v700 = vld [vmem:[%s693 + $0x30] sm:$0xff]
        %v701 = vld [vmem:[%s693 + $0x38] sm:$0xff]
        %v702 = vld [vmem:[%s693 + $0x40] sm:$0xff]
        %v703 = vld [vmem:[%s693 + $0x48] sm:$0xff]
        %v704 = vld [vmem:[%s693 + $0x50] sm:$0x3]
        %v705 = vld [vmem:[%s693 + $0x58] sm:$0x3]
        %vm706 = vcmask 343040
        %v708 = vsel %vm706, %v688, 0
        %v711 = vsel %vm706, %v689, 0
        %v714 = vsel %vm706, %v690, 0
        %v717 = vsel %vm706, %v691, 0
        %v720 = vsel %vm706, %v692, 0
        %vm722 = vcmask 1041408
        %v724 = vsel %vm722, %v704, 0
        %v727 = vsel %vm722, %v705, 0
        %729 = vmatprep.subr.mxu0 0.0
        %730 = vmatpush1.msra.mxu0 0.0
        %731 = vmatprep.subr.mxu0 0.0
        %732 = vmatpush1.msra.mxu0 0.0
        %733 = vmatprep.subr.mxu0 0.0
        %734 = vmatpush1.msra.mxu0 0.0
        %735 = vmatprep.subr.mxu0 0.0
        %736 = vmatpush1.msra.mxu0 0.0
        %737 = vmatprep.subr.mxu0 0.0
        %738 = vmatpush1.msra.mxu0 0.0
        %739 = vmatprep.subr.mxu0 0.0
        %740 = vmatpush1.msra.mxu0 0.0
        %741 = vmatprep.subr.mxu0 0.0
        %742 = vmatpush1.msra.mxu0 0.0
        %743 = vmatprep.subr.mxu0 0.0
        %744 = vmatpush1.msra.mxu0 0.0
        %745 = vmatprep.subr.mxu0 0.0
        %746 = vmatpush1.msra.mxu0 0.0
        %747 = vmatprep.subr.mxu0 0.0
        %748 = vmatpush1.msra.mxu0 0.0
        %749 = vmatprep.subr.mxu0 %v727
        %750 = vmatpush1.msra.mxu0 %v724
        %751 = vmatprep.subr.mxu0 %v703
        %752 = vmatpush1.msra.mxu0 %v702
        %753 = vmatprep.subr.mxu0 %v701
        %754 = vmatpush1.msra.mxu0 %v700
        %755 = vmatprep.subr.mxu0 %v699
        %756 = vmatpush1.msra.mxu0 %v698
        %757 = vmatprep.subr.mxu0 %v697
        %758 = vmatpush1.msra.mxu0 %v696
        %759 = vmatprep.subr.mxu0 %v695
        %760 = vmatpush1.msra.mxu0 %v694
        %761 = vmatprep.subr.mxu0 0.0
        %762 = vmatpush2.msra.mxu0 0.0
        %763 = vmatprep.subr.mxu0 0.0
        %764 = vmatpush2.msra.mxu0 0.0
        %765 = vmatprep.subr.mxu0 0.0
        %766 = vmatpush2.msra.mxu0 0.0
        %767 = vmatprep.subr.mxu0 0.0
        %768 = vmatpush2.msra.mxu0 0.0
        %769 = vmatprep.subr.mxu0 0.0
        %770 = vmatpush2.msra.mxu0 0.0
        %771 = vmatprep.subr.mxu0 0.0
        %772 = vmatpush2.msra.mxu0 0.0
        %773 = vmatprep.subr.mxu0 0.0
        %774 = vmatpush2.msra.mxu0 0.0
        %775 = vmatprep.subr.mxu0 0.0
        %776 = vmatpush2.msra.mxu0 0.0
        %777 = vmatprep.subr.mxu0 0.0
        %778 = vmatpush2.msra.mxu0 0.0
        %779 = vmatprep.subr.mxu0 0.0
        %780 = vmatpush2.msra.mxu0 0.0
        %781 = vmatprep.subr.mxu0 0.0
        %782 = vmatpush2.msra.mxu0 0.0
        %783 = vmatprep.subr.mxu0 0.0
        %784 = vmatpush2.msra.mxu0 0.0
        %785 = vmatprep.subr.mxu0 0.0
        %786 = vmatpush2.msra.mxu0 0.0
        %787 = vmatprep.subr.mxu0 0.0
        %788 = vmatpush2.msra.mxu0 0.0
        %789 = vmatprep.subr.mxu0 0.0
        %790 = vmatpush2.msra.mxu0 0.0
        %791 = vmatprep.subr.mxu0 0.0
        %792 = vmatpush2.msra.mxu0 0.0
        %793 = vmatprep.mubr.f32.mxu0 0.0
        %794 = vmatmul.mubr.f32.gmra.mxu0 %v708
        %v795 = vpop.f32.mrf.mxu0
        %v796 = vadd.f32 0.0, %v795
        %v797 = vpop.f32.mrf.mxu0
        %v798 = vadd.f32 0.0, %v797
        %799 = vmatprep.mubr.f32.mxu0 0.0
        %800 = vmatmul.mubr.f32.gmra.mxu0 %v711
        %v801 = vpop.f32.mrf.mxu0
        %v802 = vadd.f32 0.0, %v801
        %v803 = vpop.f32.mrf.mxu0
        %v804 = vadd.f32 0.0, %v803
        %805 = vmatprep.mubr.f32.mxu0 0.0
        %806 = vmatmul.mubr.f32.gmra.mxu0 %v714
        %v807 = vpop.f32.mrf.mxu0
        %v808 = vadd.f32 0.0, %v807
        %v809 = vpop.f32.mrf.mxu0
        %v810 = vadd.f32 0.0, %v809
        %811 = vmatprep.mubr.f32.mxu0 0.0
        %812 = vmatmul.mubr.f32.gmra.mxu0 %v717
        %v813 = vpop.f32.mrf.mxu0
        %v814 = vadd.f32 0.0, %v813
        %v815 = vpop.f32.mrf.mxu0
        %v816 = vadd.f32 0.0, %v815
        %817 = vmatprep.mubr.f32.mxu0 0.0
        %818 = vmatmul.mubr.f32.gmra.mxu0 %v720
        %v819 = vpop.f32.mrf.mxu0
        %v820 = vadd.f32 0.0, %v819
        %v821 = vpop.f32.mrf.mxu0
        %v822 = vadd.f32 0.0, %v821
        %823 = vdwg.mxu0
        %v825 = vsel %vm706, %v671, 0
        %v828 = vsel %vm706, %v672, 0
        %v831 = vsel %vm706, %v673, 0
        %v834 = vsel %vm706, %v674, 0
        %v837 = vsel %vm706, %v675, 0
        %v840 = vsel %vm722, %v686, 0
        %v843 = vsel %vm722, %v687, 0
        %845 = vmatprep.subr.mxu0 0.0
        %846 = vmatpush1.msra.mxu0 0.0
        %847 = vmatprep.subr.mxu0 0.0
        %848 = vmatpush1.msra.mxu0 0.0
        %849 = vmatprep.subr.mxu0 0.0
        %850 = vmatpush1.msra.mxu0 0.0
        %851 = vmatprep.subr.mxu0 0.0
        %852 = vmatpush1.msra.mxu0 0.0
        %853 = vmatprep.subr.mxu0 0.0
        %854 = vmatpush1.msra.mxu0 0.0
        %855 = vmatprep.subr.mxu0 0.0
        %856 = vmatpush1.msra.mxu0 0.0
        %857 = vmatprep.subr.mxu0 0.0
        %858 = vmatpush1.msra.mxu0 0.0
        %859 = vmatprep.subr.mxu0 0.0
        %860 = vmatpush1.msra.mxu0 0.0
        %861 = vmatprep.subr.mxu0 0.0
        %862 = vmatpush1.msra.mxu0 0.0
        %863 = vmatprep.subr.mxu0 0.0
        %864 = vmatpush1.msra.mxu0 0.0
        %865 = vmatprep.subr.mxu0 %v843
        %866 = vmatpush1.msra.mxu0 %v840
        %867 = vmatprep.subr.mxu0 %v685
        %868 = vmatpush1.msra.mxu0 %v684
        %869 = vmatprep.subr.mxu0 %v683
        %870 = vmatpush1.msra.mxu0 %v682
        %871 = vmatprep.subr.mxu0 %v681
        %872 = vmatpush1.msra.mxu0 %v680
        %873 = vmatprep.subr.mxu0 %v679
        %874 = vmatpush1.msra.mxu0 %v678
        %875 = vmatprep.subr.mxu0 %v677
        %876 = vmatpush1.msra.mxu0 %v676
        %877 = vmatprep.subr.mxu0 0.0
        %878 = vmatpush2.msra.mxu0 0.0
        %879 = vmatprep.subr.mxu0 0.0
        %880 = vmatpush2.msra.mxu0 0.0
        %881 = vmatprep.subr.mxu0 0.0
        %882 = vmatpush2.msra.mxu0 0.0
        %883 = vmatprep.subr.mxu0 0.0
        %884 = vmatpush2.msra.mxu0 0.0
        %885 = vmatprep.subr.mxu0 0.0
        %886 = vmatpush2.msra.mxu0 0.0
        %887 = vmatprep.subr.mxu0 0.0
        %888 = vmatpush2.msra.mxu0 0.0
        %889 = vmatprep.subr.mxu0 0.0
        %890 = vmatpush2.msra.mxu0 0.0
        %891 = vmatprep.subr.mxu0 0.0
        %892 = vmatpush2.msra.mxu0 0.0
        %893 = vmatprep.subr.mxu0 0.0
        %894 = vmatpush2.msra.mxu0 0.0
        %895 = vmatprep.subr.mxu0 0.0
        %896 = vmatpush2.msra.mxu0 0.0
        %897 = vmatprep.subr.mxu0 0.0
        %898 = vmatpush2.msra.mxu0 0.0
        %899 = vmatprep.subr.mxu0 0.0
        %900 = vmatpush2.msra.mxu0 0.0
        %901 = vmatprep.subr.mxu0 0.0
        %902 = vmatpush2.msra.mxu0 0.0
        %903 = vmatprep.subr.mxu0 0.0
        %904 = vmatpush2.msra.mxu0 0.0
        %905 = vmatprep.subr.mxu0 0.0
        %906 = vmatpush2.msra.mxu0 0.0
        %907 = vmatprep.subr.mxu0 0.0
        %908 = vmatpush2.msra.mxu0 0.0
        %909 = vmatprep.mubr.f32.mxu0 0.0
        %910 = vmatmul.mubr.f32.gmra.mxu0 %v825
        %v911 = vpop.f32.mrf.mxu0
        %v912 = vadd.f32 %v796, %v911
        %v913 = vpop.f32.mrf.mxu0
        %v914 = vadd.f32 %v798, %v913
        %915 = vmatprep.mubr.f32.mxu0 0.0
        %916 = vmatmul.mubr.f32.gmra.mxu0 %v828
        %v917 = vpop.f32.mrf.mxu0
        %v918 = vadd.f32 %v802, %v917
        %v919 = vpop.f32.mrf.mxu0
        %v920 = vadd.f32 %v804, %v919
        %921 = vmatprep.mubr.f32.mxu0 0.0
        %922 = vmatmul.mubr.f32.gmra.mxu0 %v831
        %v923 = vpop.f32.mrf.mxu0
        %v924 = vadd.f32 %v808, %v923
        %v925 = vpop.f32.mrf.mxu0
        %v926 = vadd.f32 %v810, %v925
        %927 = vmatprep.mubr.f32.mxu0 0.0
        %928 = vmatmul.mubr.f32.gmra.mxu0 %v834
        %v929 = vpop.f32.mrf.mxu0
        %v930 = vadd.f32 %v814, %v929
        %v931 = vpop.f32.mrf.mxu0
        %v932 = vadd.f32 %v816, %v931
        %933 = vmatprep.mubr.f32.mxu0 0.0
        %934 = vmatmul.mubr.f32.gmra.mxu0 %v837
        %v935 = vpop.f32.mrf.mxu0
        %v936 = vadd.f32 %v820, %v935
        %v937 = vpop.f32.mrf.mxu0
        %v938 = vadd.f32 %v822, %v937
        %939 = vdwg.mxu0
        %v940 = vld [vmem:[%s645 + $0x2] sm:$0xff]
        %v941 = vld [vmem:[%s645 + $0xa] sm:$0xff]
        %v942 = vld [vmem:[%s645 + $0x12] sm:$0xff]
        %v943 = vld [vmem:[%s645 + $0x1a] sm:$0xff]
        %v944 = vld [vmem:[%s645 + $0x22] sm:$0xff]
        %s945 = scalar_lea.vmem %s1, 192
        %v946 = vld [vmem:[%s945] sm:$0xff]
        %v947 = vld [vmem:[%s945 + $0x8] sm:$0xff]
        %v948 = vld [vmem:[%s945 + $0x10] sm:$0xff]
        %v949 = vld [vmem:[%s945 + $0x18] sm:$0xff]
        %v950 = vld [vmem:[%s945 + $0x20] sm:$0xff]
        %v951 = vld [vmem:[%s945 + $0x28] sm:$0xff]
        %v952 = vld [vmem:[%s945 + $0x30] sm:$0xff]
        %v953 = vld [vmem:[%s945 + $0x38] sm:$0xff]
        %v954 = vld [vmem:[%s945 + $0x40] sm:$0xff]
        %v955 = vld [vmem:[%s945 + $0x48] sm:$0xff]
        %v956 = vld [vmem:[%s945 + $0x50] sm:$0x3]
        %v957 = vld [vmem:[%s945 + $0x58] sm:$0x3]
        %v959 = vsel %vm706, %v940, 0
        %v962 = vsel %vm706, %v941, 0
        %v965 = vsel %vm706, %v942, 0
        %v968 = vsel %vm706, %v943, 0
        %v971 = vsel %vm706, %v944, 0
        %v974 = vsel %vm722, %v956, 0
        %v977 = vsel %vm722, %v957, 0
        %979 = vmatprep.subr.mxu0 0.0
        %980 = vmatpush1.msra.mxu0 0.0
        %981 = vmatprep.subr.mxu0 0.0
        %982 = vmatpush1.msra.mxu0 0.0
        %983 = vmatprep.subr.mxu0 0.0
        %984 = vmatpush1.msra.mxu0 0.0
        %985 = vmatprep.subr.mxu0 0.0
        %986 = vmatpush1.msra.mxu0 0.0
        %987 = vmatprep.subr.mxu0 0.0
        %988 = vmatpush1.msra.mxu0 0.0
        %989 = vmatprep.subr.mxu0 0.0
        %990 = vmatpush1.msra.mxu0 0.0
        %991 = vmatprep.subr.mxu0 0.0
        %992 = vmatpush1.msra.mxu0 0.0
        %993 = vmatprep.subr.mxu0 0.0
        %994 = vmatpush1.msra.mxu0 0.0
        %995 = vmatprep.subr.mxu0 0.0
        %996 = vmatpush1.msra.mxu0 0.0
        %997 = vmatprep.subr.mxu0 0.0
        %998 = vmatpush1.msra.mxu0 0.0
        %999 = vmatprep.subr.mxu0 %v977
        %1000 = vmatpush1.msra.mxu0 %v974
        %1001 = vmatprep.subr.mxu0 %v955
        %1002 = vmatpush1.msra.mxu0 %v954
        %1003 = vmatprep.subr.mxu0 %v953
        %1004 = vmatpush1.msra.mxu0 %v952
        %1005 = vmatprep.subr.mxu0 %v951
        %1006 = vmatpush1.msra.mxu0 %v950
        %1007 = vmatprep.subr.mxu0 %v949
        %1008 = vmatpush1.msra.mxu0 %v948
        %1009 = vmatprep.subr.mxu0 %v947
        %1010 = vmatpush1.msra.mxu0 %v946
        %1011 = vmatprep.subr.mxu0 0.0
        %1012 = vmatpush2.msra.mxu0 0.0
        %1013 = vmatprep.subr.mxu0 0.0
        %1014 = vmatpush2.msra.mxu0 0.0
        %1015 = vmatprep.subr.mxu0 0.0
        %1016 = vmatpush2.msra.mxu0 0.0
        %1017 = vmatprep.subr.mxu0 0.0
        %1018 = vmatpush2.msra.mxu0 0.0
        %1019 = vmatprep.subr.mxu0 0.0
        %1020 = vmatpush2.msra.mxu0 0.0
        %1021 = vmatprep.subr.mxu0 0.0
        %1022 = vmatpush2.msra.mxu0 0.0
        %1023 = vmatprep.subr.mxu0 0.0
        %1024 = vmatpush2.msra.mxu0 0.0
        %1025 = vmatprep.subr.mxu0 0.0
        %1026 = vmatpush2.msra.mxu0 0.0
        %1027 = vmatprep.subr.mxu0 0.0
        %1028 = vmatpush2.msra.mxu0 0.0
        %1029 = vmatprep.subr.mxu0 0.0
        %1030 = vmatpush2.msra.mxu0 0.0
        %1031 = vmatprep.subr.mxu0 0.0
        %1032 = vmatpush2.msra.mxu0 0.0
        %1033 = vmatprep.subr.mxu0 0.0
        %1034 = vmatpush2.msra.mxu0 0.0
        %1035 = vmatprep.subr.mxu0 0.0
        %1036 = vmatpush2.msra.mxu0 0.0
        %1037 = vmatprep.subr.mxu0 0.0
        %1038 = vmatpush2.msra.mxu0 0.0
        %1039 = vmatprep.subr.mxu0 0.0
        %1040 = vmatpush2.msra.mxu0 0.0
        %1041 = vmatprep.subr.mxu0 0.0
        %1042 = vmatpush2.msra.mxu0 0.0
        %1043 = vmatprep.mubr.f32.mxu0 0.0
        %1044 = vmatmul.mubr.f32.gmra.mxu0 %v959
        %v1045 = vpop.f32.mrf.mxu0
        %v1046 = vadd.f32 0.0, %v1045
        %v1047 = vpop.f32.mrf.mxu0
        %v1048 = vadd.f32 0.0, %v1047
        %1049 = vmatprep.mubr.f32.mxu0 0.0
        %1050 = vmatmul.mubr.f32.gmra.mxu0 %v962
        %v1051 = vpop.f32.mrf.mxu0
        %v1052 = vadd.f32 0.0, %v1051
        %v1053 = vpop.f32.mrf.mxu0
        %v1054 = vadd.f32 0.0, %v1053
        %1055 = vmatprep.mubr.f32.mxu0 0.0
        %1056 = vmatmul.mubr.f32.gmra.mxu0 %v965
        %v1057 = vpop.f32.mrf.mxu0
        %v1058 = vadd.f32 0.0, %v1057
        %v1059 = vpop.f32.mrf.mxu0
        %v1060 = vadd.f32 0.0, %v1059
        %1061 = vmatprep.mubr.f32.mxu0 0.0
        %1062 = vmatmul.mubr.f32.gmra.mxu0 %v968
        %v1063 = vpop.f32.mrf.mxu0
        %v1064 = vadd.f32 0.0, %v1063
        %v1065 = vpop.f32.mrf.mxu0
        %v1066 = vadd.f32 0.0, %v1065
        %1067 = vmatprep.mubr.f32.mxu0 0.0
        %1068 = vmatmul.mubr.f32.gmra.mxu0 %v971
        %v1069 = vpop.f32.mrf.mxu0
        %v1070 = vadd.f32 0.0, %v1069
        %v1071 = vpop.f32.mrf.mxu0
        %v1072 = vadd.f32 0.0, %v1071
        %1073 = vdwg.mxu0
        %v1074 = vadd.f32 %v912, %v1046
        %v1075 = vadd.f32 %v914, %v1048
        %v1076 = vadd.f32 %v918, %v1052
        %v1077 = vadd.f32 %v920, %v1054
        %v1078 = vadd.f32 %v924, %v1058
        %v1079 = vadd.f32 %v926, %v1060
        %v1080 = vadd.f32 %v930, %v1064
        %v1081 = vadd.f32 %v932, %v1066
        %v1082 = vadd.f32 %v936, %v1070
        %v1083 = vadd.f32 %v938, %v1072
        %v1084 = vld [vmem:[%s2] sm:$0x3]
        %v1086 = vlaneseq
        %v1087 = vshrl.u32 %v1086, 7
        %v1088 = vsub.s32 0, %v1087
        %v1089 = vrot.slane %v1084, %v1088
        %v1090 = vlaneseq
        %v1091 = vshrl.u32 %v1090, 7
        %v1092 = vsub.s32 1, %v1091
        %v1093 = vrot.slane %v1084, %v1092
        %v1096 = vadd.f32 %v1074, %v1089
        %v1097 = vadd.f32 %v1075, %v1093
        %v1098 = vadd.f32 %v1076, %v1089
        %v1099 = vadd.f32 %v1077, %v1093
        %v1100 = vadd.f32 %v1078, %v1089
        %v1101 = vadd.f32 %v1079, %v1093
        %v1102 = vadd.f32 %v1080, %v1089
        %v1103 = vadd.f32 %v1081, %v1093
        %v1104 = vadd.f32 %v1082, %v1089
        %v1105 = vadd.f32 %v1083, %v1093
        %s1106 = sld [smem:[#allocation16]]
        %vm1107 = vcmp.ge.f32.partialorder %v1096, 0.0
        %vm1108 = vcmp.ge.f32.partialorder %v1097, 0.0
        %vm1109 = vcmp.ge.f32.partialorder %v1098, 0.0
        %vm1110 = vcmp.ge.f32.partialorder %v1099, 0.0
        %vm1111 = vcmp.ge.f32.partialorder %v1100, 0.0
        %vm1112 = vcmp.ge.f32.partialorder %v1101, 0.0
        %vm1113 = vcmp.ge.f32.partialorder %v1102, 0.0
        %vm1114 = vcmp.ge.f32.partialorder %v1103, 0.0
        %vm1115 = vcmp.ge.f32.partialorder %v1104, 0.0
        %vm1116 = vcmp.ge.f32.partialorder %v1105, 0.0
        %v1117 = vstv %s1106
        %v1118 = vmul.f32 %v1117, %v1096
        %v1119 = vmul.f32 %v1117, %v1097
        %v1120 = vmul.f32 %v1117, %v1098
        %v1121 = vmul.f32 %v1117, %v1099
        %v1122 = vmul.f32 %v1117, %v1100
        %v1123 = vmul.f32 %v1117, %v1101
        %v1124 = vmul.f32 %v1117, %v1102
        %v1125 = vmul.f32 %v1117, %v1103
        %v1126 = vmul.f32 %v1117, %v1104
        %v1127 = vmul.f32 %v1117, %v1105
        %v1128 = vsel %vm1107, %v1096, %v1118
        %v1129 = vsel %vm1108, %v1097, %v1119
        %v1130 = vsel %vm1109, %v1098, %v1120
        %v1131 = vsel %vm1110, %v1099, %v1121
        %v1132 = vsel %vm1111, %v1100, %v1122
        %v1133 = vsel %vm1112, %v1101, %v1123
        %v1134 = vsel %vm1113, %v1102, %v1124
        %v1135 = vsel %vm1114, %v1103, %v1125
        %v1136 = vsel %vm1115, %v1104, %v1126
        %v1137 = vsel %vm1116, %v1105, %v1127
        %vm1148 = vcmask 1040384
        %v1149 = vrot.slane %v1128, 7
        %v1150 = vrot.slane %v1129, 7
        %v1151 = vrot.slane %v1130, 7
        %v1152 = vsel %vm1148, %v1149, %v1151
        %v1153 = vrot.slane %v1131, 7
        %v1154 = vsel %vm1148, %v1150, %v1153
        %v1155 = vrot.slane %v1132, 7
        %v1156 = vsel %vm1148, %v1151, %v1155
        %v1157 = vrot.slane %v1133, 7
        %v1158 = vsel %vm1148, %v1153, %v1157
        %v1159 = vrot.slane %v1134, 7
        %v1160 = vsel %vm1148, %v1155, %v1159
        %v1161 = vrot.slane %v1135, 7
        %v1162 = vsel %vm1148, %v1157, %v1161
        %v1163 = vrot.slane %v1136, 7
        %v1164 = vsel %vm1148, %v1159, %v1163
        %v1165 = vrot.slane %v1137, 7
        %v1166 = vsel %vm1148, %v1161, %v1165
        %1179 = vst [vmem:[#allocation2] sm:$0xfe] %v1149
        %vm1180 = vcmask 687105
        %1181 = vst.msk [vmem:[#allocation2 + $0x8] sm:$0xfe] %vm1180, %v1150
        %1182 = vst [vmem:[#allocation2 + $0x10] sm:$0xff] %v1152
        %1183 = vst.msk [vmem:[#allocation2 + $0x18] sm:$0xff] %vm647, %v1154
        %1184 = vst [vmem:[#allocation2 + $0x20] sm:$0xff] %v1156
        %1185 = vst.msk [vmem:[#allocation2 + $0x28] sm:$0xff] %vm647, %v1158
        %1186 = vst [vmem:[#allocation2 + $0x30] sm:$0xff] %v1160
        %1187 = vst.msk [vmem:[#allocation2 + $0x38] sm:$0xff] %vm647, %v1162
        %1188 = vst [vmem:[#allocation2 + $0x40] sm:$0xff] %v1164
        %1189 = vst.msk [vmem:[#allocation2 + $0x48] sm:$0xff] %vm647, %v1166
        %1190 = vst [vmem:[#allocation2 + $0x50] sm:$0x1] %v1163
        %vm1191 = vcmask 679936
        %1192 = vst.msk [vmem:[#allocation2 + $0x58] sm:$0x1] %vm1191, %v1165
        %v1193 = vld [vmem:[#allocation2] sm:$0xff]
        %v1194 = vld [vmem:[#allocation2 + $0x8] sm:$0xff]
        %v1195 = vld [vmem:[#allocation2 + $0x10] sm:$0xff]
        %v1196 = vld [vmem:[#allocation2 + $0x18] sm:$0xff]
        %v1197 = vld [vmem:[#allocation2 + $0x20] sm:$0xff]
        %v1198 = vld [vmem:[#allocation2 + $0x28] sm:$0xff]
        %v1199 = vld [vmem:[#allocation2 + $0x30] sm:$0xff]
        %v1200 = vld [vmem:[#allocation2 + $0x38] sm:$0xff]
        %v1201 = vld [vmem:[#allocation2 + $0x40] sm:$0xff]
        %v1202 = vld [vmem:[#allocation2 + $0x48] sm:$0xff]
        %v1203 = vld [vmem:[%s3] sm:$0xff]
        %v1204 = vld [vmem:[%s3 + $0x8] sm:$0xff]
        %v1205 = vld [vmem:[%s3 + $0x10] sm:$0xff]
        %v1206 = vld [vmem:[%s3 + $0x18] sm:$0xff]
        %v1207 = vld [vmem:[%s3 + $0x20] sm:$0xff]
        %v1208 = vld [vmem:[%s3 + $0x28] sm:$0xff]
        %v1209 = vld [vmem:[%s3 + $0x30] sm:$0xff]
        %v1210 = vld [vmem:[%s3 + $0x38] sm:$0xff]
        %v1211 = vld [vmem:[%s3 + $0x40] sm:$0xff]
        %v1212 = vld [vmem:[%s3 + $0x48] sm:$0xff]
        %v1213 = vld [vmem:[%s3 + $0x50] sm:$0xff]
        %v1214 = vld [vmem:[%s3 + $0x58] sm:$0xff]
        %v1215 = vld [vmem:[%s3 + $0x60] sm:$0xff]
        %v1216 = vld [vmem:[%s3 + $0x68] sm:$0xff]
        %v1217 = vld [vmem:[%s3 + $0x70] sm:$0xff]
        %v1218 = vld [vmem:[%s3 + $0x78] sm:$0xff]
        %v1219 = vld [vmem:[%s3 + $0x80] sm:$0xff]
        %v1220 = vld [vmem:[%s3 + $0x88] sm:$0xff]
        %v1221 = vld [vmem:[%s3 + $0x90] sm:$0xff]
        %v1222 = vld [vmem:[%s3 + $0x98] sm:$0xff]
        %v1223 = vld [vmem:[%s3 + $0xa0] sm:$0xff]
        %v1224 = vld [vmem:[%s3 + $0xa8] sm:$0xff]
        %v1225 = vld [vmem:[%s3 + $0xb0] sm:$0xff]
        %v1226 = vld [vmem:[%s3 + $0xb8] sm:$0xff]
        %v1227 = vld [vmem:[%s3 + $0xc0] sm:$0xff]
        %v1228 = vld [vmem:[%s3 + $0xc8] sm:$0xff]
        %v1229 = vld [vmem:[%s3 + $0xd0] sm:$0xff]
        %v1230 = vld [vmem:[%s3 + $0xd8] sm:$0xff]
        %v1231 = vld [vmem:[%s3 + $0xe0] sm:$0xff]
        %v1232 = vld [vmem:[%s3 + $0xe8] sm:$0xff]
        %v1233 = vld [vmem:[%s3 + $0xf0] sm:$0xff]
        %v1234 = vld [vmem:[%s3 + $0xf8] sm:$0xff]
        %v1235 = vld [vmem:[%s3 + $0x100] sm:$0xff]
        %v1236 = vld [vmem:[%s3 + $0x108] sm:$0xff]
        %v1237 = vld [vmem:[%s3 + $0x110] sm:$0xff]
        %v1238 = vld [vmem:[%s3 + $0x118] sm:$0xff]
        %v1239 = vld [vmem:[%s3 + $0x120] sm:$0xff]
        %v1240 = vld [vmem:[%s3 + $0x128] sm:$0xff]
        %v1241 = vld [vmem:[%s3 + $0x130] sm:$0xff]
        %v1242 = vld [vmem:[%s3 + $0x138] sm:$0xff]
        %v1243 = vld [vmem:[%s3 + $0x140] sm:$0xff]
        %v1244 = vld [vmem:[%s3 + $0x148] sm:$0xff]
        %v1245 = vld [vmem:[%s3 + $0x150] sm:$0xff]
        %v1246 = vld [vmem:[%s3 + $0x158] sm:$0xff]
        %v1247 = vld [vmem:[%s3 + $0x160] sm:$0xff]
        %v1248 = vld [vmem:[%s3 + $0x168] sm:$0xff]
        %v1249 = vld [vmem:[%s3 + $0x170] sm:$0xff]
        %v1250 = vld [vmem:[%s3 + $0x178] sm:$0xff]
        %v1251 = vld [vmem:[%s3 + $0x180] sm:$0xff]
        %v1252 = vld [vmem:[%s3 + $0x188] sm:$0xff]
        %v1253 = vld [vmem:[%s3 + $0x190] sm:$0xff]
        %v1254 = vld [vmem:[%s3 + $0x198] sm:$0xff]
        %v1255 = vld [vmem:[%s3 + $0x1a0] sm:$0xf]
        %v1256 = vld [vmem:[%s3 + $0x1a8] sm:$0xf]
        %v1257 = vld [vmem:[#allocation2] sm:$0xfe]
        %v1258 = vld [vmem:[#allocation2 + $0x8] sm:$0xfe]
        %v1259 = vld [vmem:[#allocation2 + $0x50] sm:$0x1]
        %v1260 = vld [vmem:[#allocation2 + $0x58] sm:$0x1]
        %s1261 = scalar_lea.vmem %s3, 432
        %v1262 = vld [vmem:[%s1261] sm:$0xff]
        %v1263 = vld [vmem:[%s1261 + $0x8] sm:$0xff]
        %v1264 = vld [vmem:[%s1261 + $0x10] sm:$0xff]
        %v1265 = vld [vmem:[%s1261 + $0x18] sm:$0xff]
        %v1266 = vld [vmem:[%s1261 + $0x20] sm:$0xff]
        %v1267 = vld [vmem:[%s1261 + $0x28] sm:$0xff]
        %v1268 = vld [vmem:[%s1261 + $0x30] sm:$0xff]
        %v1269 = vld [vmem:[%s1261 + $0x38] sm:$0xff]
        %v1270 = vld [vmem:[%s1261 + $0x40] sm:$0xff]
        %v1271 = vld [vmem:[%s1261 + $0x48] sm:$0xff]
        %v1272 = vld [vmem:[%s1261 + $0x50] sm:$0xff]
        %v1273 = vld [vmem:[%s1261 + $0x58] sm:$0xff]
        %v1274 = vld [vmem:[%s1261 + $0x60] sm:$0xff]
        %v1275 = vld [vmem:[%s1261 + $0x68] sm:$0xff]
        %v1276 = vld [vmem:[%s1261 + $0x70] sm:$0xff]
        %v1277 = vld [vmem:[%s1261 + $0x78] sm:$0xff]
        %v1278 = vld [vmem:[%s1261 + $0x80] sm:$0xff]
        %v1279 = vld [vmem:[%s1261 + $0x88] sm:$0xff]
        %v1280 = vld [vmem:[%s1261 + $0x90] sm:$0xff]
        %v1281 = vld [vmem:[%s1261 + $0x98] sm:$0xff]
        %v1282 = vld [vmem:[%s1261 + $0xa0] sm:$0xff]
        %v1283 = vld [vmem:[%s1261 + $0xa8] sm:$0xff]
        %v1284 = vld [vmem:[%s1261 + $0xb0] sm:$0xff]
        %v1285 = vld [vmem:[%s1261 + $0xb8] sm:$0xff]
        %v1286 = vld [vmem:[%s1261 + $0xc0] sm:$0xff]
        %v1287 = vld [vmem:[%s1261 + $0xc8] sm:$0xff]
        %v1288 = vld [vmem:[%s1261 + $0xd0] sm:$0xff]
        %v1289 = vld [vmem:[%s1261 + $0xd8] sm:$0xff]
        %v1290 = vld [vmem:[%s1261 + $0xe0] sm:$0xff]
        %v1291 = vld [vmem:[%s1261 + $0xe8] sm:$0xff]
        %v1292 = vld [vmem:[%s1261 + $0xf0] sm:$0xff]
        %v1293 = vld [vmem:[%s1261 + $0xf8] sm:$0xff]
        %v1294 = vld [vmem:[%s1261 + $0x100] sm:$0xff]
        %v1295 = vld [vmem:[%s1261 + $0x108] sm:$0xff]
        %v1296 = vld [vmem:[%s1261 + $0x110] sm:$0xff]
        %v1297 = vld [vmem:[%s1261 + $0x118] sm:$0xff]
        %v1298 = vld [vmem:[%s1261 + $0x120] sm:$0xff]
        %v1299 = vld [vmem:[%s1261 + $0x128] sm:$0xff]
        %v1300 = vld [vmem:[%s1261 + $0x130] sm:$0xff]
        %v1301 = vld [vmem:[%s1261 + $0x138] sm:$0xff]
        %v1302 = vld [vmem:[%s1261 + $0x140] sm:$0xff]
        %v1303 = vld [vmem:[%s1261 + $0x148] sm:$0xff]
        %v1304 = vld [vmem:[%s1261 + $0x150] sm:$0xff]
        %v1305 = vld [vmem:[%s1261 + $0x158] sm:$0xff]
        %v1306 = vld [vmem:[%s1261 + $0x160] sm:$0xff]
        %v1307 = vld [vmem:[%s1261 + $0x168] sm:$0xff]
        %v1308 = vld [vmem:[%s1261 + $0x170] sm:$0xff]
        %v1309 = vld [vmem:[%s1261 + $0x178] sm:$0xff]
        %v1310 = vld [vmem:[%s1261 + $0x180] sm:$0xff]
        %v1311 = vld [vmem:[%s1261 + $0x188] sm:$0xff]
        %v1312 = vld [vmem:[%s1261 + $0x190] sm:$0xff]
        %v1313 = vld [vmem:[%s1261 + $0x198] sm:$0xff]
        %v1314 = vld [vmem:[%s1261 + $0x1a0] sm:$0xf]
        %v1315 = vld [vmem:[%s1261 + $0x1a8] sm:$0xf]
        %vm1328 = vcmask 1046528
        %v1329 = vrot.slane %v1257, 1
        %v1330 = vrot.slane %v1195, 1
        %v1331 = vsel %vm1328, %v1329, %v1330
        %v1332 = vrot.slane %v1258, 1
        %v1333 = vrot.slane %v1196, 1
        %v1334 = vsel %vm1328, %v1332, %v1333
        %v1335 = vrot.slane %v1197, 1
        %v1336 = vsel %vm1328, %v1330, %v1335
        %v1337 = vrot.slane %v1198, 1
        %v1338 = vsel %vm1328, %v1333, %v1337
        %v1339 = vrot.slane %v1199, 1
        %v1340 = vsel %vm1328, %v1335, %v1339
        %v1341 = vrot.slane %v1200, 1
        %v1342 = vsel %vm1328, %v1337, %v1341
        %v1343 = vrot.slane %v1201, 1
        %v1344 = vsel %vm1328, %v1339, %v1343
        %v1345 = vrot.slane %v1202, 1
        %v1346 = vsel %vm1328, %v1341, %v1345
        %v1347 = vrot.slane %v1259, 1
        %v1348 = vsel %vm1328, %v1343, %v1347
        %v1349 = vrot.slane %v1260, 1
        %v1350 = vsel %vm1328, %v1345, %v1349
        %v1356 = vsel %vm647, %v1334, 0
        %v1358 = vsel %vm647, %v1338, 0
        %v1360 = vsel %vm647, %v1342, 0
        %v1362 = vsel %vm647, %v1346, 0
        %v1364 = vsel %vm647, %v1350, 0
        %vm1366 = vcmask 1043456
        %v1368 = vsel %vm1366, %v1314, 0
        %v1371 = vsel %vm1366, %v1315, 0
        %1373 = vmatprep.subr.mxu0 %v1293
        %1374 = vmatpush1.msra.mxu0 %v1292
        %1375 = vmatprep.subr.mxu0 %v1291
        %1376 = vmatpush1.msra.mxu0 %v1290
        %1377 = vmatprep.subr.mxu0 %v1289
        %1378 = vmatpush1.msra.mxu0 %v1288
        %1379 = vmatprep.subr.mxu0 %v1287
        %1380 = vmatpush1.msra.mxu0 %v1286
        %1381 = vmatprep.subr.mxu0 %v1285
        %1382 = vmatpush1.msra.mxu0 %v1284
        %1383 = vmatprep.subr.mxu0 %v1283
        %1384 = vmatpush1.msra.mxu0 %v1282
        %1385 = vmatprep.subr.mxu0 %v1281
        %1386 = vmatpush1.msra.mxu0 %v1280
        %1387 = vmatprep.subr.mxu0 %v1279
        %1388 = vmatpush1.msra.mxu0 %v1278
        %1389 = vmatprep.subr.mxu0 %v1277
        %1390 = vmatpush1.msra.mxu0 %v1276
        %1391 = vmatprep.subr.mxu0 %v1275
        %1392 = vmatpush1.msra.mxu0 %v1274
        %1393 = vmatprep.subr.mxu0 %v1273
        %1394 = vmatpush1.msra.mxu0 %v1272
        %1395 = vmatprep.subr.mxu0 %v1271
        %1396 = vmatpush1.msra.mxu0 %v1270
        %1397 = vmatprep.subr.mxu0 %v1269
        %1398 = vmatpush1.msra.mxu0 %v1268
        %1399 = vmatprep.subr.mxu0 %v1267
        %1400 = vmatpush1.msra.mxu0 %v1266
        %1401 = vmatprep.subr.mxu0 %v1265
        %1402 = vmatpush1.msra.mxu0 %v1264
        %1403 = vmatprep.subr.mxu0 %v1263
        %1404 = vmatpush1.msra.mxu0 %v1262
        %1405 = vmatprep.subr.mxu0 0.0
        %1406 = vmatpush2.msra.mxu0 0.0
        %1407 = vmatprep.subr.mxu0 0.0
        %1408 = vmatpush2.msra.mxu0 0.0
        %1409 = vmatprep.subr.mxu0 0.0
        %1410 = vmatpush2.msra.mxu0 0.0
        %1411 = vmatprep.subr.mxu0 0.0
        %1412 = vmatpush2.msra.mxu0 0.0
        %1413 = vmatprep.subr.mxu0 0.0
        %1414 = vmatpush2.msra.mxu0 0.0
        %1415 = vmatprep.subr.mxu0 %v1371
        %1416 = vmatpush2.msra.mxu0 %v1368
        %1417 = vmatprep.subr.mxu0 %v1313
        %1418 = vmatpush2.msra.mxu0 %v1312
        %1419 = vmatprep.subr.mxu0 %v1311
        %1420 = vmatpush2.msra.mxu0 %v1310
        %1421 = vmatprep.subr.mxu0 %v1309
        %1422 = vmatpush2.msra.mxu0 %v1308
        %1423 = vmatprep.subr.mxu0 %v1307
        %1424 = vmatpush2.msra.mxu0 %v1306
        %1425 = vmatprep.subr.mxu0 %v1305
        %1426 = vmatpush2.msra.mxu0 %v1304
        %1427 = vmatprep.subr.mxu0 %v1303
        %1428 = vmatpush2.msra.mxu0 %v1302
        %1429 = vmatprep.subr.mxu0 %v1301
        %1430 = vmatpush2.msra.mxu0 %v1300
        %1431 = vmatprep.subr.mxu0 %v1299
        %1432 = vmatpush2.msra.mxu0 %v1298
        %1433 = vmatprep.subr.mxu0 %v1297
        %1434 = vmatpush2.msra.mxu0 %v1296
        %1435 = vmatprep.subr.mxu0 %v1295
        %1436 = vmatpush2.msra.mxu0 %v1294
        %1437 = vmatprep.mubr.f32.mxu0 %v1356
        %1438 = vmatmul.mubr.f32.gmra.mxu0 %v1331
        %v1439 = vpop.f32.mrf.mxu0
        %v1440 = vadd.f32 0.0, %v1439
        %v1441 = vpop.f32.mrf.mxu0
        %v1442 = vadd.f32 0.0, %v1441
        %1443 = vmatprep.mubr.f32.mxu0 %v1358
        %1444 = vmatmul.mubr.f32.gmra.mxu0 %v1336
        %v1445 = vpop.f32.mrf.mxu0
        %v1446 = vadd.f32 0.0, %v1445
        %v1447 = vpop.f32.mrf.mxu0
        %v1448 = vadd.f32 0.0, %v1447
        %1449 = vmatprep.mubr.f32.mxu0 %v1360
        %1450 = vmatmul.mubr.f32.gmra.mxu0 %v1340
        %v1451 = vpop.f32.mrf.mxu0
        %v1452 = vadd.f32 0.0, %v1451
        %v1453 = vpop.f32.mrf.mxu0
        %v1454 = vadd.f32 0.0, %v1453
        %1455 = vmatprep.mubr.f32.mxu0 %v1362
        %1456 = vmatmul.mubr.f32.gmra.mxu0 %v1344
        %v1457 = vpop.f32.mrf.mxu0
        %v1458 = vadd.f32 0.0, %v1457
        %v1459 = vpop.f32.mrf.mxu0
        %v1460 = vadd.f32 0.0, %v1459
        %1461 = vmatprep.mubr.f32.mxu0 %v1364
        %1462 = vmatmul.mubr.f32.gmra.mxu0 %v1348
        %v1463 = vpop.f32.mrf.mxu0
        %v1464 = vadd.f32 0.0, %v1463
        %v1465 = vpop.f32.mrf.mxu0
        %v1466 = vadd.f32 0.0, %v1465
        %1467 = vdwg.mxu0
        %v1469 = vsel %vm647, %v1194, 0
        %v1471 = vsel %vm647, %v1196, 0
        %v1473 = vsel %vm647, %v1198, 0
        %v1475 = vsel %vm647, %v1200, 0
        %v1477 = vsel %vm647, %v1202, 0
        %v1480 = vsel %vm1366, %v1255, 0
        %v1483 = vsel %vm1366, %v1256, 0
        %1485 = vmatprep.subr.mxu0 %v1234
        %1486 = vmatpush1.msra.mxu0 %v1233
        %1487 = vmatprep.subr.mxu0 %v1232
        %1488 = vmatpush1.msra.mxu0 %v1231
        %1489 = vmatprep.subr.mxu0 %v1230
        %1490 = vmatpush1.msra.mxu0 %v1229
        %1491 = vmatprep.subr.mxu0 %v1228
        %1492 = vmatpush1.msra.mxu0 %v1227
        %1493 = vmatprep.subr.mxu0 %v1226
        %1494 = vmatpush1.msra.mxu0 %v1225
        %1495 = vmatprep.subr.mxu0 %v1224
        %1496 = vmatpush1.msra.mxu0 %v1223
        %1497 = vmatprep.subr.mxu0 %v1222
        %1498 = vmatpush1.msra.mxu0 %v1221
        %1499 = vmatprep.subr.mxu0 %v1220
        %1500 = vmatpush1.msra.mxu0 %v1219
        %1501 = vmatprep.subr.mxu0 %v1218
        %1502 = vmatpush1.msra.mxu0 %v1217
        %1503 = vmatprep.subr.mxu0 %v1216
        %1504 = vmatpush1.msra.mxu0 %v1215
        %1505 = vmatprep.subr.mxu0 %v1214
        %1506 = vmatpush1.msra.mxu0 %v1213
        %1507 = vmatprep.subr.mxu0 %v1212
        %1508 = vmatpush1.msra.mxu0 %v1211
        %1509 = vmatprep.subr.mxu0 %v1210
        %1510 = vmatpush1.msra.mxu0 %v1209
        %1511 = vmatprep.subr.mxu0 %v1208
        %1512 = vmatpush1.msra.mxu0 %v1207
        %1513 = vmatprep.subr.mxu0 %v1206
        %1514 = vmatpush1.msra.mxu0 %v1205
        %1515 = vmatprep.subr.mxu0 %v1204
        %1516 = vmatpush1.msra.mxu0 %v1203
        %1517 = vmatprep.subr.mxu0 0.0
        %1518 = vmatpush2.msra.mxu0 0.0
        %1519 = vmatprep.subr.mxu0 0.0
        %1520 = vmatpush2.msra.mxu0 0.0
        %1521 = vmatprep.subr.mxu0 0.0
        %1522 = vmatpush2.msra.mxu0 0.0
        %1523 = vmatprep.subr.mxu0 0.0
        %1524 = vmatpush2.msra.mxu0 0.0
        %1525 = vmatprep.subr.mxu0 0.0
        %1526 = vmatpush2.msra.mxu0 0.0
        %1527 = vmatprep.subr.mxu0 %v1483
        %1528 = vmatpush2.msra.mxu0 %v1480
        %1529 = vmatprep.subr.mxu0 %v1254
        %1530 = vmatpush2.msra.mxu0 %v1253
        %1531 = vmatprep.subr.mxu0 %v1252
        %1532 = vmatpush2.msra.mxu0 %v1251
        %1533 = vmatprep.subr.mxu0 %v1250
        %1534 = vmatpush2.msra.mxu0 %v1249
        %1535 = vmatprep.subr.mxu0 %v1248
        %1536 = vmatpush2.msra.mxu0 %v1247
        %1537 = vmatprep.subr.mxu0 %v1246
        %1538 = vmatpush2.msra.mxu0 %v1245
        %1539 = vmatprep.subr.mxu0 %v1244
        %1540 = vmatpush2.msra.mxu0 %v1243
        %1541 = vmatprep.subr.mxu0 %v1242
        %1542 = vmatpush2.msra.mxu0 %v1241
        %1543 = vmatprep.subr.mxu0 %v1240
        %1544 = vmatpush2.msra.mxu0 %v1239
        %1545 = vmatprep.subr.mxu0 %v1238
        %1546 = vmatpush2.msra.mxu0 %v1237
        %1547 = vmatprep.subr.mxu0 %v1236
        %1548 = vmatpush2.msra.mxu0 %v1235
        %1549 = vmatprep.mubr.f32.mxu0 %v1469
        %1550 = vmatmul.mubr.f32.gmra.mxu0 %v1193
        %v1551 = vpop.f32.mrf.mxu0
        %v1552 = vadd.f32 %v1440, %v1551
        %v1553 = vpop.f32.mrf.mxu0
        %v1554 = vadd.f32 %v1442, %v1553
        %1555 = vmatprep.mubr.f32.mxu0 %v1471
        %1556 = vmatmul.mubr.f32.gmra.mxu0 %v1195
        %v1557 = vpop.f32.mrf.mxu0
        %v1558 = vadd.f32 %v1446, %v1557
        %v1559 = vpop.f32.mrf.mxu0
        %v1560 = vadd.f32 %v1448, %v1559
        %1561 = vmatprep.mubr.f32.mxu0 %v1473
        %1562 = vmatmul.mubr.f32.gmra.mxu0 %v1197
        %v1563 = vpop.f32.mrf.mxu0
        %v1564 = vadd.f32 %v1452, %v1563
        %v1565 = vpop.f32.mrf.mxu0
        %v1566 = vadd.f32 %v1454, %v1565
        %1567 = vmatprep.mubr.f32.mxu0 %v1475
        %1568 = vmatmul.mubr.f32.gmra.mxu0 %v1199
        %v1569 = vpop.f32.mrf.mxu0
        %v1570 = vadd.f32 %v1458, %v1569
        %v1571 = vpop.f32.mrf.mxu0
        %v1572 = vadd.f32 %v1460, %v1571
        %1573 = vmatprep.mubr.f32.mxu0 %v1477
        %1574 = vmatmul.mubr.f32.gmra.mxu0 %v1201
        %v1575 = vpop.f32.mrf.mxu0
        %v1576 = vadd.f32 %v1464, %v1575
        %v1577 = vpop.f32.mrf.mxu0
        %v1578 = vadd.f32 %v1466, %v1577
        %1579 = vdwg.mxu0
        %v1580 = vld [vmem:[#allocation2] sm:$0xfc]
        %v1581 = vld [vmem:[#allocation2 + $0x8] sm:$0xfc]
        %v1582 = vld [vmem:[#allocation2 + $0x50] sm:$0x3]
        %v1583 = vld [vmem:[#allocation2 + $0x58] sm:$0x3]
        %s1584 = scalar_lea.vmem %s3, 864
        %v1585 = vld [vmem:[%s1584] sm:$0xff]
        %v1586 = vld [vmem:[%s1584 + $0x8] sm:$0xff]
        %v1587 = vld [vmem:[%s1584 + $0x10] sm:$0xff]
        %v1588 = vld [vmem:[%s1584 + $0x18] sm:$0xff]
        %v1589 = vld [vmem:[%s1584 + $0x20] sm:$0xff]
        %v1590 = vld [vmem:[%s1584 + $0x28] sm:$0xff]
        %v1591 = vld [vmem:[%s1584 + $0x30] sm:$0xff]
        %v1592 = vld [vmem:[%s1584 + $0x38] sm:$0xff]
        %v1593 = vld [vmem:[%s1584 + $0x40] sm:$0xff]
        %v1594 = vld [vmem:[%s1584 + $0x48] sm:$0xff]
        %v1595 = vld [vmem:[%s1584 + $0x50] sm:$0xff]
        %v1596 = vld [vmem:[%s1584 + $0x58] sm:$0xff]
        %v1597 = vld [vmem:[%s1584 + $0x60] sm:$0xff]
        %v1598 = vld [vmem:[%s1584 + $0x68] sm:$0xff]
        %v1599 = vld [vmem:[%s1584 + $0x70] sm:$0xff]
        %v1600 = vld [vmem:[%s1584 + $0x78] sm:$0xff]
        %v1601 = vld [vmem:[%s1584 + $0x80] sm:$0xff]
        %v1602 = vld [vmem:[%s1584 + $0x88] sm:$0xff]
        %v1603 = vld [vmem:[%s1584 + $0x90] sm:$0xff]
        %v1604 = vld [vmem:[%s1584 + $0x98] sm:$0xff]
        %v1605 = vld [vmem:[%s1584 + $0xa0] sm:$0xff]
        %v1606 = vld [vmem:[%s1584 + $0xa8] sm:$0xff]
        %v1607 = vld [vmem:[%s1584 + $0xb0] sm:$0xff]
        %v1608 = vld [vmem:[%s1584 + $0xb8] sm:$0xff]
        %v1609 = vld [vmem:[%s1584 + $0xc0] sm:$0xff]
        %v1610 = vld [vmem:[%s1584 + $0xc8] sm:$0xff]
        %v1611 = vld [vmem:[%s1584 + $0xd0] sm:$0xff]
        %v1612 = vld [vmem:[%s1584 + $0xd8] sm:$0xff]
        %v1613 = vld [vmem:[%s1584 + $0xe0] sm:$0xff]
        %v1614 = vld [vmem:[%s1584 + $0xe8] sm:$0xff]
        %v1615 = vld [vmem:[%s1584 + $0xf0] sm:$0xff]
        %v1616 = vld [vmem:[%s1584 + $0xf8] sm:$0xff]
        %v1617 = vld [vmem:[%s1584 + $0x100] sm:$0xff]
        %v1618 = vld [vmem:[%s1584 + $0x108] sm:$0xff]
        %v1619 = vld [vmem:[%s1584 + $0x110] sm:$0xff]
        %v1620 = vld [vmem:[%s1584 + $0x118] sm:$0xff]
        %v1621 = vld [vmem:[%s1584 + $0x120] sm:$0xff]
        %v1622 = vld [vmem:[%s1584 + $0x128] sm:$0xff]
        %v1623 = vld [vmem:[%s1584 + $0x130] sm:$0xff]
        %v1624 = vld [vmem:[%s1584 + $0x138] sm:$0xff]
        %v1625 = vld [vmem:[%s1584 + $0x140] sm:$0xff]
        %v1626 = vld [vmem:[%s1584 + $0x148] sm:$0xff]
        %v1627 = vld [vmem:[%s1584 + $0x150] sm:$0xff]
        %v1628 = vld [vmem:[%s1584 + $0x158] sm:$0xff]
        %v1629 = vld [vmem:[%s1584 + $0x160] sm:$0xff]
        %v1630 = vld [vmem:[%s1584 + $0x168] sm:$0xff]
        %v1631 = vld [vmem:[%s1584 + $0x170] sm:$0xff]
        %v1632 = vld [vmem:[%s1584 + $0x178] sm:$0xff]
        %v1633 = vld [vmem:[%s1584 + $0x180] sm:$0xff]
        %v1634 = vld [vmem:[%s1584 + $0x188] sm:$0xff]
        %v1635 = vld [vmem:[%s1584 + $0x190] sm:$0xff]
        %v1636 = vld [vmem:[%s1584 + $0x198] sm:$0xff]
        %v1637 = vld [vmem:[%s1584 + $0x1a0] sm:$0xf]
        %v1638 = vld [vmem:[%s1584 + $0x1a8] sm:$0xf]
        %vm1643 = vcmask 1045504
        %v1644 = vrot.slane %v1580, 2
        %v1645 = vrot.slane %v1195, 2
        %v1646 = vsel %vm1643, %v1644, %v1645
        %v1647 = vrot.slane %v1581, 2
        %v1648 = vrot.slane %v1196, 2
        %v1649 = vsel %vm1643, %v1647, %v1648
        %v1650 = vrot.slane %v1197, 2
        %v1651 = vsel %vm1643, %v1645, %v1650
        %v1652 = vrot.slane %v1198, 2
        %v1653 = vsel %vm1643, %v1648, %v1652
        %v1654 = vrot.slane %v1199, 2
        %v1655 = vsel %vm1643, %v1650, %v1654
        %v1656 = vrot.slane %v1200, 2
        %v1657 = vsel %vm1643, %v1652, %v1656
        %v1658 = vrot.slane %v1201, 2
        %v1659 = vsel %vm1643, %v1654, %v1658
        %v1660 = vrot.slane %v1202, 2
        %v1661 = vsel %vm1643, %v1656, %v1660
        %v1662 = vrot.slane %v1582, 2
        %v1663 = vsel %vm1643, %v1658, %v1662
        %v1664 = vrot.slane %v1583, 2
        %v1665 = vsel %vm1643, %v1660, %v1664
        %v1671 = vsel %vm647, %v1649, 0
        %v1673 = vsel %vm647, %v1653, 0
        %v1675 = vsel %vm647, %v1657, 0
        %v1677 = vsel %vm647, %v1661, 0
        %v1679 = vsel %vm647, %v1665, 0
        %v1682 = vsel %vm1366, %v1637, 0
        %v1685 = vsel %vm1366, %v1638, 0
        %1687 = vmatprep.subr.mxu0 %v1616
        %1688 = vmatpush1.msra.mxu0 %v1615
        %1689 = vmatprep.subr.mxu0 %v1614
        %1690 = vmatpush1.msra.mxu0 %v1613
        %1691 = vmatprep.subr.mxu0 %v1612
        %1692 = vmatpush1.msra.mxu0 %v1611
        %1693 = vmatprep.subr.mxu0 %v1610
        %1694 = vmatpush1.msra.mxu0 %v1609
        %1695 = vmatprep.subr.mxu0 %v1608
        %1696 = vmatpush1.msra.mxu0 %v1607
        %1697 = vmatprep.subr.mxu0 %v1606
        %1698 = vmatpush1.msra.mxu0 %v1605
        %1699 = vmatprep.subr.mxu0 %v1604
        %1700 = vmatpush1.msra.mxu0 %v1603
        %1701 = vmatprep.subr.mxu0 %v1602
        %1702 = vmatpush1.msra.mxu0 %v1601
        %1703 = vmatprep.subr.mxu0 %v1600
        %1704 = vmatpush1.msra.mxu0 %v1599
        %1705 = vmatprep.subr.mxu0 %v1598
        %1706 = vmatpush1.msra.mxu0 %v1597
        %1707 = vmatprep.subr.mxu0 %v1596
        %1708 = vmatpush1.msra.mxu0 %v1595
        %1709 = vmatprep.subr.mxu0 %v1594
        %1710 = vmatpush1.msra.mxu0 %v1593
        %1711 = vmatprep.subr.mxu0 %v1592
        %1712 = vmatpush1.msra.mxu0 %v1591
        %1713 = vmatprep.subr.mxu0 %v1590
        %1714 = vmatpush1.msra.mxu0 %v1589
        %1715 = vmatprep.subr.mxu0 %v1588
        %1716 = vmatpush1.msra.mxu0 %v1587
        %1717 = vmatprep.subr.mxu0 %v1586
        %1718 = vmatpush1.msra.mxu0 %v1585
        %1719 = vmatprep.subr.mxu0 0.0
        %1720 = vmatpush2.msra.mxu0 0.0
        %1721 = vmatprep.subr.mxu0 0.0
        %1722 = vmatpush2.msra.mxu0 0.0
        %1723 = vmatprep.subr.mxu0 0.0
        %1724 = vmatpush2.msra.mxu0 0.0
        %1725 = vmatprep.subr.mxu0 0.0
        %1726 = vmatpush2.msra.mxu0 0.0
        %1727 = vmatprep.subr.mxu0 0.0
        %1728 = vmatpush2.msra.mxu0 0.0
        %1729 = vmatprep.subr.mxu0 %v1685
        %1730 = vmatpush2.msra.mxu0 %v1682
        %1731 = vmatprep.subr.mxu0 %v1636
        %1732 = vmatpush2.msra.mxu0 %v1635
        %1733 = vmatprep.subr.mxu0 %v1634
        %1734 = vmatpush2.msra.mxu0 %v1633
        %1735 = vmatprep.subr.mxu0 %v1632
        %1736 = vmatpush2.msra.mxu0 %v1631
        %1737 = vmatprep.subr.mxu0 %v1630
        %1738 = vmatpush2.msra.mxu0 %v1629
        %1739 = vmatprep.subr.mxu0 %v1628
        %1740 = vmatpush2.msra.mxu0 %v1627
        %1741 = vmatprep.subr.mxu0 %v1626
        %1742 = vmatpush2.msra.mxu0 %v1625
        %1743 = vmatprep.subr.mxu0 %v1624
        %1744 = vmatpush2.msra.mxu0 %v1623
        %1745 = vmatprep.subr.mxu0 %v1622
        %1746 = vmatpush2.msra.mxu0 %v1621
        %1747 = vmatprep.subr.mxu0 %v1620
        %1748 = vmatpush2.msra.mxu0 %v1619
        %1749 = vmatprep.subr.mxu0 %v1618
        %1750 = vmatpush2.msra.mxu0 %v1617
        %1751 = vmatprep.mubr.f32.mxu0 %v1671
        %1752 = vmatmul.mubr.f32.gmra.mxu0 %v1646
        %v1753 = vpop.f32.mrf.mxu0
        %v1754 = vadd.f32 0.0, %v1753
        %v1755 = vpop.f32.mrf.mxu0
        %v1756 = vadd.f32 0.0, %v1755
        %1757 = vmatprep.mubr.f32.mxu0 %v1673
        %1758 = vmatmul.mubr.f32.gmra.mxu0 %v1651
        %v1759 = vpop.f32.mrf.mxu0
        %v1760 = vadd.f32 0.0, %v1759
        %v1761 = vpop.f32.mrf.mxu0
        %v1762 = vadd.f32 0.0, %v1761
        %1763 = vmatprep.mubr.f32.mxu0 %v1675
        %1764 = vmatmul.mubr.f32.gmra.mxu0 %v1655
        %v1765 = vpop.f32.mrf.mxu0
        %v1766 = vadd.f32 0.0, %v1765
        %v1767 = vpop.f32.mrf.mxu0
        %v1768 = vadd.f32 0.0, %v1767
        %1769 = vmatprep.mubr.f32.mxu0 %v1677
        %1770 = vmatmul.mubr.f32.gmra.mxu0 %v1659
        %v1771 = vpop.f32.mrf.mxu0
        %v1772 = vadd.f32 0.0, %v1771
        %v1773 = vpop.f32.mrf.mxu0
        %v1774 = vadd.f32 0.0, %v1773
        %1775 = vmatprep.mubr.f32.mxu0 %v1679
        %1776 = vmatmul.mubr.f32.gmra.mxu0 %v1663
        %v1777 = vpop.f32.mrf.mxu0
        %v1778 = vadd.f32 0.0, %v1777
        %v1779 = vpop.f32.mrf.mxu0
        %v1780 = vadd.f32 0.0, %v1779
        %1781 = vdwg.mxu0
        %v1782 = vadd.f32 %v1552, %v1754
        %v1783 = vadd.f32 %v1554, %v1756
        %v1784 = vadd.f32 %v1558, %v1760
        %v1785 = vadd.f32 %v1560, %v1762
        %v1786 = vadd.f32 %v1564, %v1766
        %v1787 = vadd.f32 %v1566, %v1768
        %v1788 = vadd.f32 %v1570, %v1772
        %v1789 = vadd.f32 %v1572, %v1774
        %v1790 = vadd.f32 %v1576, %v1778
        %v1791 = vadd.f32 %v1578, %v1780
        %v1792 = vld [vmem:[%s4] sm:$0x3]
        %v1794 = vlaneseq
        %v1795 = vshrl.u32 %v1794, 7
        %v1796 = vsub.s32 0, %v1795
        %v1797 = vrot.slane %v1792, %v1796
        %v1798 = vlaneseq
        %v1799 = vshrl.u32 %v1798, 7
        %v1800 = vsub.s32 1, %v1799
        %v1801 = vrot.slane %v1792, %v1800
        %v1804 = vadd.f32 %v1782, %v1797
        %v1805 = vadd.f32 %v1783, %v1801
        %v1806 = vadd.f32 %v1784, %v1797
        %v1807 = vadd.f32 %v1785, %v1801
        %v1808 = vadd.f32 %v1786, %v1797
        %v1809 = vadd.f32 %v1787, %v1801
        %v1810 = vadd.f32 %v1788, %v1797
        %v1811 = vadd.f32 %v1789, %v1801
        %v1812 = vadd.f32 %v1790, %v1797
        %v1813 = vadd.f32 %v1791, %v1801
        %s1814 = sld [smem:[#allocation16 + $0x1]]
        %vm1815 = vcmp.ge.f32.partialorder %v1804, 0.0
        %vm1816 = vcmp.ge.f32.partialorder %v1805, 0.0
        %vm1817 = vcmp.ge.f32.partialorder %v1806, 0.0
        %vm1818 = vcmp.ge.f32.partialorder %v1807, 0.0
        %vm1819 = vcmp.ge.f32.partialorder %v1808, 0.0
        %vm1820 = vcmp.ge.f32.partialorder %v1809, 0.0
        %vm1821 = vcmp.ge.f32.partialorder %v1810, 0.0
        %vm1822 = vcmp.ge.f32.partialorder %v1811, 0.0
        %vm1823 = vcmp.ge.f32.partialorder %v1812, 0.0
        %vm1824 = vcmp.ge.f32.partialorder %v1813, 0.0
        %v1825 = vstv %s1814
        %v1826 = vmul.f32 %v1825, %v1804
        %v1827 = vmul.f32 %v1825, %v1805
        %v1828 = vmul.f32 %v1825, %v1806
        %v1829 = vmul.f32 %v1825, %v1807
        %v1830 = vmul.f32 %v1825, %v1808
        %v1831 = vmul.f32 %v1825, %v1809
        %v1832 = vmul.f32 %v1825, %v1810
        %v1833 = vmul.f32 %v1825, %v1811
        %v1834 = vmul.f32 %v1825, %v1812
        %v1835 = vmul.f32 %v1825, %v1813
        %v1836 = vsel %vm1815, %v1804, %v1826
        %v1837 = vsel %vm1816, %v1805, %v1827
        %v1838 = vsel %vm1817, %v1806, %v1828
        %v1839 = vsel %vm1818, %v1807, %v1829
        %v1840 = vsel %vm1819, %v1808, %v1830
        %v1841 = vsel %vm1820, %v1809, %v1831
        %v1842 = vsel %vm1821, %v1810, %v1832
        %v1843 = vsel %vm1822, %v1811, %v1833
        %v1844 = vsel %vm1823, %v1812, %v1834
        %v1845 = vsel %vm1824, %v1813, %v1835
        %1856 = vrot.lane.b32.xlu0 %v1836, 127
        %v1857 = vpop.permute.xlu0 %1856
        %1858 = vrot.lane.b32.xlu0 %v1837, 127
        %v1859 = vpop.permute.xlu0 %1858
        %1860 = vrot.lane.b32.xlu0 %v1838, 127
        %v1861 = vpop.permute.xlu0 %1860
        %1862 = vrot.lane.b32.xlu0 %v1839, 127
        %v1863 = vpop.permute.xlu0 %1862
        %1864 = vrot.lane.b32.xlu0 %v1840, 127
        %v1865 = vpop.permute.xlu0 %1864
        %1866 = vrot.lane.b32.xlu0 %v1841, 127
        %v1867 = vpop.permute.xlu0 %1866
        %1868 = vrot.lane.b32.xlu0 %v1842, 127
        %v1869 = vpop.permute.xlu0 %1868
        %1870 = vrot.lane.b32.xlu0 %v1843, 127
        %v1871 = vpop.permute.xlu0 %1870
        %1872 = vrot.lane.b32.xlu0 %v1844, 127
        %v1873 = vpop.permute.xlu0 %1872
        %1874 = vrot.lane.b32.xlu0 %v1845, 127
        %v1875 = vpop.permute.xlu0 %1874
        %vm1876 = vcmask 1039360
        %v1877 = vsel %vm1876, %v1857, %v1859
        %v1878 = vsel %vm1876, %v1861, %v1863
        %v1879 = vsel %vm1876, %v1865, %v1867
        %v1880 = vsel %vm1876, %v1869, %v1871
        %v1881 = vsel %vm1876, %v1873, %v1875
        %v1892 = vmax.f32 %v1836, %v1877
        %v1893 = vmax.f32 %v1837, %v1859
        %v1894 = vmax.f32 %v1838, %v1878
        %v1895 = vmax.f32 %v1839, %v1863
        %v1896 = vmax.f32 %v1840, %v1879
        %v1897 = vmax.f32 %v1841, %v1867
        %v1898 = vmax.f32 %v1842, %v1880
        %v1899 = vmax.f32 %v1843, %v1871
        %v1900 = vmax.f32 %v1844, %v1881
        %v1901 = vmax.f32 %v1845, %v1875
        %v1912 = vrot.slane %v1892, 1
        %v1913 = vrot.slane %v1894, 1
        %v1914 = vsel %vm1328, %v1912, %v1913
        %v1915 = vrot.slane %v1893, 1
        %v1916 = vrot.slane %v1895, 1
        %v1917 = vsel %vm1328, %v1915, %v1916
        %v1918 = vrot.slane %v1896, 1
        %v1919 = vsel %vm1328, %v1913, %v1918
        %v1920 = vrot.slane %v1897, 1
        %v1921 = vsel %vm1328, %v1916, %v1920
        %v1922 = vrot.slane %v1898, 1
        %v1923 = vsel %vm1328, %v1918, %v1922
        %v1924 = vrot.slane %v1899, 1
        %v1925 = vsel %vm1328, %v1920, %v1924
        %v1926 = vrot.slane %v1900, 1
        %v1927 = vsel %vm1328, %v1922, %v1926
        %v1928 = vrot.slane %v1901, 1
        %v1929 = vsel %vm1328, %v1924, %v1928
        %v1940 = vmax.f32 %v1892, %v1914
        %v1941 = vmax.f32 %v1893, %v1917
        %v1942 = vmax.f32 %v1894, %v1919
        %v1943 = vmax.f32 %v1895, %v1921
        %v1944 = vmax.f32 %v1896, %v1923
        %v1945 = vmax.f32 %v1897, %v1925
        %v1946 = vmax.f32 %v1898, %v1927
        %v1947 = vmax.f32 %v1899, %v1929
        %v1948 = vmax.f32 %v1900, %v1926
        %v1949 = vmax.f32 %v1901, %v1928
        %v1950 = vld [vmem:[#allocation7] sm:$0xff]
        %v1951 = vld [vmem:[#allocation7 + $0x8] sm:$0xff]
        %v1952 = vld [vmem:[#allocation7 + $0x10] sm:$0xf]
        %vm1953 = vcmask 318464
        %v1955 = vsel %vm1953, %v1950, 0
        %v1958 = vsel %vm1953, %v1951, 0
        %v1961 = vsel %vm1953, %v1952, 0
        %v1964 = vsel %vm1328, %v1948, 0
        %v1967 = vsel %vm1328, %v1949, 0
        %1969 = vmatprep.subr.mxu0 0.0
        %1970 = vmatpush1.msra.mxu0 0.0
        %1971 = vmatprep.subr.mxu0 0.0
        %1972 = vmatpush1.msra.mxu0 0.0
        %1973 = vmatprep.subr.mxu0 0.0
        %1974 = vmatpush1.msra.mxu0 0.0
        %1975 = vmatprep.subr.mxu0 0.0
        %1976 = vmatpush1.msra.mxu0 0.0
        %1977 = vmatprep.subr.mxu0 0.0
        %1978 = vmatpush1.msra.mxu0 0.0
        %1979 = vmatprep.subr.mxu0 0.0
        %1980 = vmatpush1.msra.mxu0 0.0
        %1981 = vmatprep.subr.mxu0 0.0
        %1982 = vmatpush1.msra.mxu0 0.0
        %1983 = vmatprep.subr.mxu0 0.0
        %1984 = vmatpush1.msra.mxu0 0.0
        %1985 = vmatprep.subr.mxu0 0.0
        %1986 = vmatpush1.msra.mxu0 0.0
        %1987 = vmatprep.subr.mxu0 0.0
        %1988 = vmatpush1.msra.mxu0 0.0
        %1989 = vmatprep.subr.mxu0 0.0
        %1990 = vmatpush1.msra.mxu0 0.0
        %1991 = vmatprep.subr.mxu0 %v1967
        %1992 = vmatpush1.msra.mxu0 %v1964
        %1993 = vmatprep.subr.mxu0 %v1947
        %1994 = vmatpush1.msra.mxu0 %v1946
        %1995 = vmatprep.subr.mxu0 %v1945
        %1996 = vmatpush1.msra.mxu0 %v1944
        %1997 = vmatprep.subr.mxu0 %v1943
        %1998 = vmatpush1.msra.mxu0 %v1942
        %1999 = vmatprep.subr.mxu0 %v1941
        %2000 = vmatpush1.msra.mxu0 %v1940
        %2001 = vmatprep.subr.mxu0 0.0
        %2002 = vmatpush2.msra.mxu0 0.0
        %2003 = vmatprep.subr.mxu0 0.0
        %2004 = vmatpush2.msra.mxu0 0.0
        %2005 = vmatprep.subr.mxu0 0.0
        %2006 = vmatpush2.msra.mxu0 0.0
        %2007 = vmatprep.subr.mxu0 0.0
        %2008 = vmatpush2.msra.mxu0 0.0
        %2009 = vmatprep.subr.mxu0 0.0
        %2010 = vmatpush2.msra.mxu0 0.0
        %2011 = vmatprep.subr.mxu0 0.0
        %2012 = vmatpush2.msra.mxu0 0.0
        %2013 = vmatprep.subr.mxu0 0.0
        %2014 = vmatpush2.msra.mxu0 0.0
        %2015 = vmatprep.subr.mxu0 0.0
        %2016 = vmatpush2.msra.mxu0 0.0
        %2017 = vmatprep.subr.mxu0 0.0
        %2018 = vmatpush2.msra.mxu0 0.0
        %2019 = vmatprep.subr.mxu0 0.0
        %2020 = vmatpush2.msra.mxu0 0.0
        %2021 = vmatprep.subr.mxu0 0.0
        %2022 = vmatpush2.msra.mxu0 0.0
        %2023 = vmatprep.subr.mxu0 0.0
        %2024 = vmatpush2.msra.mxu0 0.0
        %2025 = vmatprep.subr.mxu0 0.0
        %2026 = vmatpush2.msra.mxu0 0.0
        %2027 = vmatprep.subr.mxu0 0.0
        %2028 = vmatpush2.msra.mxu0 0.0
        %2029 = vmatprep.subr.mxu0 0.0
        %2030 = vmatpush2.msra.mxu0 0.0
        %2031 = vmatprep.subr.mxu0 0.0
        %2032 = vmatpush2.msra.mxu0 0.0
        %2033 = vmatprep.mubr.f32.mxu0 0.0
        %2034 = vmatmul.mubr.f32.gmra.mxu0 %v1955
        %v2035 = vpop.f32.mrf.mxu0
        %v2036 = vadd.f32 0.0, %v2035
        %v2037 = vpop.f32.mrf.mxu0
        %v2038 = vadd.f32 0.0, %v2037
        %2039 = vmatprep.mubr.f32.mxu0 0.0
        %2040 = vmatmul.mubr.f32.gmra.mxu0 %v1958
        %v2041 = vpop.f32.mrf.mxu0
        %v2042 = vadd.f32 0.0, %v2041
        %v2043 = vpop.f32.mrf.mxu0
        %v2044 = vadd.f32 0.0, %v2043
        %2045 = vmatprep.mubr.f32.mxu0 0.0
        %2046 = vmatmul.mubr.f32.gmra.mxu0 %v1961
        %v2047 = vpop.f32.mrf.mxu0
        %v2048 = vadd.f32 0.0, %v2047
        %v2049 = vpop.f32.mrf.mxu0
        %v2050 = vadd.f32 0.0, %v2049
        %2051 = vdwg.mxu0
        %v2052 = vld [vmem:[#allocation11] sm:$0xff]
        %v2053 = vld [vmem:[#allocation11 + $0x8] sm:$0xff]
        %v2054 = vld [vmem:[#allocation11 + $0x10] sm:$0xff]
        %v2055 = vld [vmem:[#allocation11 + $0x18] sm:$0xff]
        %v2056 = vld [vmem:[#allocation11 + $0x20] sm:$0xff]
        %v2057 = vld [vmem:[#allocation11 + $0x28] sm:$0xff]
        %v2058 = vld [vmem:[#allocation11 + $0x30] sm:$0xff]
        %v2059 = vld [vmem:[#allocation11 + $0x38] sm:$0xff]
        %v2060 = vld [vmem:[#allocation11 + $0x40] sm:$0xff]
        %v2061 = vld [vmem:[#allocation11 + $0x48] sm:$0xff]
        %v2062 = vld [vmem:[#allocation11 + $0x50] sm:$0xff]
        %v2063 = vld [vmem:[#allocation11 + $0x58] sm:$0xff]
        %v2064 = vld [vmem:[#allocation11 + $0x60] sm:$0xff]
        %v2065 = vld [vmem:[#allocation11 + $0x68] sm:$0xff]
        %v2066 = vld [vmem:[#allocation11 + $0x70] sm:$0xff]
        %v2067 = vld [vmem:[#allocation11 + $0x78] sm:$0xff]
        %v2068 = vld [vmem:[#allocation11 + $0x80] sm:$0xff]
        %v2069 = vld [vmem:[#allocation11 + $0x88] sm:$0xff]
        %v2070 = vld [vmem:[#allocation11 + $0x90] sm:$0xff]
        %v2071 = vld [vmem:[#allocation11 + $0x98] sm:$0xff]
        %v2072 = vld [vmem:[#allocation11 + $0xa0] sm:$0xff]
        %v2073 = vld [vmem:[#allocation11 + $0xa8] sm:$0xff]
        %v2074 = vld [vmem:[#allocation11 + $0xb0] sm:$0xff]
        %v2075 = vld [vmem:[#allocation11 + $0xb8] sm:$0xff]
        %v2076 = vld [vmem:[#allocation11 + $0xc0] sm:$0xff]
        %v2077 = vld [vmem:[#allocation11 + $0xc8] sm:$0xff]
        %v2078 = vld [vmem:[#allocation11 + $0xd0] sm:$0x7]
        %vm2079 = vcmask 678912
        %v2081 = vsel %vm2079, %v2038, 0
        %v2084 = vsel %vm2079, %v2044, 0
        %v2087 = vsel %vm2079, %v2050, 0
        %vm2089 = vcmask 1042432
        %v2091 = vsel %vm2089, %v2078, 0
        %2093 = vmatprep.subr.mxu0 0.0
        %2094 = vmatpush1.msra.mxu0 %v2067
        %2095 = vmatprep.subr.mxu0 0.0
        %2096 = vmatpush1.msra.mxu0 %v2066
        %2097 = vmatprep.subr.mxu0 0.0
        %2098 = vmatpush1.msra.mxu0 %v2065
        %2099 = vmatprep.subr.mxu0 0.0
        %2100 = vmatpush1.msra.mxu0 %v2064
        %2101 = vmatprep.subr.mxu0 0.0
        %2102 = vmatpush1.msra.mxu0 %v2063
        %2103 = vmatprep.subr.mxu0 0.0
        %2104 = vmatpush1.msra.mxu0 %v2062
        %2105 = vmatprep.subr.mxu0 0.0
        %2106 = vmatpush1.msra.mxu0 %v2061
        %2107 = vmatprep.subr.mxu0 0.0
        %2108 = vmatpush1.msra.mxu0 %v2060
        %2109 = vmatprep.subr.mxu0 0.0
        %2110 = vmatpush1.msra.mxu0 %v2059
        %2111 = vmatprep.subr.mxu0 0.0
        %2112 = vmatpush1.msra.mxu0 %v2058
        %2113 = vmatprep.subr.mxu0 0.0
        %2114 = vmatpush1.msra.mxu0 %v2057
        %2115 = vmatprep.subr.mxu0 0.0
        %2116 = vmatpush1.msra.mxu0 %v2056
        %2117 = vmatprep.subr.mxu0 0.0
        %2118 = vmatpush1.msra.mxu0 %v2055
        %2119 = vmatprep.subr.mxu0 0.0
        %2120 = vmatpush1.msra.mxu0 %v2054
        %2121 = vmatprep.subr.mxu0 0.0
        %2122 = vmatpush1.msra.mxu0 %v2053
        %2123 = vmatprep.subr.mxu0 0.0
        %2124 = vmatpush1.msra.mxu0 %v2052
        %2125 = vmatprep.subr.mxu0 0.0
        %2126 = vmatpush2.msra.mxu0 0.0
        %2127 = vmatprep.subr.mxu0 0.0
        %2128 = vmatpush2.msra.mxu0 0.0
        %2129 = vmatprep.subr.mxu0 0.0
        %2130 = vmatpush2.msra.mxu0 0.0
        %2131 = vmatprep.subr.mxu0 0.0
        %2132 = vmatpush2.msra.mxu0 0.0
        %2133 = vmatprep.subr.mxu0 0.0
        %2134 = vmatpush2.msra.mxu0 0.0
        %2135 = vmatprep.subr.mxu0 0.0
        %2136 = vmatpush2.msra.mxu0 %v2091
        %2137 = vmatprep.subr.mxu0 0.0
        %2138 = vmatpush2.msra.mxu0 %v2077
        %2139 = vmatprep.subr.mxu0 0.0
        %2140 = vmatpush2.msra.mxu0 %v2076
        %2141 = vmatprep.subr.mxu0 0.0
        %2142 = vmatpush2.msra.mxu0 %v2075
        %2143 = vmatprep.subr.mxu0 0.0
        %2144 = vmatpush2.msra.mxu0 %v2074
        %2145 = vmatprep.subr.mxu0 0.0
        %2146 = vmatpush2.msra.mxu0 %v2073
        %2147 = vmatprep.subr.mxu0 0.0
        %2148 = vmatpush2.msra.mxu0 %v2072
        %2149 = vmatprep.subr.mxu0 0.0
        %2150 = vmatpush2.msra.mxu0 %v2071
        %2151 = vmatprep.subr.mxu0 0.0
        %2152 = vmatpush2.msra.mxu0 %v2070
        %2153 = vmatprep.subr.mxu0 0.0
        %2154 = vmatpush2.msra.mxu0 %v2069
        %2155 = vmatprep.subr.mxu0 0.0
        %2156 = vmatpush2.msra.mxu0 %v2068
        %2157 = vmatprep.mubr.f32.mxu0 %v2081
        %2158 = vmatmul.mubr.f32.gmra.mxu0 %v2036
        %v2159 = vpop.f32.mrf.mxu0
        %v2160 = vadd.f32 0.0, %v2159
        %v2161 = vpop.f32.mrf.mxu0
        %2162 = vmatprep.mubr.f32.mxu0 %v2084
        %2163 = vmatmul.mubr.f32.gmra.mxu0 %v2042
        %v2164 = vpop.f32.mrf.mxu0
        %v2165 = vadd.f32 0.0, %v2164
        %v2166 = vpop.f32.mrf.mxu0
        %2167 = vmatprep.mubr.f32.mxu0 %v2087
        %2168 = vmatmul.mubr.f32.gmra.mxu0 %v2048
        %v2169 = vpop.f32.mrf.mxu0
        %v2170 = vadd.f32 0.0, %v2169
        %v2171 = vpop.f32.mrf.mxu0
        %2172 = vdwg.mxu0
        %s2173 = sld [smem:[#allocation16 + $0x2]]
        %vm2174 = vcmp.ge.f32.partialorder %v2160, 0.0
        %vm2175 = vcmp.ge.f32.partialorder %v2165, 0.0
        %vm2176 = vcmp.ge.f32.partialorder %v2170, 0.0
        %v2177 = vstv %s2173
        %v2178 = vmul.f32 %v2177, %v2160
        %v2179 = vmul.f32 %v2177, %v2165
        %v2180 = vmul.f32 %v2177, %v2170
        %v2181 = vsel %vm2174, %v2160, %v2178
        %v2182 = vsel %vm2175, %v2165, %v2179
        %v2183 = vsel %vm2176, %v2170, %v2180
        %2184 = vst.msk [vmem:[#allocation3 + $0x1] sm:$0xff] %vm660, %v2181
        %2185 = vst.msk [vmem:[#allocation3 + $0x9] sm:$0xff] %vm660, %v2182
        %vm2186 = vcmask 912384
        %2187 = vst.msk [vmem:[#allocation3 + $0x11] sm:$0xf] %vm2186, %v2183
        %v2188 = vld [vmem:[#allocation3] sm:$0xff]
        %v2189 = vld [vmem:[#allocation3 + $0x8] sm:$0xff]
        %v2190 = vld [vmem:[#allocation3 + $0x10] sm:$0xf]
        %v2191 = vld [vmem:[#allocation13] sm:$0xff]
        %v2192 = vld [vmem:[#allocation13 + $0x8] sm:$0xff]
        %v2193 = vld [vmem:[#allocation13 + $0x10] sm:$0xff]
        %v2194 = vld [vmem:[#allocation13 + $0x18] sm:$0xff]
        %v2195 = vld [vmem:[#allocation13 + $0x20] sm:$0xff]
        %v2196 = vld [vmem:[#allocation13 + $0x28] sm:$0xff]
        %v2197 = vld [vmem:[#allocation13 + $0x30] sm:$0xff]
        %v2198 = vld [vmem:[#allocation13 + $0x38] sm:$0xff]
        %v2199 = vld [vmem:[#allocation13 + $0x40] sm:$0xff]
        %v2200 = vld [vmem:[#allocation13 + $0x48] sm:$0xff]
        %v2201 = vld [vmem:[#allocation13 + $0x50] sm:$0xff]
        %v2202 = vld [vmem:[#allocation13 + $0x58] sm:$0xff]
        %v2203 = vld [vmem:[#allocation13 + $0x60] sm:$0xff]
        %v2204 = vld [vmem:[#allocation13 + $0x68] sm:$0xff]
        %v2205 = vld [vmem:[#allocation3 + $0x1] sm:$0xff]
        %v2206 = vld [vmem:[#allocation3 + $0x9] sm:$0xff]
        %v2207 = vld [vmem:[#allocation3 + $0x11] sm:$0xf]
        %s2208 = scalar_lea.vmem [#allocation13], 112
        %v2209 = vld [vmem:[%s2208] sm:$0xff]
        %v2210 = vld [vmem:[%s2208 + $0x8] sm:$0xff]
        %v2211 = vld [vmem:[%s2208 + $0x10] sm:$0xff]
        %v2212 = vld [vmem:[%s2208 + $0x18] sm:$0xff]
        %v2213 = vld [vmem:[%s2208 + $0x20] sm:$0xff]
        %v2214 = vld [vmem:[%s2208 + $0x28] sm:$0xff]
        %v2215 = vld [vmem:[%s2208 + $0x30] sm:$0xff]
        %v2216 = vld [vmem:[%s2208 + $0x38] sm:$0xff]
        %v2217 = vld [vmem:[%s2208 + $0x40] sm:$0xff]
        %v2218 = vld [vmem:[%s2208 + $0x48] sm:$0xff]
        %v2219 = vld [vmem:[%s2208 + $0x50] sm:$0xff]
        %v2220 = vld [vmem:[%s2208 + $0x58] sm:$0xff]
        %v2221 = vld [vmem:[%s2208 + $0x60] sm:$0xff]
        %v2222 = vld [vmem:[%s2208 + $0x68] sm:$0xff]
        %v2224 = vsel %vm660, %v2205, 0
        %v2227 = vsel %vm660, %v2206, 0
        %v2230 = vsel %vm660, %v2207, 0
        %2232 = vmatprep.subr.mxu0 0.0
        %2233 = vmatpush1.msra.mxu0 0.0
        %2234 = vmatprep.subr.mxu0 0.0
        %2235 = vmatpush1.msra.mxu0 0.0
        %2236 = vmatprep.subr.mxu0 0.0
        %2237 = vmatpush1.msra.mxu0 %v2222
        %2238 = vmatprep.subr.mxu0 0.0
        %2239 = vmatpush1.msra.mxu0 %v2221
        %2240 = vmatprep.subr.mxu0 0.0
        %2241 = vmatpush1.msra.mxu0 %v2220
        %2242 = vmatprep.subr.mxu0 0.0
        %2243 = vmatpush1.msra.mxu0 %v2219
        %2244 = vmatprep.subr.mxu0 0.0
        %2245 = vmatpush1.msra.mxu0 %v2218
        %2246 = vmatprep.subr.mxu0 0.0
        %2247 = vmatpush1.msra.mxu0 %v2217
        %2248 = vmatprep.subr.mxu0 0.0
        %2249 = vmatpush1.msra.mxu0 %v2216
        %2250 = vmatprep.subr.mxu0 0.0
        %2251 = vmatpush1.msra.mxu0 %v2215
        %2252 = vmatprep.subr.mxu0 0.0
        %2253 = vmatpush1.msra.mxu0 %v2214
        %2254 = vmatprep.subr.mxu0 0.0
        %2255 = vmatpush1.msra.mxu0 %v2213
        %2256 = vmatprep.subr.mxu0 0.0
        %2257 = vmatpush1.msra.mxu0 %v2212
        %2258 = vmatprep.subr.mxu0 0.0
        %2259 = vmatpush1.msra.mxu0 %v2211
        %2260 = vmatprep.subr.mxu0 0.0
        %2261 = vmatpush1.msra.mxu0 %v2210
        %2262 = vmatprep.subr.mxu0 0.0
        %2263 = vmatpush1.msra.mxu0 %v2209
        %2264 = vmatprep.subr.mxu0 0.0
        %2265 = vmatpush2.msra.mxu0 0.0
        %2266 = vmatprep.subr.mxu0 0.0
        %2267 = vmatpush2.msra.mxu0 0.0
        %2268 = vmatprep.subr.mxu0 0.0
        %2269 = vmatpush2.msra.mxu0 0.0
        %2270 = vmatprep.subr.mxu0 0.0
        %2271 = vmatpush2.msra.mxu0 0.0
        %2272 = vmatprep.subr.mxu0 0.0
        %2273 = vmatpush2.msra.mxu0 0.0
        %2274 = vmatprep.subr.mxu0 0.0
        %2275 = vmatpush2.msra.mxu0 0.0
        %2276 = vmatprep.subr.mxu0 0.0
        %2277 = vmatpush2.msra.mxu0 0.0
        %2278 = vmatprep.subr.mxu0 0.0
        %2279 = vmatpush2.msra.mxu0 0.0
        %2280 = vmatprep.subr.mxu0 0.0
        %2281 = vmatpush2.msra.mxu0 0.0
        %2282 = vmatprep.subr.mxu0 0.0
        %2283 = vmatpush2.msra.mxu0 0.0
        %2284 = vmatprep.subr.mxu0 0.0
        %2285 = vmatpush2.msra.mxu0 0.0
        %2286 = vmatprep.subr.mxu0 0.0
        %2287 = vmatpush2.msra.mxu0 0.0
        %2288 = vmatprep.subr.mxu0 0.0
        %2289 = vmatpush2.msra.mxu0 0.0
        %2290 = vmatprep.subr.mxu0 0.0
        %2291 = vmatpush2.msra.mxu0 0.0
        %2292 = vmatprep.subr.mxu0 0.0
        %2293 = vmatpush2.msra.mxu0 0.0
        %2294 = vmatprep.subr.mxu0 0.0
        %2295 = vmatpush2.msra.mxu0 0.0
        %2296 = vmatprep.mubr.f32.mxu0 0.0
        %2297 = vmatmul.mubr.f32.gmra.mxu0 %v2224
        %v2298 = vpop.f32.mrf.mxu0
        %v2299 = vadd.f32 0.0, %v2298
        %v2300 = vpop.f32.mrf.mxu0
        %2301 = vmatprep.mubr.f32.mxu0 0.0
        %2302 = vmatmul.mubr.f32.gmra.mxu0 %v2227
        %v2303 = vpop.f32.mrf.mxu0
        %v2304 = vadd.f32 0.0, %v2303
        %v2305 = vpop.f32.mrf.mxu0
        %2306 = vmatprep.mubr.f32.mxu0 0.0
        %2307 = vmatmul.mubr.f32.gmra.mxu0 %v2230
        %v2308 = vpop.f32.mrf.mxu0
        %v2309 = vadd.f32 0.0, %v2308
        %v2310 = vpop.f32.mrf.mxu0
        %2311 = vdwg.mxu0
        %v2313 = vsel %vm660, %v2188, 0
        %v2316 = vsel %vm660, %v2189, 0
        %v2319 = vsel %vm660, %v2190, 0
        %2321 = vmatprep.subr.mxu0 0.0
        %2322 = vmatpush1.msra.mxu0 0.0
        %2323 = vmatprep.subr.mxu0 0.0
        %2324 = vmatpush1.msra.mxu0 0.0
        %2325 = vmatprep.subr.mxu0 0.0
        %2326 = vmatpush1.msra.mxu0 %v2204
        %2327 = vmatprep.subr.mxu0 0.0
        %2328 = vmatpush1.msra.mxu0 %v2203
        %2329 = vmatprep.subr.mxu0 0.0
        %2330 = vmatpush1.msra.mxu0 %v2202
        %2331 = vmatprep.subr.mxu0 0.0
        %2332 = vmatpush1.msra.mxu0 %v2201
        %2333 = vmatprep.subr.mxu0 0.0
        %2334 = vmatpush1.msra.mxu0 %v2200
        %2335 = vmatprep.subr.mxu0 0.0
        %2336 = vmatpush1.msra.mxu0 %v2199
        %2337 = vmatprep.subr.mxu0 0.0
        %2338 = vmatpush1.msra.mxu0 %v2198
        %2339 = vmatprep.subr.mxu0 0.0
        %2340 = vmatpush1.msra.mxu0 %v2197
        %2341 = vmatprep.subr.mxu0 0.0
        %2342 = vmatpush1.msra.mxu0 %v2196
        %2343 = vmatprep.subr.mxu0 0.0
        %2344 = vmatpush1.msra.mxu0 %v2195
        %2345 = vmatprep.subr.mxu0 0.0
        %2346 = vmatpush1.msra.mxu0 %v2194
        %2347 = vmatprep.subr.mxu0 0.0
        %2348 = vmatpush1.msra.mxu0 %v2193
        %2349 = vmatprep.subr.mxu0 0.0
        %2350 = vmatpush1.msra.mxu0 %v2192
        %2351 = vmatprep.subr.mxu0 0.0
        %2352 = vmatpush1.msra.mxu0 %v2191
        %2353 = vmatprep.subr.mxu0 0.0
        %2354 = vmatpush2.msra.mxu0 0.0
        %2355 = vmatprep.subr.mxu0 0.0
        %2356 = vmatpush2.msra.mxu0 0.0
        %2357 = vmatprep.subr.mxu0 0.0
        %2358 = vmatpush2.msra.mxu0 0.0
        %2359 = vmatprep.subr.mxu0 0.0
        %2360 = vmatpush2.msra.mxu0 0.0
        %2361 = vmatprep.subr.mxu0 0.0
        %2362 = vmatpush2.msra.mxu0 0.0
        %2363 = vmatprep.subr.mxu0 0.0
        %2364 = vmatpush2.msra.mxu0 0.0
        %2365 = vmatprep.subr.mxu0 0.0
        %2366 = vmatpush2.msra.mxu0 0.0
        %2367 = vmatprep.subr.mxu0 0.0
        %2368 = vmatpush2.msra.mxu0 0.0
        %2369 = vmatprep.subr.mxu0 0.0
        %2370 = vmatpush2.msra.mxu0 0.0
        %2371 = vmatprep.subr.mxu0 0.0
        %2372 = vmatpush2.msra.mxu0 0.0
        %2373 = vmatprep.subr.mxu0 0.0
        %2374 = vmatpush2.msra.mxu0 0.0
        %2375 = vmatprep.subr.mxu0 0.0
        %2376 = vmatpush2.msra.mxu0 0.0
        %2377 = vmatprep.subr.mxu0 0.0
        %2378 = vmatpush2.msra.mxu0 0.0
        %2379 = vmatprep.subr.mxu0 0.0
        %2380 = vmatpush2.msra.mxu0 0.0
        %2381 = vmatprep.subr.mxu0 0.0
        %2382 = vmatpush2.msra.mxu0 0.0
        %2383 = vmatprep.subr.mxu0 0.0
        %2384 = vmatpush2.msra.mxu0 0.0
        %2385 = vmatprep.mubr.f32.mxu0 0.0
        %2386 = vmatmul.mubr.f32.gmra.mxu0 %v2313
        %v2387 = vpop.f32.mrf.mxu0
        %v2388 = vadd.f32 %v2299, %v2387
        %v2389 = vpop.f32.mrf.mxu0
        %2390 = vmatprep.mubr.f32.mxu0 0.0
        %2391 = vmatmul.mubr.f32.gmra.mxu0 %v2316
        %v2392 = vpop.f32.mrf.mxu0
        %v2393 = vadd.f32 %v2304, %v2392
        %v2394 = vpop.f32.mrf.mxu0
        %2395 = vmatprep.mubr.f32.mxu0 0.0
        %2396 = vmatmul.mubr.f32.gmra.mxu0 %v2319
        %v2397 = vpop.f32.mrf.mxu0
        %v2398 = vadd.f32 %v2309, %v2397
        %v2399 = vpop.f32.mrf.mxu0
        %2400 = vdwg.mxu0
        %v2401 = vld [vmem:[#allocation3 + $0x2] sm:$0xff]
        %v2402 = vld [vmem:[#allocation3 + $0xa] sm:$0xff]
        %v2403 = vld [vmem:[#allocation3 + $0x12] sm:$0xf]
        %s2404 = scalar_lea.vmem [#allocation13], 224
        %v2405 = vld [vmem:[%s2404] sm:$0xff]
        %v2406 = vld [vmem:[%s2404 + $0x8] sm:$0xff]
        %v2407 = vld [vmem:[%s2404 + $0x10] sm:$0xff]
        %v2408 = vld [vmem:[%s2404 + $0x18] sm:$0xff]
        %v2409 = vld [vmem:[%s2404 + $0x20] sm:$0xff]
        %v2410 = vld [vmem:[%s2404 + $0x28] sm:$0xff]
        %v2411 = vld [vmem:[%s2404 + $0x30] sm:$0xff]
        %v2412 = vld [vmem:[%s2404 + $0x38] sm:$0xff]
        %v2413 = vld [vmem:[%s2404 + $0x40] sm:$0xff]
        %v2414 = vld [vmem:[%s2404 + $0x48] sm:$0xff]
        %v2415 = vld [vmem:[%s2404 + $0x50] sm:$0xff]
        %v2416 = vld [vmem:[%s2404 + $0x58] sm:$0xff]
        %v2417 = vld [vmem:[%s2404 + $0x60] sm:$0xff]
        %v2418 = vld [vmem:[%s2404 + $0x68] sm:$0xff]
        %v2420 = vsel %vm660, %v2401, 0
        %v2423 = vsel %vm660, %v2402, 0
        %v2426 = vsel %vm660, %v2403, 0
        %2428 = vmatprep.subr.mxu0 0.0
        %2429 = vmatpush1.msra.mxu0 0.0
        %2430 = vmatprep.subr.mxu0 0.0
        %2431 = vmatpush1.msra.mxu0 0.0
        %2432 = vmatprep.subr.mxu0 0.0
        %2433 = vmatpush1.msra.mxu0 %v2418
        %2434 = vmatprep.subr.mxu0 0.0
        %2435 = vmatpush1.msra.mxu0 %v2417
        %2436 = vmatprep.subr.mxu0 0.0
        %2437 = vmatpush1.msra.mxu0 %v2416
        %2438 = vmatprep.subr.mxu0 0.0
        %2439 = vmatpush1.msra.mxu0 %v2415
        %2440 = vmatprep.subr.mxu0 0.0
        %2441 = vmatpush1.msra.mxu0 %v2414
        %2442 = vmatprep.subr.mxu0 0.0
        %2443 = vmatpush1.msra.mxu0 %v2413
        %2444 = vmatprep.subr.mxu0 0.0
        %2445 = vmatpush1.msra.mxu0 %v2412
        %2446 = vmatprep.subr.mxu0 0.0
        %2447 = vmatpush1.msra.mxu0 %v2411
        %2448 = vmatprep.subr.mxu0 0.0
        %2449 = vmatpush1.msra.mxu0 %v2410
        %2450 = vmatprep.subr.mxu0 0.0
        %2451 = vmatpush1.msra.mxu0 %v2409
        %2452 = vmatprep.subr.mxu0 0.0
        %2453 = vmatpush1.msra.mxu0 %v2408
        %2454 = vmatprep.subr.mxu0 0.0
        %2455 = vmatpush1.msra.mxu0 %v2407
        %2456 = vmatprep.subr.mxu0 0.0
        %2457 = vmatpush1.msra.mxu0 %v2406
        %2458 = vmatprep.subr.mxu0 0.0
        %2459 = vmatpush1.msra.mxu0 %v2405
        %2460 = vmatprep.subr.mxu0 0.0
        %2461 = vmatpush2.msra.mxu0 0.0
        %2462 = vmatprep.subr.mxu0 0.0
        %2463 = vmatpush2.msra.mxu0 0.0
        %2464 = vmatprep.subr.mxu0 0.0
        %2465 = vmatpush2.msra.mxu0 0.0
        %2466 = vmatprep.subr.mxu0 0.0
        %2467 = vmatpush2.msra.mxu0 0.0
        %2468 = vmatprep.subr.mxu0 0.0
        %2469 = vmatpush2.msra.mxu0 0.0
        %2470 = vmatprep.subr.mxu0 0.0
        %2471 = vmatpush2.msra.mxu0 0.0
        %2472 = vmatprep.subr.mxu0 0.0
        %2473 = vmatpush2.msra.mxu0 0.0
        %2474 = vmatprep.subr.mxu0 0.0
        %2475 = vmatpush2.msra.mxu0 0.0
        %2476 = vmatprep.subr.mxu0 0.0
        %2477 = vmatpush2.msra.mxu0 0.0
        %2478 = vmatprep.subr.mxu0 0.0
        %2479 = vmatpush2.msra.mxu0 0.0
        %2480 = vmatprep.subr.mxu0 0.0
        %2481 = vmatpush2.msra.mxu0 0.0
        %2482 = vmatprep.subr.mxu0 0.0
        %2483 = vmatpush2.msra.mxu0 0.0
        %2484 = vmatprep.subr.mxu0 0.0
        %2485 = vmatpush2.msra.mxu0 0.0
        %2486 = vmatprep.subr.mxu0 0.0
        %2487 = vmatpush2.msra.mxu0 0.0
        %2488 = vmatprep.subr.mxu0 0.0
        %2489 = vmatpush2.msra.mxu0 0.0
        %2490 = vmatprep.subr.mxu0 0.0
        %2491 = vmatpush2.msra.mxu0 0.0
        %2492 = vmatprep.mubr.f32.mxu0 0.0
        %2493 = vmatmul.mubr.f32.gmra.mxu0 %v2420
        %v2494 = vpop.f32.mrf.mxu0
        %v2495 = vadd.f32 0.0, %v2494
        %v2496 = vpop.f32.mrf.mxu0
        %2497 = vmatprep.mubr.f32.mxu0 0.0
        %2498 = vmatmul.mubr.f32.gmra.mxu0 %v2423
        %v2499 = vpop.f32.mrf.mxu0
        %v2500 = vadd.f32 0.0, %v2499
        %v2501 = vpop.f32.mrf.mxu0
        %2502 = vmatprep.mubr.f32.mxu0 0.0
        %2503 = vmatmul.mubr.f32.gmra.mxu0 %v2426
        %v2504 = vpop.f32.mrf.mxu0
        %v2505 = vadd.f32 0.0, %v2504
        %v2506 = vpop.f32.mrf.mxu0
        %2507 = vdwg.mxu0
        %v2508 = vadd.f32 %v2388, %v2495
        %v2509 = vadd.f32 %v2393, %v2500
        %v2510 = vadd.f32 %v2398, %v2505
        %v2511 = vld [vmem:[%s8] sm:$0x1]
        %v2513 = vlaneseq
        %v2514 = vshrl.u32 %v2513, 7
        %v2515 = vsub.s32 0, %v2514
        %v2516 = vrot.slane %v2511, %v2515
        %v2518 = vadd.f32 %v2508, %v2516
        %v2519 = vadd.f32 %v2509, %v2516
        %v2520 = vadd.f32 %v2510, %v2516
        %s2521 = sld [smem:[#allocation16 + $0x3]]
        %vm2522 = vcmp.ge.f32.partialorder %v2518, 0.0
        %vm2523 = vcmp.ge.f32.partialorder %v2519, 0.0
        %vm2524 = vcmp.ge.f32.partialorder %v2520, 0.0
        %v2525 = vstv %s2521
        %v2526 = vmul.f32 %v2525, %v2518
        %v2527 = vmul.f32 %v2525, %v2519
        %v2528 = vmul.f32 %v2525, %v2520
        %v2529 = vsel %vm2522, %v2518, %v2526
        %v2530 = vsel %vm2523, %v2519, %v2527
        %v2531 = vsel %vm2524, %v2520, %v2528
        %2532 = vst.msk [vmem:[#allocation4 + $0x1] sm:$0xff] %vm660, %v2529
        %2533 = vst.msk [vmem:[#allocation4 + $0x9] sm:$0xff] %vm660, %v2530
        %2534 = vst.msk [vmem:[#allocation4 + $0x11] sm:$0xf] %vm2186, %v2531
        %v2535 = vld [vmem:[#allocation4] sm:$0xff]
        %v2536 = vld [vmem:[#allocation4 + $0x8] sm:$0xff]
        %v2537 = vld [vmem:[#allocation4 + $0x10] sm:$0xf]
        %v2538 = vld [vmem:[#allocation14] sm:$0xff]
        %v2539 = vld [vmem:[#allocation14 + $0x8] sm:$0xff]
        %v2540 = vld [vmem:[#allocation14 + $0x10] sm:$0xff]
        %v2541 = vld [vmem:[#allocation14 + $0x18] sm:$0xff]
        %v2542 = vld [vmem:[#allocation14 + $0x20] sm:$0xff]
        %v2543 = vld [vmem:[#allocation14 + $0x28] sm:$0xff]
        %v2544 = vld [vmem:[#allocation14 + $0x30] sm:$0xff]
        %v2545 = vld [vmem:[#allocation14 + $0x38] sm:$0xff]
        %v2546 = vld [vmem:[#allocation14 + $0x40] sm:$0xff]
        %v2547 = vld [vmem:[#allocation14 + $0x48] sm:$0xff]
        %v2548 = vld [vmem:[#allocation14 + $0x50] sm:$0xff]
        %v2549 = vld [vmem:[#allocation14 + $0x58] sm:$0xff]
        %v2550 = vld [vmem:[#allocation14 + $0x60] sm:$0xff]
        %v2551 = vld [vmem:[#allocation14 + $0x68] sm:$0xff]
        %v2552 = vld [vmem:[#allocation4 + $0x1] sm:$0xff]
        %v2553 = vld [vmem:[#allocation4 + $0x9] sm:$0xff]
        %v2554 = vld [vmem:[#allocation4 + $0x11] sm:$0xf]
        %s2555 = scalar_lea.vmem [#allocation14], 112
        %v2556 = vld [vmem:[%s2555] sm:$0xff]
        %v2557 = vld [vmem:[%s2555 + $0x8] sm:$0xff]
        %v2558 = vld [vmem:[%s2555 + $0x10] sm:$0xff]
        %v2559 = vld [vmem:[%s2555 + $0x18] sm:$0xff]
        %v2560 = vld [vmem:[%s2555 + $0x20] sm:$0xff]
        %v2561 = vld [vmem:[%s2555 + $0x28] sm:$0xff]
        %v2562 = vld [vmem:[%s2555 + $0x30] sm:$0xff]
        %v2563 = vld [vmem:[%s2555 + $0x38] sm:$0xff]
        %v2564 = vld [vmem:[%s2555 + $0x40] sm:$0xff]
        %v2565 = vld [vmem:[%s2555 + $0x48] sm:$0xff]
        %v2566 = vld [vmem:[%s2555 + $0x50] sm:$0xff]
        %v2567 = vld [vmem:[%s2555 + $0x58] sm:$0xff]
        %v2568 = vld [vmem:[%s2555 + $0x60] sm:$0xff]
        %v2569 = vld [vmem:[%s2555 + $0x68] sm:$0xff]
        %v2571 = vsel %vm660, %v2552, 0
        %v2574 = vsel %vm660, %v2553, 0
        %v2577 = vsel %vm660, %v2554, 0
        %2579 = vmatprep.subr.mxu0 0.0
        %2580 = vmatpush1.msra.mxu0 0.0
        %2581 = vmatprep.subr.mxu0 0.0
        %2582 = vmatpush1.msra.mxu0 0.0
        %2583 = vmatprep.subr.mxu0 0.0
        %2584 = vmatpush1.msra.mxu0 %v2569
        %2585 = vmatprep.subr.mxu0 0.0
        %2586 = vmatpush1.msra.mxu0 %v2568
        %2587 = vmatprep.subr.mxu0 0.0
        %2588 = vmatpush1.msra.mxu0 %v2567
        %2589 = vmatprep.subr.mxu0 0.0
        %2590 = vmatpush1.msra.mxu0 %v2566
        %2591 = vmatprep.subr.mxu0 0.0
        %2592 = vmatpush1.msra.mxu0 %v2565
        %2593 = vmatprep.subr.mxu0 0.0
        %2594 = vmatpush1.msra.mxu0 %v2564
        %2595 = vmatprep.subr.mxu0 0.0
        %2596 = vmatpush1.msra.mxu0 %v2563
        %2597 = vmatprep.subr.mxu0 0.0
        %2598 = vmatpush1.msra.mxu0 %v2562
        %2599 = vmatprep.subr.mxu0 0.0
        %2600 = vmatpush1.msra.mxu0 %v2561
        %2601 = vmatprep.subr.mxu0 0.0
        %2602 = vmatpush1.msra.mxu0 %v2560
        %2603 = vmatprep.subr.mxu0 0.0
        %2604 = vmatpush1.msra.mxu0 %v2559
        %2605 = vmatprep.subr.mxu0 0.0
        %2606 = vmatpush1.msra.mxu0 %v2558
        %2607 = vmatprep.subr.mxu0 0.0
        %2608 = vmatpush1.msra.mxu0 %v2557
        %2609 = vmatprep.subr.mxu0 0.0
        %2610 = vmatpush1.msra.mxu0 %v2556
        %2611 = vmatprep.subr.mxu0 0.0
        %2612 = vmatpush2.msra.mxu0 0.0
        %2613 = vmatprep.subr.mxu0 0.0
        %2614 = vmatpush2.msra.mxu0 0.0
        %2615 = vmatprep.subr.mxu0 0.0
        %2616 = vmatpush2.msra.mxu0 0.0
        %2617 = vmatprep.subr.mxu0 0.0
        %2618 = vmatpush2.msra.mxu0 0.0
        %2619 = vmatprep.subr.mxu0 0.0
        %2620 = vmatpush2.msra.mxu0 0.0
        %2621 = vmatprep.subr.mxu0 0.0
        %2622 = vmatpush2.msra.mxu0 0.0
        %2623 = vmatprep.subr.mxu0 0.0
        %2624 = vmatpush2.msra.mxu0 0.0
        %2625 = vmatprep.subr.mxu0 0.0
        %2626 = vmatpush2.msra.mxu0 0.0
        %2627 = vmatprep.subr.mxu0 0.0
        %2628 = vmatpush2.msra.mxu0 0.0
        %2629 = vmatprep.subr.mxu0 0.0
        %2630 = vmatpush2.msra.mxu0 0.0
        %2631 = vmatprep.subr.mxu0 0.0
        %2632 = vmatpush2.msra.mxu0 0.0
        %2633 = vmatprep.subr.mxu0 0.0
        %2634 = vmatpush2.msra.mxu0 0.0
        %2635 = vmatprep.subr.mxu0 0.0
        %2636 = vmatpush2.msra.mxu0 0.0
        %2637 = vmatprep.subr.mxu0 0.0
        %2638 = vmatpush2.msra.mxu0 0.0
        %2639 = vmatprep.subr.mxu0 0.0
        %2640 = vmatpush2.msra.mxu0 0.0
        %2641 = vmatprep.subr.mxu0 0.0
        %2642 = vmatpush2.msra.mxu0 0.0
        %2643 = vmatprep.mubr.f32.mxu0 0.0
        %2644 = vmatmul.mubr.f32.gmra.mxu0 %v2571
        %v2645 = vpop.f32.mrf.mxu0
        %v2646 = vadd.f32 0.0, %v2645
        %v2647 = vpop.f32.mrf.mxu0
        %2648 = vmatprep.mubr.f32.mxu0 0.0
        %2649 = vmatmul.mubr.f32.gmra.mxu0 %v2574
        %v2650 = vpop.f32.mrf.mxu0
        %v2651 = vadd.f32 0.0, %v2650
        %v2652 = vpop.f32.mrf.mxu0
        %2653 = vmatprep.mubr.f32.mxu0 0.0
        %2654 = vmatmul.mubr.f32.gmra.mxu0 %v2577
        %v2655 = vpop.f32.mrf.mxu0
        %v2656 = vadd.f32 0.0, %v2655
        %v2657 = vpop.f32.mrf.mxu0
        %2658 = vdwg.mxu0
        %v2660 = vsel %vm660, %v2535, 0
        %v2663 = vsel %vm660, %v2536, 0
        %v2666 = vsel %vm660, %v2537, 0
        %2668 = vmatprep.subr.mxu0 0.0
        %2669 = vmatpush1.msra.mxu0 0.0
        %2670 = vmatprep.subr.mxu0 0.0
        %2671 = vmatpush1.msra.mxu0 0.0
        %2672 = vmatprep.subr.mxu0 0.0
        %2673 = vmatpush1.msra.mxu0 %v2551
        %2674 = vmatprep.subr.mxu0 0.0
        %2675 = vmatpush1.msra.mxu0 %v2550
        %2676 = vmatprep.subr.mxu0 0.0
        %2677 = vmatpush1.msra.mxu0 %v2549
        %2678 = vmatprep.subr.mxu0 0.0
        %2679 = vmatpush1.msra.mxu0 %v2548
        %2680 = vmatprep.subr.mxu0 0.0
        %2681 = vmatpush1.msra.mxu0 %v2547
        %2682 = vmatprep.subr.mxu0 0.0
        %2683 = vmatpush1.msra.mxu0 %v2546
        %2684 = vmatprep.subr.mxu0 0.0
        %2685 = vmatpush1.msra.mxu0 %v2545
        %2686 = vmatprep.subr.mxu0 0.0
        %2687 = vmatpush1.msra.mxu0 %v2544
        %2688 = vmatprep.subr.mxu0 0.0
        %2689 = vmatpush1.msra.mxu0 %v2543
        %2690 = vmatprep.subr.mxu0 0.0
        %2691 = vmatpush1.msra.mxu0 %v2542
        %2692 = vmatprep.subr.mxu0 0.0
        %2693 = vmatpush1.msra.mxu0 %v2541
        %2694 = vmatprep.subr.mxu0 0.0
        %2695 = vmatpush1.msra.mxu0 %v2540
        %2696 = vmatprep.subr.mxu0 0.0
        %2697 = vmatpush1.msra.mxu0 %v2539
        %2698 = vmatprep.subr.mxu0 0.0
        %2699 = vmatpush1.msra.mxu0 %v2538
        %2700 = vmatprep.subr.mxu0 0.0
        %2701 = vmatpush2.msra.mxu0 0.0
        %2702 = vmatprep.subr.mxu0 0.0
        %2703 = vmatpush2.msra.mxu0 0.0
        %2704 = vmatprep.subr.mxu0 0.0
        %2705 = vmatpush2.msra.mxu0 0.0
        %2706 = vmatprep.subr.mxu0 0.0
        %2707 = vmatpush2.msra.mxu0 0.0
        %2708 = vmatprep.subr.mxu0 0.0
        %2709 = vmatpush2.msra.mxu0 0.0
        %2710 = vmatprep.subr.mxu0 0.0
        %2711 = vmatpush2.msra.mxu0 0.0
        %2712 = vmatprep.subr.mxu0 0.0
        %2713 = vmatpush2.msra.mxu0 0.0
        %2714 = vmatprep.subr.mxu0 0.0
        %2715 = vmatpush2.msra.mxu0 0.0
        %2716 = vmatprep.subr.mxu0 0.0
        %2717 = vmatpush2.msra.mxu0 0.0
        %2718 = vmatprep.subr.mxu0 0.0
        %2719 = vmatpush2.msra.mxu0 0.0
        %2720 = vmatprep.subr.mxu0 0.0
        %2721 = vmatpush2.msra.mxu0 0.0
        %2722 = vmatprep.subr.mxu0 0.0
        %2723 = vmatpush2.msra.mxu0 0.0
        %2724 = vmatprep.subr.mxu0 0.0
        %2725 = vmatpush2.msra.mxu0 0.0
        %2726 = vmatprep.subr.mxu0 0.0
        %2727 = vmatpush2.msra.mxu0 0.0
        %2728 = vmatprep.subr.mxu0 0.0
        %2729 = vmatpush2.msra.mxu0 0.0
        %2730 = vmatprep.subr.mxu0 0.0
        %2731 = vmatpush2.msra.mxu0 0.0
        %2732 = vmatprep.mubr.f32.mxu0 0.0
        %2733 = vmatmul.mubr.f32.gmra.mxu0 %v2660
        %v2734 = vpop.f32.mrf.mxu0
        %v2735 = vadd.f32 %v2646, %v2734
        %v2736 = vpop.f32.mrf.mxu0
        %2737 = vmatprep.mubr.f32.mxu0 0.0
        %2738 = vmatmul.mubr.f32.gmra.mxu0 %v2663
        %v2739 = vpop.f32.mrf.mxu0
        %v2740 = vadd.f32 %v2651, %v2739
        %v2741 = vpop.f32.mrf.mxu0
        %2742 = vmatprep.mubr.f32.mxu0 0.0
        %2743 = vmatmul.mubr.f32.gmra.mxu0 %v2666
        %v2744 = vpop.f32.mrf.mxu0
        %v2745 = vadd.f32 %v2656, %v2744
        %v2746 = vpop.f32.mrf.mxu0
        %2747 = vdwg.mxu0
        %v2748 = vld [vmem:[#allocation4 + $0x2] sm:$0xff]
        %v2749 = vld [vmem:[#allocation4 + $0xa] sm:$0xff]
        %v2750 = vld [vmem:[#allocation4 + $0x12] sm:$0xf]
        %s2751 = scalar_lea.vmem [#allocation14], 224
        %v2752 = vld [vmem:[%s2751] sm:$0xff]
        %v2753 = vld [vmem:[%s2751 + $0x8] sm:$0xff]
        %v2754 = vld [vmem:[%s2751 + $0x10] sm:$0xff]
        %v2755 = vld [vmem:[%s2751 + $0x18] sm:$0xff]
        %v2756 = vld [vmem:[%s2751 + $0x20] sm:$0xff]
        %v2757 = vld [vmem:[%s2751 + $0x28] sm:$0xff]
        %v2758 = vld [vmem:[%s2751 + $0x30] sm:$0xff]
        %v2759 = vld [vmem:[%s2751 + $0x38] sm:$0xff]
        %v2760 = vld [vmem:[%s2751 + $0x40] sm:$0xff]
        %v2761 = vld [vmem:[%s2751 + $0x48] sm:$0xff]
        %v2762 = vld [vmem:[%s2751 + $0x50] sm:$0xff]
        %v2763 = vld [vmem:[%s2751 + $0x58] sm:$0xff]
        %v2764 = vld [vmem:[%s2751 + $0x60] sm:$0xff]
        %v2765 = vld [vmem:[%s2751 + $0x68] sm:$0xff]
        %v2767 = vsel %vm660, %v2748, 0
        %v2770 = vsel %vm660, %v2749, 0
        %v2773 = vsel %vm660, %v2750, 0
        %2775 = vmatprep.subr.mxu0 0.0
        %2776 = vmatpush1.msra.mxu0 0.0
        %2777 = vmatprep.subr.mxu0 0.0
        %2778 = vmatpush1.msra.mxu0 0.0
        %2779 = vmatprep.subr.mxu0 0.0
        %2780 = vmatpush1.msra.mxu0 %v2765
        %2781 = vmatprep.subr.mxu0 0.0
        %2782 = vmatpush1.msra.mxu0 %v2764
        %2783 = vmatprep.subr.mxu0 0.0
        %2784 = vmatpush1.msra.mxu0 %v2763
        %2785 = vmatprep.subr.mxu0 0.0
        %2786 = vmatpush1.msra.mxu0 %v2762
        %2787 = vmatprep.subr.mxu0 0.0
        %2788 = vmatpush1.msra.mxu0 %v2761
        %2789 = vmatprep.subr.mxu0 0.0
        %2790 = vmatpush1.msra.mxu0 %v2760
        %2791 = vmatprep.subr.mxu0 0.0
        %2792 = vmatpush1.msra.mxu0 %v2759
        %2793 = vmatprep.subr.mxu0 0.0
        %2794 = vmatpush1.msra.mxu0 %v2758
        %2795 = vmatprep.subr.mxu0 0.0
        %2796 = vmatpush1.msra.mxu0 %v2757
        %2797 = vmatprep.subr.mxu0 0.0
        %2798 = vmatpush1.msra.mxu0 %v2756
        %2799 = vmatprep.subr.mxu0 0.0
        %2800 = vmatpush1.msra.mxu0 %v2755
        %2801 = vmatprep.subr.mxu0 0.0
        %2802 = vmatpush1.msra.mxu0 %v2754
        %2803 = vmatprep.subr.mxu0 0.0
        %2804 = vmatpush1.msra.mxu0 %v2753
        %2805 = vmatprep.subr.mxu0 0.0
        %2806 = vmatpush1.msra.mxu0 %v2752
        %2807 = vmatprep.subr.mxu0 0.0
        %2808 = vmatpush2.msra.mxu0 0.0
        %2809 = vmatprep.subr.mxu0 0.0
        %2810 = vmatpush2.msra.mxu0 0.0
        %2811 = vmatprep.subr.mxu0 0.0
        %2812 = vmatpush2.msra.mxu0 0.0
        %2813 = vmatprep.subr.mxu0 0.0
        %2814 = vmatpush2.msra.mxu0 0.0
        %2815 = vmatprep.subr.mxu0 0.0
        %2816 = vmatpush2.msra.mxu0 0.0
        %2817 = vmatprep.subr.mxu0 0.0
        %2818 = vmatpush2.msra.mxu0 0.0
        %2819 = vmatprep.subr.mxu0 0.0
        %2820 = vmatpush2.msra.mxu0 0.0
        %2821 = vmatprep.subr.mxu0 0.0
        %2822 = vmatpush2.msra.mxu0 0.0
        %2823 = vmatprep.subr.mxu0 0.0
        %2824 = vmatpush2.msra.mxu0 0.0
        %2825 = vmatprep.subr.mxu0 0.0
        %2826 = vmatpush2.msra.mxu0 0.0
        %2827 = vmatprep.subr.mxu0 0.0
        %2828 = vmatpush2.msra.mxu0 0.0
        %2829 = vmatprep.subr.mxu0 0.0
        %2830 = vmatpush2.msra.mxu0 0.0
        %2831 = vmatprep.subr.mxu0 0.0
        %2832 = vmatpush2.msra.mxu0 0.0
        %2833 = vmatprep.subr.mxu0 0.0
        %2834 = vmatpush2.msra.mxu0 0.0
        %2835 = vmatprep.subr.mxu0 0.0
        %2836 = vmatpush2.msra.mxu0 0.0
        %2837 = vmatprep.subr.mxu0 0.0
        %2838 = vmatpush2.msra.mxu0 0.0
        %2839 = vmatprep.mubr.f32.mxu0 0.0
        %2840 = vmatmul.mubr.f32.gmra.mxu0 %v2767
        %v2841 = vpop.f32.mrf.mxu0
        %v2842 = vadd.f32 0.0, %v2841
        %v2843 = vpop.f32.mrf.mxu0
        %2844 = vmatprep.mubr.f32.mxu0 0.0
        %2845 = vmatmul.mubr.f32.gmra.mxu0 %v2770
        %v2846 = vpop.f32.mrf.mxu0
        %v2847 = vadd.f32 0.0, %v2846
        %v2848 = vpop.f32.mrf.mxu0
        %2849 = vmatprep.mubr.f32.mxu0 0.0
        %2850 = vmatmul.mubr.f32.gmra.mxu0 %v2773
        %v2851 = vpop.f32.mrf.mxu0
        %v2852 = vadd.f32 0.0, %v2851
        %v2853 = vpop.f32.mrf.mxu0
        %2854 = vdwg.mxu0
        %v2855 = vadd.f32 %v2735, %v2842
        %v2856 = vadd.f32 %v2740, %v2847
        %v2857 = vadd.f32 %v2745, %v2852
        %v2858 = vld [vmem:[%s10] sm:$0x1]
        %v2860 = vlaneseq
        %v2861 = vshrl.u32 %v2860, 7
        %v2862 = vsub.s32 0, %v2861
        %v2863 = vrot.slane %v2858, %v2862
        %v2865 = vadd.f32 %v2855, %v2863
        %v2866 = vadd.f32 %v2856, %v2863
        %v2867 = vadd.f32 %v2857, %v2863
        %s2868 = sld [smem:[#allocation16 + $0x4]]
        %vm2869 = vcmp.ge.f32.partialorder %v2865, 0.0
        %vm2870 = vcmp.ge.f32.partialorder %v2866, 0.0
        %vm2871 = vcmp.ge.f32.partialorder %v2867, 0.0
        %v2872 = vstv %s2868
        %v2873 = vmul.f32 %v2872, %v2865
        %v2874 = vmul.f32 %v2872, %v2866
        %v2875 = vmul.f32 %v2872, %v2867
        %v2876 = vsel %vm2869, %v2865, %v2873
        %v2877 = vsel %vm2870, %v2866, %v2874
        %v2878 = vsel %vm2871, %v2867, %v2875
        %2879 = vst.msk [vmem:[#allocation5 + $0x1] sm:$0xff] %vm660, %v2876
        %2880 = vst.msk [vmem:[#allocation5 + $0x9] sm:$0xff] %vm660, %v2877
        %2881 = vst.msk [vmem:[#allocation5 + $0x11] sm:$0xf] %vm2186, %v2878
        %v2882 = vld [vmem:[#allocation5] sm:$0xff]
        %v2883 = vld [vmem:[#allocation5 + $0x8] sm:$0xff]
        %v2884 = vld [vmem:[#allocation5 + $0x10] sm:$0xf]
        %v2885 = vld [vmem:[%s11] sm:$0xff]
        %v2886 = vld [vmem:[%s11 + $0x8] sm:$0xff]
        %v2887 = vld [vmem:[%s11 + $0x10] sm:$0xff]
        %v2888 = vld [vmem:[%s11 + $0x18] sm:$0xff]
        %v2889 = vld [vmem:[%s11 + $0x20] sm:$0xff]
        %v2890 = vld [vmem:[%s11 + $0x28] sm:$0xff]
        %v2891 = vld [vmem:[%s11 + $0x30] sm:$0xff]
        %v2892 = vld [vmem:[%s11 + $0x38] sm:$0xff]
        %v2893 = vld [vmem:[%s11 + $0x40] sm:$0xff]
        %v2894 = vld [vmem:[%s11 + $0x48] sm:$0xff]
        %v2895 = vld [vmem:[%s11 + $0x50] sm:$0xff]
        %v2896 = vld [vmem:[%s11 + $0x58] sm:$0xff]
        %v2897 = vld [vmem:[%s11 + $0x60] sm:$0xff]
        %v2898 = vld [vmem:[%s11 + $0x68] sm:$0xff]
        %v2899 = vld [vmem:[#allocation5 + $0x1] sm:$0xff]
        %v2900 = vld [vmem:[#allocation5 + $0x9] sm:$0xff]
        %v2901 = vld [vmem:[#allocation5 + $0x11] sm:$0xf]
        %s2902 = scalar_lea.vmem %s11, 112
        %v2903 = vld [vmem:[%s2902] sm:$0xff]
        %v2904 = vld [vmem:[%s2902 + $0x8] sm:$0xff]
        %v2905 = vld [vmem:[%s2902 + $0x10] sm:$0xff]
        %v2906 = vld [vmem:[%s2902 + $0x18] sm:$0xff]
        %v2907 = vld [vmem:[%s2902 + $0x20] sm:$0xff]
        %v2908 = vld [vmem:[%s2902 + $0x28] sm:$0xff]
        %v2909 = vld [vmem:[%s2902 + $0x30] sm:$0xff]
        %v2910 = vld [vmem:[%s2902 + $0x38] sm:$0xff]
        %v2911 = vld [vmem:[%s2902 + $0x40] sm:$0xff]
        %v2912 = vld [vmem:[%s2902 + $0x48] sm:$0xff]
        %v2913 = vld [vmem:[%s2902 + $0x50] sm:$0xff]
        %v2914 = vld [vmem:[%s2902 + $0x58] sm:$0xff]
        %v2915 = vld [vmem:[%s2902 + $0x60] sm:$0xff]
        %v2916 = vld [vmem:[%s2902 + $0x68] sm:$0xff]
        %v2918 = vsel %vm660, %v2899, 0
        %v2921 = vsel %vm660, %v2900, 0
        %v2924 = vsel %vm660, %v2901, 0
        %2926 = vmatprep.subr.mxu0 0.0
        %2927 = vmatpush1.msra.mxu0 0.0
        %2928 = vmatprep.subr.mxu0 0.0
        %2929 = vmatpush1.msra.mxu0 0.0
        %2930 = vmatprep.subr.mxu0 0.0
        %2931 = vmatpush1.msra.mxu0 %v2916
        %2932 = vmatprep.subr.mxu0 0.0
        %2933 = vmatpush1.msra.mxu0 %v2915
        %2934 = vmatprep.subr.mxu0 0.0
        %2935 = vmatpush1.msra.mxu0 %v2914
        %2936 = vmatprep.subr.mxu0 0.0
        %2937 = vmatpush1.msra.mxu0 %v2913
        %2938 = vmatprep.subr.mxu0 0.0
        %2939 = vmatpush1.msra.mxu0 %v2912
        %2940 = vmatprep.subr.mxu0 0.0
        %2941 = vmatpush1.msra.mxu0 %v2911
        %2942 = vmatprep.subr.mxu0 0.0
        %2943 = vmatpush1.msra.mxu0 %v2910
        %2944 = vmatprep.subr.mxu0 0.0
        %2945 = vmatpush1.msra.mxu0 %v2909
        %2946 = vmatprep.subr.mxu0 0.0
        %2947 = vmatpush1.msra.mxu0 %v2908
        %2948 = vmatprep.subr.mxu0 0.0
        %2949 = vmatpush1.msra.mxu0 %v2907
        %2950 = vmatprep.subr.mxu0 0.0
        %2951 = vmatpush1.msra.mxu0 %v2906
        %2952 = vmatprep.subr.mxu0 0.0
        %2953 = vmatpush1.msra.mxu0 %v2905
        %2954 = vmatprep.subr.mxu0 0.0
        %2955 = vmatpush1.msra.mxu0 %v2904
        %2956 = vmatprep.subr.mxu0 0.0
        %2957 = vmatpush1.msra.mxu0 %v2903
        %2958 = vmatprep.subr.mxu0 0.0
        %2959 = vmatpush2.msra.mxu0 0.0
        %2960 = vmatprep.subr.mxu0 0.0
        %2961 = vmatpush2.msra.mxu0 0.0
        %2962 = vmatprep.subr.mxu0 0.0
        %2963 = vmatpush2.msra.mxu0 0.0
        %2964 = vmatprep.subr.mxu0 0.0
        %2965 = vmatpush2.msra.mxu0 0.0
        %2966 = vmatprep.subr.mxu0 0.0
        %2967 = vmatpush2.msra.mxu0 0.0
        %2968 = vmatprep.subr.mxu0 0.0
        %2969 = vmatpush2.msra.mxu0 0.0
        %2970 = vmatprep.subr.mxu0 0.0
        %2971 = vmatpush2.msra.mxu0 0.0
        %2972 = vmatprep.subr.mxu0 0.0
        %2973 = vmatpush2.msra.mxu0 0.0
        %2974 = vmatprep.subr.mxu0 0.0
        %2975 = vmatpush2.msra.mxu0 0.0
        %2976 = vmatprep.subr.mxu0 0.0
        %2977 = vmatpush2.msra.mxu0 0.0
        %2978 = vmatprep.subr.mxu0 0.0
        %2979 = vmatpush2.msra.mxu0 0.0
        %2980 = vmatprep.subr.mxu0 0.0
        %2981 = vmatpush2.msra.mxu0 0.0
        %2982 = vmatprep.subr.mxu0 0.0
        %2983 = vmatpush2.msra.mxu0 0.0
        %2984 = vmatprep.subr.mxu0 0.0
        %2985 = vmatpush2.msra.mxu0 0.0
        %2986 = vmatprep.subr.mxu0 0.0
        %2987 = vmatpush2.msra.mxu0 0.0
        %2988 = vmatprep.subr.mxu0 0.0
        %2989 = vmatpush2.msra.mxu0 0.0
        %2990 = vmatprep.mubr.f32.mxu0 0.0
        %2991 = vmatmul.mubr.f32.gmra.mxu0 %v2918
        %v2992 = vpop.f32.mrf.mxu0
        %v2993 = vadd.f32 0.0, %v2992
        %v2994 = vpop.f32.mrf.mxu0
        %2995 = vmatprep.mubr.f32.mxu0 0.0
        %2996 = vmatmul.mubr.f32.gmra.mxu0 %v2921
        %v2997 = vpop.f32.mrf.mxu0
        %v2998 = vadd.f32 0.0, %v2997
        %v2999 = vpop.f32.mrf.mxu0
        %3000 = vmatprep.mubr.f32.mxu0 0.0
        %3001 = vmatmul.mubr.f32.gmra.mxu0 %v2924
        %v3002 = vpop.f32.mrf.mxu0
        %v3003 = vadd.f32 0.0, %v3002
        %v3004 = vpop.f32.mrf.mxu0
        %3005 = vdwg.mxu0
        %v3007 = vsel %vm660, %v2882, 0
        %v3010 = vsel %vm660, %v2883, 0
        %v3013 = vsel %vm660, %v2884, 0
        %3015 = vmatprep.subr.mxu0 0.0
        %3016 = vmatpush1.msra.mxu0 0.0
        %3017 = vmatprep.subr.mxu0 0.0
        %3018 = vmatpush1.msra.mxu0 0.0
        %3019 = vmatprep.subr.mxu0 0.0
        %3020 = vmatpush1.msra.mxu0 %v2898
        %3021 = vmatprep.subr.mxu0 0.0
        %3022 = vmatpush1.msra.mxu0 %v2897
        %3023 = vmatprep.subr.mxu0 0.0
        %3024 = vmatpush1.msra.mxu0 %v2896
        %3025 = vmatprep.subr.mxu0 0.0
        %3026 = vmatpush1.msra.mxu0 %v2895
        %3027 = vmatprep.subr.mxu0 0.0
        %3028 = vmatpush1.msra.mxu0 %v2894
        %3029 = vmatprep.subr.mxu0 0.0
        %3030 = vmatpush1.msra.mxu0 %v2893
        %3031 = vmatprep.subr.mxu0 0.0
        %3032 = vmatpush1.msra.mxu0 %v2892
        %3033 = vmatprep.subr.mxu0 0.0
        %3034 = vmatpush1.msra.mxu0 %v2891
        %3035 = vmatprep.subr.mxu0 0.0
        %3036 = vmatpush1.msra.mxu0 %v2890
        %3037 = vmatprep.subr.mxu0 0.0
        %3038 = vmatpush1.msra.mxu0 %v2889
        %3039 = vmatprep.subr.mxu0 0.0
        %3040 = vmatpush1.msra.mxu0 %v2888
        %3041 = vmatprep.subr.mxu0 0.0
        %3042 = vmatpush1.msra.mxu0 %v2887
        %3043 = vmatprep.subr.mxu0 0.0
        %3044 = vmatpush1.msra.mxu0 %v2886
        %3045 = vmatprep.subr.mxu0 0.0
        %3046 = vmatpush1.msra.mxu0 %v2885
        %3047 = vmatprep.subr.mxu0 0.0
        %3048 = vmatpush2.msra.mxu0 0.0
        %3049 = vmatprep.subr.mxu0 0.0
        %3050 = vmatpush2.msra.mxu0 0.0
        %3051 = vmatprep.subr.mxu0 0.0
        %3052 = vmatpush2.msra.mxu0 0.0
        %3053 = vmatprep.subr.mxu0 0.0
        %3054 = vmatpush2.msra.mxu0 0.0
        %3055 = vmatprep.subr.mxu0 0.0
        %3056 = vmatpush2.msra.mxu0 0.0
        %3057 = vmatprep.subr.mxu0 0.0
        %3058 = vmatpush2.msra.mxu0 0.0
        %3059 = vmatprep.subr.mxu0 0.0
        %3060 = vmatpush2.msra.mxu0 0.0
        %3061 = vmatprep.subr.mxu0 0.0
        %3062 = vmatpush2.msra.mxu0 0.0
        %3063 = vmatprep.subr.mxu0 0.0
        %3064 = vmatpush2.msra.mxu0 0.0
        %3065 = vmatprep.subr.mxu0 0.0
        %3066 = vmatpush2.msra.mxu0 0.0
        %3067 = vmatprep.subr.mxu0 0.0
        %3068 = vmatpush2.msra.mxu0 0.0
        %3069 = vmatprep.subr.mxu0 0.0
        %3070 = vmatpush2.msra.mxu0 0.0
        %3071 = vmatprep.subr.mxu0 0.0
        %3072 = vmatpush2.msra.mxu0 0.0
        %3073 = vmatprep.subr.mxu0 0.0
        %3074 = vmatpush2.msra.mxu0 0.0
        %3075 = vmatprep.subr.mxu0 0.0
        %3076 = vmatpush2.msra.mxu0 0.0
        %3077 = vmatprep.subr.mxu0 0.0
        %3078 = vmatpush2.msra.mxu0 0.0
        %3079 = vmatprep.mubr.f32.mxu0 0.0
        %3080 = vmatmul.mubr.f32.gmra.mxu0 %v3007
        %v3081 = vpop.f32.mrf.mxu0
        %v3082 = vadd.f32 %v2993, %v3081
        %v3083 = vpop.f32.mrf.mxu0
        %3084 = vmatprep.mubr.f32.mxu0 0.0
        %3085 = vmatmul.mubr.f32.gmra.mxu0 %v3010
        %v3086 = vpop.f32.mrf.mxu0
        %v3087 = vadd.f32 %v2998, %v3086
        %v3088 = vpop.f32.mrf.mxu0
        %3089 = vmatprep.mubr.f32.mxu0 0.0
        %3090 = vmatmul.mubr.f32.gmra.mxu0 %v3013
        %v3091 = vpop.f32.mrf.mxu0
        %v3092 = vadd.f32 %v3003, %v3091
        %v3093 = vpop.f32.mrf.mxu0
        %3094 = vdwg.mxu0
        %v3095 = vld [vmem:[#allocation5 + $0x2] sm:$0xff]
        %v3096 = vld [vmem:[#allocation5 + $0xa] sm:$0xff]
        %v3097 = vld [vmem:[#allocation5 + $0x12] sm:$0xf]
        %s3098 = scalar_lea.vmem %s11, 224
        %v3099 = vld [vmem:[%s3098] sm:$0xff]
        %v3100 = vld [vmem:[%s3098 + $0x8] sm:$0xff]
        %v3101 = vld [vmem:[%s3098 + $0x10] sm:$0xff]
        %v3102 = vld [vmem:[%s3098 + $0x18] sm:$0xff]
        %v3103 = vld [vmem:[%s3098 + $0x20] sm:$0xff]
        %v3104 = vld [vmem:[%s3098 + $0x28] sm:$0xff]
        %v3105 = vld [vmem:[%s3098 + $0x30] sm:$0xff]
        %v3106 = vld [vmem:[%s3098 + $0x38] sm:$0xff]
        %v3107 = vld [vmem:[%s3098 + $0x40] sm:$0xff]
        %v3108 = vld [vmem:[%s3098 + $0x48] sm:$0xff]
        %v3109 = vld [vmem:[%s3098 + $0x50] sm:$0xff]
        %v3110 = vld [vmem:[%s3098 + $0x58] sm:$0xff]
        %v3111 = vld [vmem:[%s3098 + $0x60] sm:$0xff]
        %v3112 = vld [vmem:[%s3098 + $0x68] sm:$0xff]
        %v3114 = vsel %vm660, %v3095, 0
        %v3117 = vsel %vm660, %v3096, 0
        %v3120 = vsel %vm660, %v3097, 0
        %3122 = vmatprep.subr.mxu0 0.0
        %3123 = vmatpush1.msra.mxu0 0.0
        %3124 = vmatprep.subr.mxu0 0.0
        %3125 = vmatpush1.msra.mxu0 0.0
        %3126 = vmatprep.subr.mxu0 0.0
        %3127 = vmatpush1.msra.mxu0 %v3112
        %3128 = vmatprep.subr.mxu0 0.0
        %3129 = vmatpush1.msra.mxu0 %v3111
        %3130 = vmatprep.subr.mxu0 0.0
        %3131 = vmatpush1.msra.mxu0 %v3110
        %3132 = vmatprep.subr.mxu0 0.0
        %3133 = vmatpush1.msra.mxu0 %v3109
        %3134 = vmatprep.subr.mxu0 0.0
        %3135 = vmatpush1.msra.mxu0 %v3108
        %3136 = vmatprep.subr.mxu0 0.0
        %3137 = vmatpush1.msra.mxu0 %v3107
        %3138 = vmatprep.subr.mxu0 0.0
        %3139 = vmatpush1.msra.mxu0 %v3106
        %3140 = vmatprep.subr.mxu0 0.0
        %3141 = vmatpush1.msra.mxu0 %v3105
        %3142 = vmatprep.subr.mxu0 0.0
        %3143 = vmatpush1.msra.mxu0 %v3104
        %3144 = vmatprep.subr.mxu0 0.0
        %3145 = vmatpush1.msra.mxu0 %v3103
        %3146 = vmatprep.subr.mxu0 0.0
        %3147 = vmatpush1.msra.mxu0 %v3102
        %3148 = vmatprep.subr.mxu0 0.0
        %3149 = vmatpush1.msra.mxu0 %v3101
        %3150 = vmatprep.subr.mxu0 0.0
        %3151 = vmatpush1.msra.mxu0 %v3100
        %3152 = vmatprep.subr.mxu0 0.0
        %3153 = vmatpush1.msra.mxu0 %v3099
        %3154 = vmatprep.subr.mxu0 0.0
        %3155 = vmatpush2.msra.mxu0 0.0
        %3156 = vmatprep.subr.mxu0 0.0
        %3157 = vmatpush2.msra.mxu0 0.0
        %3158 = vmatprep.subr.mxu0 0.0
        %3159 = vmatpush2.msra.mxu0 0.0
        %3160 = vmatprep.subr.mxu0 0.0
        %3161 = vmatpush2.msra.mxu0 0.0
        %3162 = vmatprep.subr.mxu0 0.0
        %3163 = vmatpush2.msra.mxu0 0.0
        %3164 = vmatprep.subr.mxu0 0.0
        %3165 = vmatpush2.msra.mxu0 0.0
        %3166 = vmatprep.subr.mxu0 0.0
        %3167 = vmatpush2.msra.mxu0 0.0
        %3168 = vmatprep.subr.mxu0 0.0
        %3169 = vmatpush2.msra.mxu0 0.0
        %3170 = vmatprep.subr.mxu0 0.0
        %3171 = vmatpush2.msra.mxu0 0.0
        %3172 = vmatprep.subr.mxu0 0.0
        %3173 = vmatpush2.msra.mxu0 0.0
        %3174 = vmatprep.subr.mxu0 0.0
        %3175 = vmatpush2.msra.mxu0 0.0
        %3176 = vmatprep.subr.mxu0 0.0
        %3177 = vmatpush2.msra.mxu0 0.0
        %3178 = vmatprep.subr.mxu0 0.0
        %3179 = vmatpush2.msra.mxu0 0.0
        %3180 = vmatprep.subr.mxu0 0.0
        %3181 = vmatpush2.msra.mxu0 0.0
        %3182 = vmatprep.subr.mxu0 0.0
        %3183 = vmatpush2.msra.mxu0 0.0
        %3184 = vmatprep.subr.mxu0 0.0
        %3185 = vmatpush2.msra.mxu0 0.0
        %3186 = vmatprep.mubr.f32.mxu0 0.0
        %3187 = vmatmul.mubr.f32.gmra.mxu0 %v3114
        %v3188 = vpop.f32.mrf.mxu0
        %v3189 = vadd.f32 0.0, %v3188
        %v3190 = vpop.f32.mrf.mxu0
        %3191 = vmatprep.mubr.f32.mxu0 0.0
        %3192 = vmatmul.mubr.f32.gmra.mxu0 %v3117
        %v3193 = vpop.f32.mrf.mxu0
        %v3194 = vadd.f32 0.0, %v3193
        %v3195 = vpop.f32.mrf.mxu0
        %3196 = vmatprep.mubr.f32.mxu0 0.0
        %3197 = vmatmul.mubr.f32.gmra.mxu0 %v3120
        %v3198 = vpop.f32.mrf.mxu0
        %v3199 = vadd.f32 0.0, %v3198
        %v3200 = vpop.f32.mrf.mxu0
        %3201 = vdwg.mxu0
        %v3202 = vadd.f32 %v3082, %v3189
        %v3203 = vadd.f32 %v3087, %v3194
        %v3204 = vadd.f32 %v3092, %v3199
        %v3205 = vld [vmem:[%s12] sm:$0x1]
        %v3207 = vlaneseq
        %v3208 = vshrl.u32 %v3207, 7
        %v3209 = vsub.s32 0, %v3208
        %v3210 = vrot.slane %v3205, %v3209
        %v3212 = vadd.f32 %v3202, %v3210
        %v3213 = vadd.f32 %v3203, %v3210
        %v3214 = vadd.f32 %v3204, %v3210
        %s3215 = sld [smem:[#allocation16 + $0x5]]
        %vm3216 = vcmp.ge.f32.partialorder %v3212, 0.0
        %vm3217 = vcmp.ge.f32.partialorder %v3213, 0.0
        %vm3218 = vcmp.ge.f32.partialorder %v3214, 0.0
        %v3219 = vstv %s3215
        %v3220 = vmul.f32 %v3219, %v3212
        %v3221 = vmul.f32 %v3219, %v3213
        %v3222 = vmul.f32 %v3219, %v3214
        %v3223 = vsel %vm3216, %v3212, %v3220
        %v3224 = vsel %vm3217, %v3213, %v3221
        %v3225 = vsel %vm3218, %v3214, %v3222
        %v3226 = vlaneseq
        %vm3227 = vcmp.ge.s32.totalorder %v3226, 0
        %vm3228 = vcmp.lt.s32.totalorder %v3226, 22
        %vm3229 = vmand %vm3227, %vm3228
        %3230 = vst.msk [vmem:[#allocation6] sm:$0x1] %vm3229, %v3223
        %v3233 = vunpack.c.l.s4 1966171168
        %v3234 = vunpack.c.0.s8 %v3233
        %v3235 = vlaneseq
        %v3236 = vshrl.u32 %v3235, 7
        %v3237 = vsub.s32 %v3234, %v3236
        %v3238 = vrot.slane %v3223, %v3237
        %v3239 = vcombine.high %v3238, %v3238
        %v3241 = vunpack.c.l.s4 1966171168
        %v3242 = vunpack.c.0.s8 %v3241
        %v3243 = vlaneseq
        %v3244 = vshrl.u32 %v3243, 7
        %v3245 = vsub.s32 %v3242, %v3244
        %v3246 = vrot.slane %v3238, %v3245
        %v3248 = vunpack.c.l.s4 1966171168
        %v3249 = vunpack.c.0.s8 %v3248
        %v3250 = vlaneseq
        %v3251 = vshrl.u32 %v3250, 7
        %v3252 = vsub.s32 %v3249, %v3251
        %v3253 = vrot.slane %v3239, %v3252
        %3254 = vrot.lane.b32.xlu0 %v3253, 22
        %v3255 = vpop.permute.xlu0 %3254
        %vm3257 = vcmp.ge.s32.totalorder %v3226, 22
        %vm3258 = vcmp.lt.s32.totalorder %v3226, 44
        %vm3259 = vmand %vm3257, %vm3258
        %3260 = vst.msk [vmem:[#allocation6] sm:$0x1] %vm3259, %v3255
        %v3261 = vcombine.high %v3246, %v3246
        %3262 = vrot.lane.b32.xlu0 %v3261, 44
        %v3263 = vpop.permute.xlu0 %3262
        %vm3265 = vcmp.ge.s32.totalorder %v3226, 44
        %vm3266 = vcmp.lt.s32.totalorder %v3226, 66
        %vm3267 = vmand %vm3265, %vm3266
        %3268 = vst.msk [vmem:[#allocation6] sm:$0x1] %vm3267, %v3263
        %v3269 = vcombine.high %v3253, %v3253
        %3270 = vrot.lane.b32.xlu0 %v3269, 66
        %v3271 = vpop.permute.xlu0 %3270
        %vm3273 = vcmp.ge.s32.totalorder %v3226, 66
        %vm3274 = vcmp.lt.s32.totalorder %v3226, 88
        %vm3275 = vmand %vm3273, %vm3274
        %3276 = vst.msk [vmem:[#allocation6] sm:$0x1] %vm3275, %v3271
        %v3277 = vcombine.high %v3223, %v3223
        %v3279 = vunpack.c.l.s4 1966171168
        %v3280 = vunpack.c.0.s8 %v3279
        %v3281 = vlaneseq
        %v3282 = vshrl.u32 %v3281, 7
        %v3283 = vsub.s32 %v3280, %v3282
        %v3284 = vrot.slane %v3277, %v3283
        %v3286 = vunpack.c.l.s4 1966171168
        %v3287 = vunpack.c.0.s8 %v3286
        %v3288 = vlaneseq
        %v3289 = vshrl.u32 %v3288, 7
        %v3290 = vsub.s32 %v3287, %v3289
        %v3291 = vrot.slane %v3284, %v3290
        %3292 = vrot.lane.b32.xlu0 %v3291, 88
        %v3293 = vpop.permute.xlu0 %3292
        %vm3295 = vcmp.ge.s32.totalorder %v3226, 88
        %vm3296 = vcmp.lt.s32.totalorder %v3226, 110
        %vm3297 = vmand %vm3295, %vm3296
        %3298 = vst.msk [vmem:[#allocation6] sm:$0x1] %vm3297, %v3293
        %v3299 = vcombine.high %v3284, %v3284
        %v3301 = vunpack.c.l.s4 1966171168
        %v3302 = vunpack.c.0.s8 %v3301
        %v3303 = vlaneseq
        %v3304 = vshrl.u32 %v3303, 7
        %v3305 = vsub.s32 %v3302, %v3304
        %v3306 = vrot.slane %v3299, %v3305
        %3307 = vrot.lane.b32.xlu0 %v3306, 110
        %v3308 = vpop.permute.xlu0 %3307
        %v3309 = vrot.slane %v3308, 7
        %vm3310 = vcmask 900096
        %v3311 = vsel %vm3310, %v3309, %v3308
        %vm3313 = vcmp.ge.s32.totalorder %v3226, 110
        %vm3314 = vcmp.lt.s32.totalorder %v3226, 132
        %vm3315 = vmand %vm3313, %vm3314
        %3316 = vst.msk [vmem:[#allocation6] sm:$0x3] %vm3315, %v3311
        %v3317 = vcombine.high %v3291, %v3291
        %3318 = vrot.lane.b32.xlu0 %v3317, 4
        %v3319 = vpop.permute.xlu0 %3318
        %vm3321 = vcmp.ge.s32.totalorder %v3226, 4
        %vm3322 = vcmp.lt.s32.totalorder %v3226, 26
        %vm3323 = vmand %vm3321, %vm3322
        %3324 = vst.msk [vmem:[#allocation6 + $0x1] sm:$0x1] %vm3323, %v3319
        %v3325 = vcombine.high %v3306, %v3306
        %3326 = vrot.lane.b32.xlu0 %v3325, 26
        %v3327 = vpop.permute.xlu0 %3326
        %vm3329 = vcmp.ge.s32.totalorder %v3226, 26
        %vm3330 = vcmp.lt.s32.totalorder %v3226, 48
        %vm3331 = vmand %vm3329, %vm3330
        %3332 = vst.msk [vmem:[#allocation6 + $0x1] sm:$0x1] %vm3331, %v3327
        %v3335 = vunpack.c.l.s4 1966171168
        %v3336 = vunpack.c.0.s8 %v3335
        %v3337 = vlaneseq
        %v3338 = vshrl.u32 %v3337, 7
        %v3339 = vsub.s32 %v3336, %v3338
        %v3340 = vrot.slane %v3224, %v3339
        %v3342 = vunpack.c.l.s4 1966171168
        %v3343 = vunpack.c.0.s8 %v3342
        %v3344 = vlaneseq
        %v3345 = vshrl.u32 %v3344, 7
        %v3346 = vsub.s32 %v3343, %v3345
        %v3347 = vrot.slane %v3340, %v3346
        %3348 = vrot.lane.b32.xlu0 %v3347, 48
        %v3349 = vpop.permute.xlu0 %3348
        %vm3351 = vcmp.ge.s32.totalorder %v3226, 48
        %vm3352 = vcmp.lt.s32.totalorder %v3226, 70
        %vm3353 = vmand %vm3351, %vm3352
        %3354 = vst.msk [vmem:[#allocation6 + $0x1] sm:$0x1] %vm3353, %v3349
        %v3355 = vcombine.high %v3340, %v3340
        %v3357 = vunpack.c.l.s4 1966171168
        %v3358 = vunpack.c.0.s8 %v3357
        %v3359 = vlaneseq
        %v3360 = vshrl.u32 %v3359, 7
        %v3361 = vsub.s32 %v3358, %v3360
        %v3362 = vrot.slane %v3355, %v3361
        %3363 = vrot.lane.b32.xlu0 %v3362, 70
        %v3364 = vpop.permute.xlu0 %3363
        %vm3366 = vcmp.ge.s32.totalorder %v3226, 70
        %vm3367 = vcmp.lt.s32.totalorder %v3226, 92
        %vm3368 = vmand %vm3366, %vm3367
        %3369 = vst.msk [vmem:[#allocation6 + $0x1] sm:$0x1] %vm3368, %v3364
        %v3370 = vcombine.high %v3347, %v3347
        %3371 = vrot.lane.b32.xlu0 %v3370, 92
        %v3372 = vpop.permute.xlu0 %3371
        %vm3374 = vcmp.ge.s32.totalorder %v3226, 92
        %vm3375 = vcmp.lt.s32.totalorder %v3226, 114
        %vm3376 = vmand %vm3374, %vm3375
        %3377 = vst.msk [vmem:[#allocation6 + $0x1] sm:$0x1] %vm3376, %v3372
        %v3378 = vcombine.high %v3362, %v3362
        %3379 = vrot.lane.b32.xlu0 %v3378, 114
        %v3380 = vpop.permute.xlu0 %3379
        %v3381 = vrot.slane %v3380, 7
        %vm3382 = vcmask 932864
        %v3383 = vsel %vm3382, %v3381, %v3380
        %vm3385 = vcmp.ge.s32.totalorder %v3226, 114
        %vm3386 = vcmp.lt.s32.totalorder %v3226, 136
        %vm3387 = vmand %vm3385, %vm3386
        %3388 = vst.msk [vmem:[#allocation6 + $0x1] sm:$0x3] %vm3387, %v3383
        %v3389 = vcombine.high %v3224, %v3224
        %v3391 = vunpack.c.l.s4 1966171168
        %v3392 = vunpack.c.0.s8 %v3391
        %v3393 = vlaneseq
        %v3394 = vshrl.u32 %v3393, 7
        %v3395 = vsub.s32 %v3392, %v3394
        %v3396 = vrot.slane %v3389, %v3395
        %v3398 = vunpack.c.l.s4 1966171168
        %v3399 = vunpack.c.0.s8 %v3398
        %v3400 = vlaneseq
        %v3401 = vshrl.u32 %v3400, 7
        %v3402 = vsub.s32 %v3399, %v3401
        %v3403 = vrot.slane %v3396, %v3402
        %3404 = vrot.lane.b32.xlu0 %v3403, 8
        %v3405 = vpop.permute.xlu0 %3404
        %vm3407 = vcmp.ge.s32.totalorder %v3226, 8
        %vm3408 = vcmp.lt.s32.totalorder %v3226, 30
        %vm3409 = vmand %vm3407, %vm3408
        %3410 = vst.msk [vmem:[#allocation6 + $0x2] sm:$0x1] %vm3409, %v3405
        %v3411 = vcombine.high %v3396, %v3396
        %v3413 = vunpack.c.l.s4 1966171168
        %v3414 = vunpack.c.0.s8 %v3413
        %v3415 = vlaneseq
        %v3416 = vshrl.u32 %v3415, 7
        %v3417 = vsub.s32 %v3414, %v3416
        %v3418 = vrot.slane %v3411, %v3417
        %3419 = vrot.lane.b32.xlu0 %v3418, 30
        %v3420 = vpop.permute.xlu0 %3419
        %vm3422 = vcmp.ge.s32.totalorder %v3226, 30
        %vm3423 = vcmp.lt.s32.totalorder %v3226, 52
        %vm3424 = vmand %vm3422, %vm3423
        %3425 = vst.msk [vmem:[#allocation6 + $0x2] sm:$0x1] %vm3424, %v3420
        %v3426 = vcombine.high %v3403, %v3403
        %3427 = vrot.lane.b32.xlu0 %v3426, 52
        %v3428 = vpop.permute.xlu0 %3427
        %vm3430 = vcmp.ge.s32.totalorder %v3226, 52
        %vm3431 = vcmp.lt.s32.totalorder %v3226, 74
        %vm3432 = vmand %vm3430, %vm3431
        %3433 = vst.msk [vmem:[#allocation6 + $0x2] sm:$0x1] %vm3432, %v3428
        %v3434 = vcombine.high %v3418, %v3418
        %3435 = vrot.lane.b32.xlu0 %v3434, 74
        %v3436 = vpop.permute.xlu0 %3435
        %vm3438 = vcmp.ge.s32.totalorder %v3226, 74
        %vm3439 = vcmp.lt.s32.totalorder %v3226, 96
        %vm3440 = vmand %vm3438, %vm3439
        %3441 = vst.msk [vmem:[#allocation6 + $0x2] sm:$0x1] %vm3440, %v3436
        %v3444 = vunpack.c.l.s4 1966171168
        %v3445 = vunpack.c.0.s8 %v3444
        %v3446 = vlaneseq
        %v3447 = vshrl.u32 %v3446, 7
        %v3448 = vsub.s32 %v3445, %v3447
        %v3449 = vrot.slane %v3225, %v3448
        %v3451 = vunpack.c.l.s4 1966171168
        %v3452 = vunpack.c.0.s8 %v3451
        %v3453 = vlaneseq
        %v3454 = vshrl.u32 %v3453, 7
        %v3455 = vsub.s32 %v3452, %v3454
        %v3456 = vrot.slane %v3449, %v3455
        %3457 = vrot.lane.b32.xlu0 %v3456, 96
        %v3458 = vpop.permute.xlu0 %3457
        %vm3460 = vcmp.ge.s32.totalorder %v3226, 96
        %vm3461 = vcmp.lt.s32.totalorder %v3226, 118
        %vm3462 = vmand %vm3460, %vm3461
        %3463 = vst.msk [vmem:[#allocation6 + $0x2] sm:$0x1] %vm3462, %v3458
        %v3464 = vcombine.high %v3449, %v3449
        %v3466 = vunpack.c.l.s4 1966171168
        %v3467 = vunpack.c.0.s8 %v3466
        %v3468 = vlaneseq
        %v3469 = vshrl.u32 %v3468, 7
        %v3470 = vsub.s32 %v3467, %v3469
        %v3471 = vrot.slane %v3464, %v3470
        %3472 = vrot.lane.b32.xlu0 %v3471, 118
        %v3473 = vpop.permute.xlu0 %3472
        %v3474 = vrot.slane %v3473, 7
        %vm3475 = vcmask 965632
        %v3476 = vsel %vm3475, %v3474, %v3473
        %vm3478 = vcmp.ge.s32.totalorder %v3226, 118
        %vm3479 = vcmp.lt.s32.totalorder %v3226, 140
        %vm3480 = vmand %vm3478, %vm3479
        %3481 = vst.msk [vmem:[#allocation6 + $0x2] sm:$0x3] %vm3480, %v3476
        %v3482 = vcombine.high %v3456, %v3456
        %3483 = vrot.lane.b32.xlu0 %v3482, 12
        %v3484 = vpop.permute.xlu0 %3483
        %vm3486 = vcmp.ge.s32.totalorder %v3226, 12
        %vm3487 = vcmp.lt.s32.totalorder %v3226, 34
        %vm3488 = vmand %vm3486, %vm3487
        %3489 = vst.msk [vmem:[#allocation6 + $0x3] sm:$0x1] %vm3488, %v3484
        %v3490 = vcombine.high %v3471, %v3471
        %3491 = vrot.lane.b32.xlu0 %v3490, 34
        %v3492 = vpop.permute.xlu0 %3491
        %vm3494 = vcmp.ge.s32.totalorder %v3226, 34
        %vm3495 = vcmp.lt.s32.totalorder %v3226, 56
        %vm3496 = vmand %vm3494, %vm3495
        %3497 = vst.msk [vmem:[#allocation6 + $0x3] sm:$0x1] %vm3496, %v3492
        %v3498 = vld [vmem:[#allocation6] sm:$0xf]
        %v3499 = vld [vmem:[%s13] sm:$0xff]
        %v3500 = vld [vmem:[%s13 + $0x8] sm:$0xff]
        %v3501 = vld [vmem:[%s13 + $0x10] sm:$0xff]
        %v3502 = vld [vmem:[%s13 + $0x18] sm:$0xff]
        %v3503 = vld [vmem:[%s13 + $0x20] sm:$0xff]
        %v3504 = vld [vmem:[%s13 + $0x28] sm:$0xff]
        %v3505 = vld [vmem:[%s13 + $0x30] sm:$0xff]
        %v3506 = vld [vmem:[%s13 + $0x38] sm:$0xff]
        %v3507 = vld [vmem:[%s13 + $0x40] sm:$0xff]
        %v3508 = vld [vmem:[%s13 + $0x48] sm:$0xff]
        %v3509 = vld [vmem:[%s13 + $0x50] sm:$0xff]
        %v3510 = vld [vmem:[%s13 + $0x58] sm:$0xff]
        %v3511 = vld [vmem:[%s13 + $0x60] sm:$0xff]
        %v3512 = vld [vmem:[%s13 + $0x68] sm:$0xff]
        %v3513 = vld [vmem:[%s13 + $0x70] sm:$0xff]
        %v3514 = vld [vmem:[%s13 + $0x78] sm:$0xff]
        %v3515 = vld [vmem:[%s13 + $0x80] sm:$0xff]
        %v3516 = vld [vmem:[%s13 + $0x88] sm:$0xff]
        %v3517 = vld [vmem:[%s13 + $0x90] sm:$0xff]
        %v3518 = vld [vmem:[%s13 + $0x98] sm:$0xff]
        %v3519 = vld [vmem:[%s13 + $0xa0] sm:$0xff]
        %v3520 = vld [vmem:[%s13 + $0xa8] sm:$0xff]
        %v3521 = vld [vmem:[%s13 + $0xb0] sm:$0xff]
        %v3522 = vld [vmem:[%s13 + $0xb8] sm:$0xff]
        %v3523 = vld [vmem:[%s13 + $0xc0] sm:$0xff]
        %v3524 = vld [vmem:[%s13 + $0xc8] sm:$0xff]
        %v3525 = vld [vmem:[%s13 + $0xd0] sm:$0xff]
        %v3526 = vld [vmem:[%s13 + $0xd8] sm:$0xff]
        %v3527 = vld [vmem:[%s13 + $0xe0] sm:$0xff]
        %v3528 = vld [vmem:[%s13 + $0xe8] sm:$0xff]
        %v3529 = vld [vmem:[%s13 + $0xf0] sm:$0xff]
        %v3530 = vld [vmem:[%s13 + $0xf8] sm:$0xff]
        %v3531 = vld [vmem:[%s13 + $0x100] sm:$0xff]
        %v3532 = vld [vmem:[%s13 + $0x108] sm:$0xff]
        %v3533 = vld [vmem:[%s13 + $0x110] sm:$0xff]
        %v3534 = vld [vmem:[%s13 + $0x118] sm:$0xff]
        %v3535 = vld [vmem:[%s13 + $0x120] sm:$0xff]
        %v3536 = vld [vmem:[%s13 + $0x128] sm:$0xff]
        %v3537 = vld [vmem:[%s13 + $0x130] sm:$0xff]
        %v3538 = vld [vmem:[%s13 + $0x138] sm:$0xff]
        %v3539 = vld [vmem:[%s13 + $0x140] sm:$0xff]
        %v3540 = vld [vmem:[%s13 + $0x148] sm:$0xff]
        %v3541 = vld [vmem:[%s13 + $0x150] sm:$0xff]
        %v3542 = vld [vmem:[%s13 + $0x158] sm:$0xff]
        %v3543 = vld [vmem:[%s13 + $0x160] sm:$0xff]
        %v3544 = vld [vmem:[%s13 + $0x168] sm:$0xff]
        %v3545 = vld [vmem:[%s13 + $0x170] sm:$0xff]
        %v3546 = vld [vmem:[%s13 + $0x178] sm:$0xff]
        %v3547 = vld [vmem:[%s13 + $0x180] sm:$0xff]
        %v3548 = vld [vmem:[%s13 + $0x188] sm:$0xff]
        %v3549 = vld [vmem:[%s13 + $0x190] sm:$0xff]
        %v3550 = vld [vmem:[%s13 + $0x198] sm:$0xff]
        %v3551 = vld [vmem:[%s13 + $0x1a0] sm:$0xff]
        %v3552 = vld [vmem:[%s13 + $0x1a8] sm:$0xff]
        %v3553 = vld [vmem:[%s13 + $0x1b0] sm:$0xff]
        %v3554 = vld [vmem:[%s14] sm:$0x1]
        %v3556 = vlaneseq
        %v3557 = vshrl.u32 %v3556, 7
        %v3558 = vsub.s32 0, %v3557
        %v3559 = vrot.slane %v3498, %v3558
        %v3560 = vlaneseq
        %v3561 = vshrl.u32 %v3560, 7
        %v3562 = vsub.s32 1, %v3561
        %v3563 = vrot.slane %v3498, %v3562
        %v3564 = vlaneseq
        %v3565 = vshrl.u32 %v3564, 7
        %v3566 = vsub.s32 2, %v3565
        %v3567 = vrot.slane %v3498, %v3566
        %v3568 = vlaneseq
        %v3569 = vshrl.u32 %v3568, 7
        %v3570 = vsub.s32 3, %v3569
        %v3571 = vrot.slane %v3498, %v3570
        %vm3575 = vcmask 457728
        %v3576 = vsel %vm3575, %v3571, 0
        %3578 = vmatprep.subr.mxu0 0.0
        %3579 = vmatpush1.msra.mxu0 %v3514
        %3580 = vmatprep.subr.mxu0 0.0
        %3581 = vmatpush1.msra.mxu0 %v3513
        %3582 = vmatprep.subr.mxu0 0.0
        %3583 = vmatpush1.msra.mxu0 %v3512
        %3584 = vmatprep.subr.mxu0 0.0
        %3585 = vmatpush1.msra.mxu0 %v3511
        %3586 = vmatprep.subr.mxu0 0.0
        %3587 = vmatpush1.msra.mxu0 %v3510
        %3588 = vmatprep.subr.mxu0 0.0
        %3589 = vmatpush1.msra.mxu0 %v3509
        %3590 = vmatprep.subr.mxu0 0.0
        %3591 = vmatpush1.msra.mxu0 %v3508
        %3592 = vmatprep.subr.mxu0 0.0
        %3593 = vmatpush1.msra.mxu0 %v3507
        %3594 = vmatprep.subr.mxu0 0.0
        %3595 = vmatpush1.msra.mxu0 %v3506
        %3596 = vmatprep.subr.mxu0 0.0
        %3597 = vmatpush1.msra.mxu0 %v3505
        %3598 = vmatprep.subr.mxu0 0.0
        %3599 = vmatpush1.msra.mxu0 %v3504
        %3600 = vmatprep.subr.mxu0 0.0
        %3601 = vmatpush1.msra.mxu0 %v3503
        %3602 = vmatprep.subr.mxu0 0.0
        %3603 = vmatpush1.msra.mxu0 %v3502
        %3604 = vmatprep.subr.mxu0 0.0
        %3605 = vmatpush1.msra.mxu0 %v3501
        %3606 = vmatprep.subr.mxu0 0.0
        %3607 = vmatpush1.msra.mxu0 %v3500
        %3608 = vmatprep.subr.mxu0 0.0
        %3609 = vmatpush1.msra.mxu0 %v3499
        %3610 = vmatprep.subr.mxu0 0.0
        %3611 = vmatpush2.msra.mxu0 %v3530
        %3612 = vmatprep.subr.mxu0 0.0
        %3613 = vmatpush2.msra.mxu0 %v3529
        %3614 = vmatprep.subr.mxu0 0.0
        %3615 = vmatpush2.msra.mxu0 %v3528
        %3616 = vmatprep.subr.mxu0 0.0
        %3617 = vmatpush2.msra.mxu0 %v3527
        %3618 = vmatprep.subr.mxu0 0.0
        %3619 = vmatpush2.msra.mxu0 %v3526
        %3620 = vmatprep.subr.mxu0 0.0
        %3621 = vmatpush2.msra.mxu0 %v3525
        %3622 = vmatprep.subr.mxu0 0.0
        %3623 = vmatpush2.msra.mxu0 %v3524
        %3624 = vmatprep.subr.mxu0 0.0
        %3625 = vmatpush2.msra.mxu0 %v3523
        %3626 = vmatprep.subr.mxu0 0.0
        %3627 = vmatpush2.msra.mxu0 %v3522
        %3628 = vmatprep.subr.mxu0 0.0
        %3629 = vmatpush2.msra.mxu0 %v3521
        %3630 = vmatprep.subr.mxu0 0.0
        %3631 = vmatpush2.msra.mxu0 %v3520
        %3632 = vmatprep.subr.mxu0 0.0
        %3633 = vmatpush2.msra.mxu0 %v3519
        %3634 = vmatprep.subr.mxu0 0.0
        %3635 = vmatpush2.msra.mxu0 %v3518
        %3636 = vmatprep.subr.mxu0 0.0
        %3637 = vmatpush2.msra.mxu0 %v3517
        %3638 = vmatprep.subr.mxu0 0.0
        %3639 = vmatpush2.msra.mxu0 %v3516
        %3640 = vmatprep.subr.mxu0 0.0
        %3641 = vmatpush2.msra.mxu0 %v3515
        %3642 = vmatprep.mubr.f32.mxu0 %v3563
        %3643 = vmatmul.mubr.f32.gmra.mxu0 %v3559
        %v3644 = vpop.f32.mrf.mxu0
        %v3645 = vadd.f32 %v3554, %v3644
        %v3646 = vpop.f32.mrf.mxu0
        %3647 = vdwg.mxu0
        %3648 = vmatprep.subr.mxu0 0.0
        %3649 = vmatpush1.msra.mxu0 %v3546
        %3650 = vmatprep.subr.mxu0 0.0
        %3651 = vmatpush1.msra.mxu0 %v3545
        %3652 = vmatprep.subr.mxu0 0.0
        %3653 = vmatpush1.msra.mxu0 %v3544
        %3654 = vmatprep.subr.mxu0 0.0
        %3655 = vmatpush1.msra.mxu0 %v3543
        %3656 = vmatprep.subr.mxu0 0.0
        %3657 = vmatpush1.msra.mxu0 %v3542
        %3658 = vmatprep.subr.mxu0 0.0
        %3659 = vmatpush1.msra.mxu0 %v3541
        %3660 = vmatprep.subr.mxu0 0.0
        %3661 = vmatpush1.msra.mxu0 %v3540
        %3662 = vmatprep.subr.mxu0 0.0
        %3663 = vmatpush1.msra.mxu0 %v3539
        %3664 = vmatprep.subr.mxu0 0.0
        %3665 = vmatpush1.msra.mxu0 %v3538
        %3666 = vmatprep.subr.mxu0 0.0
        %3667 = vmatpush1.msra.mxu0 %v3537
        %3668 = vmatprep.subr.mxu0 0.0
        %3669 = vmatpush1.msra.mxu0 %v3536
        %3670 = vmatprep.subr.mxu0 0.0
        %3671 = vmatpush1.msra.mxu0 %v3535
        %3672 = vmatprep.subr.mxu0 0.0
        %3673 = vmatpush1.msra.mxu0 %v3534
        %3674 = vmatprep.subr.mxu0 0.0
        %3675 = vmatpush1.msra.mxu0 %v3533
        %3676 = vmatprep.subr.mxu0 0.0
        %3677 = vmatpush1.msra.mxu0 %v3532
        %3678 = vmatprep.subr.mxu0 0.0
        %3679 = vmatpush1.msra.mxu0 %v3531
        %3680 = vmatprep.subr.mxu0 0.0
        %3681 = vmatpush2.msra.mxu0 0.0
        %3682 = vmatprep.subr.mxu0 0.0
        %3683 = vmatpush2.msra.mxu0 0.0
        %3684 = vmatprep.subr.mxu0 0.0
        %3685 = vmatpush2.msra.mxu0 0.0
        %3686 = vmatprep.subr.mxu0 0.0
        %3687 = vmatpush2.msra.mxu0 0.0
        %3688 = vmatprep.subr.mxu0 0.0
        %3689 = vmatpush2.msra.mxu0 0.0
        %3690 = vmatprep.subr.mxu0 0.0
        %3691 = vmatpush2.msra.mxu0 0.0
        %3692 = vmatprep.subr.mxu0 0.0
        %3693 = vmatpush2.msra.mxu0 0.0
        %3694 = vmatprep.subr.mxu0 0.0
        %3695 = vmatpush2.msra.mxu0 0.0
        %3696 = vmatprep.subr.mxu0 0.0
        %3697 = vmatpush2.msra.mxu0 0.0
        %3698 = vmatprep.subr.mxu0 0.0
        %3699 = vmatpush2.msra.mxu0 %v3553
        %3700 = vmatprep.subr.mxu0 0.0
        %3701 = vmatpush2.msra.mxu0 %v3552
        %3702 = vmatprep.subr.mxu0 0.0
        %3703 = vmatpush2.msra.mxu0 %v3551
        %3704 = vmatprep.subr.mxu0 0.0
        %3705 = vmatpush2.msra.mxu0 %v3550
        %3706 = vmatprep.subr.mxu0 0.0
        %3707 = vmatpush2.msra.mxu0 %v3549
        %3708 = vmatprep.subr.mxu0 0.0
        %3709 = vmatpush2.msra.mxu0 %v3548
        %3710 = vmatprep.subr.mxu0 0.0
        %3711 = vmatpush2.msra.mxu0 %v3547
        %3712 = vmatprep.mubr.f32.mxu0 %v3576
        %3713 = vmatmul.mubr.f32.gmra.mxu0 %v3567
        %v3714 = vpop.f32.mrf.mxu0
        %v3715 = vadd.f32 %v3645, %v3714
        %v3716 = vpop.f32.mrf.mxu0
        %3717 = vdwg.mxu0
        %s3718 = sld [smem:[#allocation16 + $0x6]]
        %vm3719 = vcmp.ge.f32.partialorder %v3715, 0.0
        %v3720 = vstv %s3718
        %v3721 = vmul.f32 %v3720, %v3715
        %v3722 = vsel %vm3719, %v3715, %v3721
        %v3723 = vld [vmem:[%s15] sm:$0xff]
        %v3724 = vld [vmem:[%s15 + $0x8] sm:$0xff]
        %v3725 = vld [vmem:[%s15 + $0x10] sm:$0xff]
        %v3726 = vld [vmem:[%s15 + $0x18] sm:$0xff]
        %v3727 = vld [vmem:[%s15 + $0x20] sm:$0xff]
        %v3728 = vld [vmem:[%s15 + $0x28] sm:$0xff]
        %v3729 = vld [vmem:[%s15 + $0x30] sm:$0xff]
        %v3730 = vld [vmem:[%s15 + $0x38] sm:$0xff]
        %v3731 = vld [vmem:[%s15 + $0x40] sm:$0xff]
        %v3732 = vld [vmem:[%s15 + $0x48] sm:$0xff]
        %v3733 = vld [vmem:[%s15 + $0x50] sm:$0xff]
        %v3734 = vld [vmem:[%s15 + $0x58] sm:$0xff]
        %v3735 = vld [vmem:[%s15 + $0x60] sm:$0xf]
        %v3736 = vld [vmem:[%s16] sm:$0x1]
        %vm3737 = vcmask 818176
        %v3739 = vsel %vm3737, %v3722, 0
        %v3742 = vsel %vm1366, %v3735, 0
        %3744 = vmatprep.subr.mxu0 0.0
        %3745 = vmatpush1.msra.mxu0 0.0
        %3746 = vmatprep.subr.mxu0 0.0
        %3747 = vmatpush1.msra.mxu0 0.0
        %3748 = vmatprep.subr.mxu0 0.0
        %3749 = vmatpush1.msra.mxu0 0.0
        %3750 = vmatprep.subr.mxu0 0.0
        %3751 = vmatpush1.msra.mxu0 %v3742
        %3752 = vmatprep.subr.mxu0 0.0
        %3753 = vmatpush1.msra.mxu0 %v3734
        %3754 = vmatprep.subr.mxu0 0.0
        %3755 = vmatpush1.msra.mxu0 %v3733
        %3756 = vmatprep.subr.mxu0 0.0
        %3757 = vmatpush1.msra.mxu0 %v3732
        %3758 = vmatprep.subr.mxu0 0.0
        %3759 = vmatpush1.msra.mxu0 %v3731
        %3760 = vmatprep.subr.mxu0 0.0
        %3761 = vmatpush1.msra.mxu0 %v3730
        %3762 = vmatprep.subr.mxu0 0.0
        %3763 = vmatpush1.msra.mxu0 %v3729
        %3764 = vmatprep.subr.mxu0 0.0
        %3765 = vmatpush1.msra.mxu0 %v3728
        %3766 = vmatprep.subr.mxu0 0.0
        %3767 = vmatpush1.msra.mxu0 %v3727
        %3768 = vmatprep.subr.mxu0 0.0
        %3769 = vmatpush1.msra.mxu0 %v3726
        %3770 = vmatprep.subr.mxu0 0.0
        %3771 = vmatpush1.msra.mxu0 %v3725
        %3772 = vmatprep.subr.mxu0 0.0
        %3773 = vmatpush1.msra.mxu0 %v3724
        %3774 = vmatprep.subr.mxu0 0.0
        %3775 = vmatpush1.msra.mxu0 %v3723
        %3776 = vmatprep.subr.mxu0 0.0
        %3777 = vmatpush2.msra.mxu0 0.0
        %3778 = vmatprep.subr.mxu0 0.0
        %3779 = vmatpush2.msra.mxu0 0.0
        %3780 = vmatprep.subr.mxu0 0.0
        %3781 = vmatpush2.msra.mxu0 0.0
        %3782 = vmatprep.subr.mxu0 0.0
        %3783 = vmatpush2.msra.mxu0 0.0
        %3784 = vmatprep.subr.mxu0 0.0
        %3785 = vmatpush2.msra.mxu0 0.0
        %3786 = vmatprep.subr.mxu0 0.0
        %3787 = vmatpush2.msra.mxu0 0.0
        %3788 = vmatprep.subr.mxu0 0.0
        %3789 = vmatpush2.msra.mxu0 0.0
        %3790 = vmatprep.subr.mxu0 0.0
        %3791 = vmatpush2.msra.mxu0 0.0
        %3792 = vmatprep.subr.mxu0 0.0
        %3793 = vmatpush2.msra.mxu0 0.0
        %3794 = vmatprep.subr.mxu0 0.0
        %3795 = vmatpush2.msra.mxu0 0.0
        %3796 = vmatprep.subr.mxu0 0.0
        %3797 = vmatpush2.msra.mxu0 0.0
        %3798 = vmatprep.subr.mxu0 0.0
        %3799 = vmatpush2.msra.mxu0 0.0
        %3800 = vmatprep.subr.mxu0 0.0
        %3801 = vmatpush2.msra.mxu0 0.0
        %3802 = vmatprep.subr.mxu0 0.0
        %3803 = vmatpush2.msra.mxu0 0.0
        %3804 = vmatprep.subr.mxu0 0.0
        %3805 = vmatpush2.msra.mxu0 0.0
        %3806 = vmatprep.subr.mxu0 0.0
        %3807 = vmatpush2.msra.mxu0 0.0
        %3808 = vmatprep.mubr.f32.mxu0 0.0
        %3809 = vmatmul.mubr.f32.gmra.mxu0 %v3739
        %v3810 = vpop.f32.mrf.mxu0
        %v3811 = vadd.f32 %v3736, %v3810
        %v3812 = vpop.f32.mrf.mxu0
        %3813 = vdwg.mxu0
        %s3814 = sld [smem:[#allocation16 + $0x7]]
        %vm3815 = vcmp.ge.f32.partialorder %v3811, 0.0
        %v3816 = vstv %s3814
        %v3817 = vmul.f32 %v3816, %v3811
        %v3818 = vsel %vm3815, %v3811, %v3817
        %vm3819 = vcmask 253952
        %3820 = vst.msk [vmem:[%s640] sm:$0x1] %vm3819, %v3818
        %s3821 = sand.u32 %s427, 1
        %s3822 = scalar_lea.sflag [#allocation9], %s3821
        %s3823 = sand.u32 %s427, 1
        %s3824 = scalar_lea.vmem [#allocation17], %s3823
        // Predicated region
        $region113: #{conv_vae_forward.1} parent=91 // pred_check
          %p3825 = pneg %p437
        $region114: #{conv_vae_forward.1} parent=91 // pred_check_branch
          %3827 = sbr.rel (%p3825) target = $region116
        $region115: #{conv_vae_forward.1} parent=91 // pred_region
          %s3829 = ssub.s32 16, 16
          %3830 = vsyncadd %s3822, %s3829
          %s3831 = smul.addr %s36, 16
          %s3832 = scalar_lea.hbm %s18, %s3831
          %s3834 = sshll.u32 %s3824, 4
          %s3835 = int_to_ptr.vmem [resolvable:$true] %s3834
          %3837 = dma.vmem_to_hbm [thread:$0]  %s3835, 16, %s3832, %s3822
        $region116: #{conv_vae_forward.1} parent=91 // pred_fallthru
          _
      $region92: #{conv_vae_forward.1} parent=5 // pred_fallthru
        _
      %p3838 = scmp.le.s32.totalorder 2, %s31
      // Predicated region
      $region117: #{conv_vae_forward.1} parent=5 // pred_check
        %p3839 = pneg %p3838
      $region118: #{conv_vae_forward.1} parent=5 // pred_check_branch
        %3841 = sbr.rel (%p3839) target = $region120
      $region119: #{conv_vae_forward.1} parent=5 // pred_region
        %s3842 = ssub.s32 %s31, 2
        // Predicated region
        $region121: #{conv_vae_forward.1} parent=119 // pred_check
          %p3843 = pneg %p443
        $region122: #{conv_vae_forward.1} parent=119 // pred_check_branch
          %3845 = sbr.rel (%p3843) target = $region124
        $region123: #{conv_vae_forward.1} parent=119 // pred_region
          %s3846 = sand.u32 %s428, 1
          %s3847 = scalar_lea.sflag [#allocation9], %s3846
          %s3848 = sand.u32 %s428, 1
          %s3849 = scalar_lea.vmem [#allocation17], %s3848
          %3850 = dma.done %s3847, 16
        $region124: #{conv_vae_forward.1} parent=119 // pred_fallthru
          _
      $region120: #{conv_vae_forward.1} parent=5 // pred_fallthru
        _
    $region6: #{conv_vae_forward.1} parent=1 // loop_footer
      %s35 = sadd.s32 1, %s31
    $region7: #{conv_vae_forward.1} parent=1 // loop_footer_branch
      %30 = sbr.rel target = $region3
    $region8: #{conv_vae_forward.1} parent=1 // loop_exit
      _
    %3851 = vsyncpa [#allocation8], 1
    %s3852 = scalar_lea.sflag [#allocation8], 1
    %3853 = vsyncpa %s3852, 1
    %3854 = vsyncpa [#allocation12], 1
    %3855 = vsyncpa [#allocation15], 1
    %3856 = vsyncpa [#allocation9], 1
    %s3857 = scalar_lea.sflag [#allocation9], 1
    %3858 = vsyncpa %s3857, 1
    %3859 = vsyncpa [#allocation10], 1
    %s3860 = scalar_lea.sflag [#allocation10], 1
    %3861 = vsyncpa %s3860, 1

</llo_original>
